<compile_context>
chip_gen: v5e
topology: v5e:2x2
jax: 0.10.0
libtpu: 0.0.40
codegen_flags: <defaults>
</compile_context>

<pallas_src>
import functools
import math

import jax
import jax.numpy as jnp
import numpy as np
from jax.experimental import pallas as pl
from jax.experimental.pallas import tpu as pltpu


# ---------------------------------------------------------------------------
# Tiling helpers
# ---------------------------------------------------------------------------
def _sublane_quantum(dtype):
    # 8 rows/sublane-group for 4-byte, 16 for 2-byte, 32 for 1-byte dtypes.
    return max(8, 32 // jnp.dtype(dtype).itemsize)


def _choose_tile(dim, target, quantum):
    """Largest tile <= target that divides dim and is a multiple of `quantum`
    (or the full dim if dim <= target / no such divisor exists)."""
    if dim <= target:
        return dim
    t = (target // quantum) * quantum
    while t >= quantum:
        if dim % t == 0:
            return t
        t -= quantum
    return dim


# ---------------------------------------------------------------------------
# GroupNorm statistics: x (B, C, N) -> per-(B, C) scale / shift  (N-tiled)
# ---------------------------------------------------------------------------
def _gn_stats_kernel(x_ref, g_ref, b_ref, gm_ref, gmt_ref,
                     scale_ref, shift_ref, s1_sc, s2_sc, *, eps, inv_count):
    n = pl.program_id(1)

    @pl.when(n == 0)
    def _():
        s1_sc[...] = jnp.zeros_like(s1_sc)
        s2_sc[...] = jnp.zeros_like(s2_sc)

    x = x_ref[0].astype(jnp.float32)                      # (C, tn)
    s1_sc[...] += jnp.sum(x, axis=1, keepdims=True)       # (C, 1) per-channel sum
    s2_sc[...] += jnp.sum(x * x, axis=1, keepdims=True)   # (C, 1)

    @pl.when(n == pl.num_programs(1) - 1)
    def _():
        gm = gm_ref[...]                                   # (C, G) one-hot membership
        gmt = gmt_ref[...]                                 # (G, C)
        # Per-group moments via small one-hot matmuls (f32 sums; activations are
        # assumed reasonably scaled, E[x^2]-E[x]^2 in f32 is adequate here).
        sum_g = jnp.dot(gmt, s1_sc[...], preferred_element_type=jnp.float32)    # (G,1)
        sumsq_g = jnp.dot(gmt, s2_sc[...], preferred_element_type=jnp.float32)  # (G,1)
        mean_g = sum_g * inv_count
        var_g = sumsq_g * inv_count - mean_g * mean_g
        inv_std_g = jax.lax.rsqrt(var_g + eps)                                  # (G,1)
        mean_c = jnp.dot(gm, mean_g, preferred_element_type=jnp.float32)        # (C,1)
        inv_std_c = jnp.dot(gm, inv_std_g, preferred_element_type=jnp.float32)  # (C,1)
        gamma = g_ref[...].astype(jnp.float32)             # (C, 1)
        beta = b_ref[...].astype(jnp.float32)              # (C, 1)
        scale = inv_std_c * gamma
        scale_ref[0] = scale
        shift_ref[0] = beta - mean_c * scale


def group_norm_stats_pallas(x_cn, gamma, beta, *, num_groups=32, eps=1e-6,
                            tn_target=512):
    B, C, N = x_cn.shape
    assert C % num_groups == 0
    cg = C // num_groups
    group_ids = jnp.arange(C) // cg
    gm = jax.nn.one_hot(group_ids, num_groups, dtype=jnp.float32)   # (C, G)
    gmt = jnp.transpose(gm)                                          # (G, C)
    tn = _choose_tile(N, tn_target, 128)
    kernel = functools.partial(_gn_stats_kernel, eps=eps, inv_count=1.0 / (N * cg))
    return pl.pallas_call(
        kernel,
        out_shape=(jax.ShapeDtypeStruct((B, C, 1), jnp.float32),
                   jax.ShapeDtypeStruct((B, C, 1), jnp.float32)),
        grid=(B, N // tn),
        in_specs=[
            pl.BlockSpec((1, C, tn), lambda b, n: (b, 0, n)),
            pl.BlockSpec((C, 1), lambda b, n: (0, 0)),
            pl.BlockSpec((C, 1), lambda b, n: (0, 0)),
            pl.BlockSpec((C, num_groups), lambda b, n: (0, 0)),
            pl.BlockSpec((num_groups, C), lambda b, n: (0, 0)),
        ],
        out_specs=(pl.BlockSpec((1, C, 1), lambda b, n: (b, 0, 0)),
                   pl.BlockSpec((1, C, 1), lambda b, n: (b, 0, 0))),
        scratch_shapes=[pltpu.VMEM((C, 1), jnp.float32),
                        pltpu.VMEM((C, 1), jnp.float32)],
        compiler_params=pltpu.CompilerParams(
            dimension_semantics=("parallel", "arbitrary")),
    )(x_cn, gamma.reshape(C, 1), beta.reshape(C, 1), gm, gmt)


# ---------------------------------------------------------------------------
# Fused GroupNorm-apply + q/k/v 1x1 convs: x (B, C, N) -> qkv (B, N, 3*Cp)
# ---------------------------------------------------------------------------
def _gn_qkv_kernel(x_ref, scale_ref, shift_ref, w_ref, b_ref, o_ref, *, mxu_dtype):
    x = x_ref[0].astype(jnp.float32)                       # (C, tm)
    h = x * scale_ref[0] + shift_ref[0]                    # GN apply, (C,1) broadcast
    ht = jnp.transpose(h).astype(mxu_dtype)                # (tm, C): XLU tile transpose
    acc = jnp.dot(ht, w_ref[...], preferred_element_type=jnp.float32)   # (tm, 3Cp)
    o_ref[0] = (acc + b_ref[...]).astype(o_ref.dtype)


def gn_qkv_pallas(x_cn, scale, shift, wqkv, bqkv, *, mxu_dtype, out_dtype,
                  tm_target=256):
    B, C, N = x_cn.shape
    C2, N3 = wqkv.shape
    assert C2 == C
    tm = _choose_tile(N, tm_target, 128)
    kernel = functools.partial(_gn_qkv_kernel, mxu_dtype=mxu_dtype)
    return pl.pallas_call(
        kernel,
        out_shape=jax.ShapeDtypeStruct((B, N, N3), out_dtype),
        grid=(B, N // tm),
        in_specs=[
            pl.BlockSpec((1, C, tm), lambda b, m: (b, 0, m)),
            pl.BlockSpec((1, C, 1), lambda b, m: (b, 0, 0)),
            pl.BlockSpec((1, C, 1), lambda b, m: (b, 0, 0)),
            pl.BlockSpec((C, N3), lambda b, m: (0, 0)),     # resident weight block
            pl.BlockSpec((1, N3), lambda b, m: (0, 0)),
        ],
        out_specs=pl.BlockSpec((1, tm, N3), lambda b, m: (b, m, 0)),
        compiler_params=pltpu.CompilerParams(
            dimension_semantics=("parallel", "parallel")),
        cost_estimate=pl.CostEstimate(
            flops=2 * B * N * C * N3,
            transcendentals=0,
            bytes_accessed=(B * C * N + C * N3 + B * N * N3) * x_cn.dtype.itemsize),
    )(x_cn, scale, shift, wqkv, bqkv)


# ---------------------------------------------------------------------------
# Attention over tokens (scale already folded into q)
# ---------------------------------------------------------------------------
def _attn_single_block_kernel(q_ref, k_ref, v_ref, o_ref, *, mxu_dtype):
    # Fast path: all keys fit in one block -> plain softmax, no online-softmax scratch.
    q = q_ref[0].astype(mxu_dtype)                         # (tq, Cp)
    k = k_ref[0].astype(mxu_dtype)                         # (N,  Cp)
    v = v_ref[0].astype(mxu_dtype)                         # (N,  Cp)
    s = jax.lax.dot_general(q, k, (((1,), (1,)), ((), ())),
                            preferred_element_type=jnp.float32)          # (tq, N)
    m = jnp.max(s, axis=-1, keepdims=True)
    p = jnp.exp(s - m)
    l = jnp.sum(p, axis=-1, keepdims=True)
    o = jnp.dot(p.astype(mxu_dtype), v, preferred_element_type=jnp.float32)
    o_ref[0] = (o * pl.reciprocal(l, approx=True)).astype(o_ref.dtype)


def _flash_attn_kernel(q_ref, k_ref, v_ref, o_ref, m_sc, l_sc, acc_sc, *, mxu_dtype):
    ki = pl.program_id(2)

    @pl.when(ki == 0)
    def _():
        m_sc[...] = jnp.full_like(m_sc, -jnp.inf)
        l_sc[...] = jnp.zeros_like(l_sc)
        acc_sc[...] = jnp.zeros_like(acc_sc)

    q = q_ref[0].astype(mxu_dtype)                         # (tq, Cp)
    k = k_ref[0].astype(mxu_dtype)                         # (tk, Cp)
    v = v_ref[0].astype(mxu_dtype)                         # (tk, Cp)
    s = jax.lax.dot_general(q, k, (((1,), (1,)), ((), ())),
                            preferred_element_type=jnp.float32)          # (tq, tk)

    m_prev = m_sc[...]
    m_new = jnp.maximum(m_prev, jnp.max(s, axis=-1, keepdims=True))
    alpha = jnp.exp(m_prev - m_new)
    p = jnp.exp(s - m_new)
    l_sc[...] = alpha * l_sc[...] + jnp.sum(p, axis=-1, keepdims=True)
    acc_sc[...] = alpha * acc_sc[...] + jnp.dot(
        p.astype(mxu_dtype), v, preferred_element_type=jnp.float32)
    m_sc[...] = m_new

    @pl.when(ki == pl.num_programs(2) - 1)
    def _():
        inv_l = pl.reciprocal(l_sc[...], approx=True)      # EUP slot, effectively free
        o_ref[0] = (acc_sc[...] * inv_l).astype(o_ref.dtype)


def attention_pallas(qkv, Cp, *, mxu_dtype, tq_target=256, tk_target=512):
    """qkv: (B, N, 3*Cp) fused, lane-aligned slab -> attention output (B, N, Cp)."""
    B, N, C3 = qkv.shape
    assert C3 == 3 * Cp
    tq = _choose_tile(N, tq_target, _sublane_quantum(qkv.dtype))
    tk = _choose_tile(N, tk_target, 128)
    out_shape = jax.ShapeDtypeStruct((B, N, Cp), qkv.dtype)
    cost = pl.CostEstimate(flops=4 * B * N * N * Cp,
                           transcendentals=B * N * N,
                           bytes_accessed=4 * B * N * Cp * qkv.dtype.itemsize)

    if tk == N:
        # Single-kv-tile fast path (small N: LDM 8x8 / 16x16 layers).
        kernel = functools.partial(_attn_single_block_kernel, mxu_dtype=mxu_dtype)
        return pl.pallas_call(
            kernel,
            out_shape=out_shape,
            grid=(B, N // tq),
            in_specs=[
                pl.BlockSpec((1, tq, Cp), lambda b, qi: (b, qi, 0)),
                pl.BlockSpec((1, N, Cp), lambda b, qi: (b, 0, 1)),
                pl.BlockSpec((1, N, Cp), lambda b, qi: (b, 0, 2)),
            ],
            out_specs=pl.BlockSpec((1, tq, Cp), lambda b, qi: (b, qi, 0)),
            compiler_params=pltpu.CompilerParams(
                dimension_semantics=("parallel", "parallel")),
            cost_estimate=cost,
        )(qkv, qkv, qkv)

    kernel = functools.partial(_flash_attn_kernel, mxu_dtype=mxu_dtype)
    return pl.pallas_call(
        kernel,
        out_shape=out_shape,
        grid=(B, N // tq, N // tk),
        in_specs=[
            pl.BlockSpec((1, tq, Cp), lambda b, qi, ki: (b, qi, 0)),
            pl.BlockSpec((1, tk, Cp), lambda b, qi, ki: (b, ki, 1)),
            pl.BlockSpec((1, tk, Cp), lambda b, qi, ki: (b, ki, 2)),
        ],
        out_specs=pl.BlockSpec((1, tq, Cp), lambda b, qi, ki: (b, qi, 0)),
        scratch_shapes=[
            pltpu.VMEM((tq, 1), jnp.float32),    # running max
            pltpu.VMEM((tq, 1), jnp.float32),    # running denom
            pltpu.VMEM((tq, Cp), jnp.float32),   # running accumulator
        ],
        compiler_params=pltpu.CompilerParams(
            dimension_semantics=("parallel", "parallel", "arbitrary")),
        cost_estimate=cost,
    )(qkv, qkv, qkv)


# ---------------------------------------------------------------------------
# proj_out (1x1 conv) + residual, written back in NCHW (B, C, N) layout
# ---------------------------------------------------------------------------
def _proj_residual_kernel(a_ref, w_ref, b_ref, x_ref, o_ref, *, mxu_dtype):
    a = a_ref[0].astype(mxu_dtype)                                       # (tm, Cp)
    y = jnp.dot(a, w_ref[...], preferred_element_type=jnp.float32) + b_ref[...]
    yt = jnp.transpose(y)                                                # (C, tm)
    o_ref[0] = (yt + x_ref[0].astype(jnp.float32)).astype(o_ref.dtype)


def proj_residual_pallas(attn, wproj, bproj, x_cn, *, mxu_dtype, tm_target=256):
    B, N, Cp = attn.shape
    Cp2, C = wproj.shape
    assert Cp2 == Cp and x_cn.shape == (B, C, N)
    tm = _choose_tile(N, tm_target, 128)
    kernel = functools.partial(_proj_residual_kernel, mxu_dtype=mxu_dtype)
    return pl.pallas_call(
        kernel,
        out_shape=jax.ShapeDtypeStruct((B, C, N), x_cn.dtype),
        grid=(B, N // tm),
        in_specs=[
            pl.BlockSpec((1, tm, Cp), lambda b, m: (b, m, 0)),
            pl.BlockSpec((Cp, C), lambda b, m: (0, 0)),     # resident weight block
            pl.BlockSpec((1, C), lambda b, m: (0, 0)),
            pl.BlockSpec((1, C, tm), lambda b, m: (b, 0, m)),
        ],
        out_specs=pl.BlockSpec((1, C, tm), lambda b, m: (b, 0, m)),
        compiler_params=pltpu.CompilerParams(
            dimension_semantics=("parallel", "parallel")),
        cost_estimate=pl.CostEstimate(
            flops=2 * B * N * Cp * C,
            transcendentals=0,
            bytes_accessed=(B * N * Cp + Cp * C + 2 * B * C * N) * x_cn.dtype.itemsize),
    )(attn, wproj, bproj, x_cn)


# ---------------------------------------------------------------------------
# Module-equivalent forward
# ---------------------------------------------------------------------------
def spatial_self_attention(x, params, *, num_groups=32, eps=1e-6, use_bf16_mxu=False):
    """x: (B, C, H, W) NCHW; params hold GroupNorm affine + 1x1-conv weights (out,in).

    use_bf16_mxu=True casts MXU operands to bf16 (f32 accumulation) for full MXU
    throughput on v5e/v6e/v7x; off by default to keep f32-exact numerics.
    """
    B, C, H, W = x.shape
    N = H * W
    x_cn = x.reshape(B, C, N)                    # pure reshape (free); no NCHW transpose

    in_dtype = x.dtype
    mxu_dtype = jnp.bfloat16 if (use_bf16_mxu and in_dtype == jnp.float32) else in_dtype

    # Lane-align each of the q/k/v sections of the fused slab (pad columns are inert).
    Cp = ((C + 127) // 128) * 128
    attn_scale = float(C) ** -0.5

    def pad_cols(w):      # (C, C) -> (C, Cp), zero pad
        return w if Cp == C else jnp.pad(w, ((0, 0), (0, Cp - C)))

    def pad_vec(v):       # (C,) -> (Cp,), zero pad
        return v if Cp == C else jnp.pad(v, (0, Cp - C))

    # 1x1 conv weights (out,in) -> per-token matmul weights (in,out); fold the softmax
    # scale into wq / bq (compile-time parameter transform, removes a per-step VALU mul).
    wqkv = jnp.concatenate([
        pad_cols(jnp.transpose(params["wq"]) * attn_scale),
        pad_cols(jnp.transpose(params["wk"])),
        pad_cols(jnp.transpose(params["wv"])),
    ], axis=1).astype(mxu_dtype)                                    # (C, 3*Cp)
    bqkv = jnp.concatenate([
        pad_vec(params["bq"] * attn_scale),
        pad_vec(params["bk"]),
        pad_vec(params["bv"]),
    ]).astype(jnp.float32).reshape(1, 3 * Cp)

    wproj = jnp.transpose(params["wproj"])                          # (C, C) in,out
    if Cp != C:
        wproj = jnp.pad(wproj, ((0, Cp - C), (0, 0)))               # zero rows for v pad
    wproj = wproj.astype(mxu_dtype)
    bproj = params["bproj"].astype(jnp.float32).reshape(1, C)

    # 1) GroupNorm statistics -> per-(B, C) scale / shift (tiny tensors; N-tiled).
    scale, shift = group_norm_stats_pallas(
        x_cn, params["gn_gamma"], params["gn_beta"], num_groups=num_groups, eps=eps)

    # 2) Fused GroupNorm-apply + q/k/v projection (h never hits HBM).
    qkv = gn_qkv_pallas(x_cn, scale, shift, wqkv, bqkv,
                        mxu_dtype=mxu_dtype, out_dtype=mxu_dtype)   # (B, N, 3*Cp)

    # 3) Attention over tokens (flash when N has multiple kv tiles).
    attn = attention_pallas(qkv, Cp, mxu_dtype=mxu_dtype)           # (B, N, Cp)

    # 4) proj_out + residual, written back directly in (B, C, N) layout.
    out = proj_residual_pallas(attn, wproj, bproj, x_cn, mxu_dtype=mxu_dtype)
    return out.reshape(B, C, H, W)


# ---------------------------------------------------------------------------
# Pure-JAX reference (mirrors the PyTorch module op-for-op)
# ---------------------------------------------------------------------------
def reference(x, params, *, num_groups=32, eps=1e-6):
    B, C, H, W = x.shape
    xg = x.reshape(B, num_groups, C // num_groups, H, W)
    mean = xg.mean(axis=(2, 3, 4), keepdims=True)
    var = xg.var(axis=(2, 3, 4), keepdims=True)
    hn = ((xg - mean) / jnp.sqrt(var + eps)).reshape(B, C, H, W)
    hn = hn * params["gn_gamma"].reshape(1, C, 1, 1) + params["gn_beta"].reshape(1, C, 1, 1)

    def conv1x1(t, w, b):
        return jnp.einsum("bchw,oc->bohw", t, w) + b.reshape(1, -1, 1, 1)

    q = conv1x1(hn, params["wq"], params["bq"])
    k = conv1x1(hn, params["wk"], params["bk"])
    v = conv1x1(hn, params["wv"], params["bv"])
    N = H * W
    q2 = jnp.transpose(q.reshape(B, C, N), (0, 2, 1))       # (B, N, C)
    k2 = k.reshape(B, C, N)                                  # (B, C, N)
    w_ = jnp.einsum("bic,bcj->bij", q2, k2) * (float(C) ** -0.5)
    w_ = jax.nn.softmax(w_, axis=2)
    v2 = v.reshape(B, C, N)
    h_ = jnp.einsum("bcj,bij->bci", v2, w_).reshape(B, C, H, W)
    h_ = conv1x1(h_, params["wproj"], params["bproj"])
    return x + h_


# ---------------------------------------------------------------------------
if __name__ == "__main__":
    # Small config consistent with the module (GroupNorm needs C % 32 == 0).
    B, C, H, W = 2, 128, 8, 8        # N = H*W = 64 spatial tokens

    key = jax.random.PRNGKey(0)
    kx, kg, kb, kq, kk, kv, ko, kbq, kbk, kbv, kbo = jax.random.split(key, 11)

    x = jax.random.normal(kx, (B, C, H, W), dtype=jnp.float32)

    wscale = 1.0 / math.sqrt(C)
    params = {
        "gn_gamma": 1.0 + 0.1 * jax.random.normal(kg, (C,), dtype=jnp.float32),
        "gn_beta": 0.1 * jax.random.normal(kb, (C,), dtype=jnp.float32),
        "wq": jax.random.normal(kq, (C, C), dtype=jnp.float32) * wscale,
        "wk": jax.random.normal(kk, (C, C), dtype=jnp.float32) * wscale,
        "wv": jax.random.normal(kv, (C, C), dtype=jnp.float32) * wscale,
        "wproj": jax.random.normal(ko, (C, C), dtype=jnp.float32) * wscale,
        "bq": 0.01 * jax.random.normal(kbq, (C,), dtype=jnp.float32),
        "bk": 0.01 * jax.random.normal(kbk, (C,), dtype=jnp.float32),
        "bv": 0.01 * jax.random.normal(kbv, (C,), dtype=jnp.float32),
        "bproj": 0.01 * jax.random.normal(kbo, (C,), dtype=jnp.float32),
    }

    fwd = jax.jit(spatial_self_attention)
    out = jax.block_until_ready(fwd(x, params))

    ref = reference(x, params)
    np.testing.assert_allclose(np.asarray(out), np.asarray(ref), rtol=5e-3, atol=5e-3)

    print("KERNEL_OK")
</pallas_src>

<mosaic_0001>
module attributes {stable_mosaic.version = 11 : i64} {
  func.func @_gn_stats_kernel(%arg0: i32, %arg1: i32, %arg2: memref<1x128x64xf32, #tpu.memory_space<vmem>>, %arg3: memref<128x1xf32, #tpu.memory_space<vmem>>, %arg4: memref<128x1xf32, #tpu.memory_space<vmem>>, %arg5: memref<128x32xf32, #tpu.memory_space<vmem>>, %arg6: memref<32x128xf32, #tpu.memory_space<vmem>>, %arg7: memref<1x128x1xf32, #tpu.memory_space<vmem>>, %arg8: memref<1x128x1xf32, #tpu.memory_space<vmem>>, %arg9: memref<128x1xf32, #tpu.memory_space<vmem>>, %arg10: memref<128x1xf32, #tpu.memory_space<vmem>>) attributes {dimension_semantics = [#tpu.dimension_semantics<parallel>, #tpu.dimension_semantics<arbitrary>], iteration_bounds = array<i64: 2, 1>, scalar_prefetch = 0 : i64, scratch_operands = 2 : i64, tpu.core_type = #tpu.core_type<tc>, window_params = [{transform_indices = @transform_0, window_bounds = array<i64: 1, 128, 64>}, {pipeline_mode = #tpu.pipeline_mode<synchronous>, transform_indices = @transform_1, window_bounds = array<i64: 128, 1>}, {pipeline_mode = #tpu.pipeline_mode<synchronous>, transform_indices = @transform_2, window_bounds = array<i64: 128, 1>}, {pipeline_mode = #tpu.pipeline_mode<synchronous>, transform_indices = @transform_3, window_bounds = array<i64: 128, 32>}, {pipeline_mode = #tpu.pipeline_mode<synchronous>, transform_indices = @transform_4, window_bounds = array<i64: 32, 128>}, {transform_indices = @transform_5, window_bounds = array<i64: 1, 128, 1>}, {transform_indices = @transform_6, window_bounds = array<i64: 1, 128, 1>}]} {
    %c0_i32 = arith.constant 0 : i32
    %0 = arith.cmpi eq, %arg1, %c0_i32 : i32
    %1 = arith.extui %0 : i1 to i32
    %c0_i32_0 = arith.constant 0 : i32
    %2 = arith.cmpi ne, %1, %c0_i32_0 : i32
    scf.if %2 {
      %cst_14 = arith.constant 0.000000e+00 : f32
      %19 = vector.broadcast %cst_14 : f32 to vector<128x1xf32>
      %c0_15 = arith.constant 0 : index
      %c0_16 = arith.constant 0 : index
      %20 = vector.load %arg9[%c0_15, %c0_16] : memref<128x1xf32, #tpu.memory_space<vmem>>, vector<128x1xf32>
      tpu.vector_store %arg9[%c0_15, %c0_16], %19 {strides = array<i32>} : memref<128x1xf32, #tpu.memory_space<vmem>>, vector<128x1xf32>,
      %cst_17 = arith.constant 0.000000e+00 : f32
      %21 = vector.broadcast %cst_17 : f32 to vector<128x1xf32>
      %c0_18 = arith.constant 0 : index
      %c0_19 = arith.constant 0 : index
      %22 = vector.load %arg10[%c0_18, %c0_19] : memref<128x1xf32, #tpu.memory_space<vmem>>, vector<128x1xf32>
      tpu.vector_store %arg10[%c0_18, %c0_19], %21 {strides = array<i32>} : memref<128x1xf32, #tpu.memory_space<vmem>>, vector<128x1xf32>,
    } else {
    }
    %c0 = arith.constant 0 : index
    %c0_1 = arith.constant 0 : index
    %c0_2 = arith.constant 0 : index
    %3 = vector.load %arg2[%c0, %c0_1, %c0_2] : memref<1x128x64xf32, #tpu.memory_space<vmem>>, vector<1x128x64xf32>
    %4 = vector.shape_cast %3 : vector<1x128x64xf32> to vector<128x64xf32>
    %c0_3 = arith.constant 0 : index
    %c0_4 = arith.constant 0 : index
    %5 = vector.load %arg9[%c0_3, %c0_4] : memref<128x1xf32, #tpu.memory_space<vmem>>, vector<128x1xf32>
    %cst = arith.constant dense<0.000000e+00> : vector<128xf32>
    %6 = vector.multi_reduction <add>, %4, %cst [1] : vector<128x64xf32> to vector<128xf32>
    %7 = vector.shape_cast %6 : vector<128xf32> to vector<128x1xf32>
    %8 = arith.addf %5, %7 : vector<128x1xf32>
    %c0_5 = arith.constant 0 : index
    %c0_6 = arith.constant 0 : index
    %9 = vector.load %arg9[%c0_5, %c0_6] : memref<128x1xf32, #tpu.memory_space<vmem>>, vector<128x1xf32>
    tpu.vector_store %arg9[%c0_5, %c0_6], %8 {strides = array<i32>} : memref<128x1xf32, #tpu.memory_space<vmem>>, vector<128x1xf32>,
    %c0_7 = arith.constant 0 : index
    %c0_8 = arith.constant 0 : index
    %10 = vector.load %arg10[%c0_7, %c0_8] : memref<128x1xf32, #tpu.memory_space<vmem>>, vector<128x1xf32>
    %11 = arith.mulf %4, %4 : vector<128x64xf32>
    %cst_9 = arith.constant dense<0.000000e+00> : vector<128xf32>
    %12 = vector.multi_reduction <add>, %11, %cst_9 [1] : vector<128x64xf32> to vector<128xf32>
    %13 = vector.shape_cast %12 : vector<128xf32> to vector<128x1xf32>
    %14 = arith.addf %10, %13 : vector<128x1xf32>
    %c0_10 = arith.constant 0 : index
    %c0_11 = arith.constant 0 : index
    %15 = vector.load %arg10[%c0_10, %c0_11] : memref<128x1xf32, #tpu.memory_space<vmem>>, vector<128x1xf32>
    tpu.vector_store %arg10[%c0_10, %c0_11], %14 {strides = array<i32>} : memref<128x1xf32, #tpu.memory_space<vmem>>, vector<128x1xf32>,
    %c0_i32_12 = arith.constant 0 : i32
    %16 = arith.cmpi eq, %arg1, %c0_i32_12 : i32
    %17 = arith.extui %16 : i1 to i32
    %c0_i32_13 = arith.constant 0 : i32
    %18 = arith.cmpi ne, %17, %c0_i32_13 : i32
    scf.if %18 {
      %c0_14 = arith.constant 0 : index
      %c0_15 = arith.constant 0 : index
      %19 = vector.load %arg5[%c0_14, %c0_15] : memref<128x32xf32, #tpu.memory_space<vmem>>, vector<128x32xf32>
      %c0_16 = arith.constant 0 : index
      %c0_17 = arith.constant 0 : index
      %20 = vector.load %arg6[%c0_16, %c0_17] : memref<32x128xf32, #tpu.memory_space<vmem>>, vector<32x128xf32>
      %c0_18 = arith.constant 0 : index
      %c0_19 = arith.constant 0 : index
      %21 = vector.load %arg9[%c0_18, %c0_19] : memref<128x1xf32, #tpu.memory_space<vmem>>, vector<128x1xf32>
      %cst_20 = arith.constant dense<0.000000e+00> : vector<32x1xf32>
      %22 = tpu.matmul %20, %21, %cst_20 {dimension_numbers = #tpu.dot_dimension_numbers<[1], [0], [0], [1], [0, 0, 1, 1], [], []>} : vector<32x128xf32>, vector<128x1xf32>, vector<32x1xf32> -> vector<32x1xf32>
      %c0_21 = arith.constant 0 : index
      %c0_22 = arith.constant 0 : index
      %23 = vector.load %arg10[%c0_21, %c0_22] : memref<128x1xf32, #tpu.memory_space<vmem>>, vector<128x1xf32>
      %cst_23 = arith.constant dense<0.000000e+00> : vector<32x1xf32>
      %24 = tpu.matmul %20, %23, %cst_23 {dimension_numbers = #tpu.dot_dimension_numbers<[1], [0], [0], [1], [0, 0, 1, 1], [], []>} : vector<32x128xf32>, vector<128x1xf32>, vector<32x1xf32> -> vector<32x1xf32>
      %cst_24 = arith.constant 3.906250e-03 : f32
      %25 = vector.broadcast %cst_24 : f32 to vector<32x1xf32>
      %26 = arith.mulf %22, %25 : vector<32x1xf32>
      %cst_25 = arith.constant 3.906250e-03 : f32
      %27 = vector.broadcast %cst_25 : f32 to vector<32x1xf32>
      %28 = arith.mulf %24, %27 : vector<32x1xf32>
      %29 = arith.mulf %26, %26 : vector<32x1xf32>
      %30 = arith.subf %28, %29 : vector<32x1xf32>
      %cst_26 = arith.constant 9.99999997E-7 : f32
      %31 = vector.broadcast %cst_26 : f32 to vector<32x1xf32>
      %32 = arith.addf %30, %31 : vector<32x1xf32>
      %33 = math.rsqrt %32 : vector<32x1xf32>
      %cst_27 = arith.constant dense<0.000000e+00> : vector<128x1xf32>
      %34 = tpu.matmul %19, %26, %cst_27 {dimension_numbers = #tpu.dot_dimension_numbers<[1], [0], [0], [1], [0, 0, 1, 1], [], []>} : vector<128x32xf32>, vector<32x1xf32>, vector<128x1xf32> -> vector<128x1xf32>
      %cst_28 = arith.constant dense<0.000000e+00> : vector<128x1xf32>
      %35 = tpu.matmul %19, %33, %cst_28 {dimension_numbers = #tpu.dot_dimension_numbers<[1], [0], [0], [1], [0, 0, 1, 1], [], []>} : vector<128x32xf32>, vector<32x1xf32>, vector<128x1xf32> -> vector<128x1xf32>
      %c0_29 = arith.constant 0 : index
      %c0_30 = arith.constant 0 : index
      %36 = vector.load %arg3[%c0_29, %c0_30] : memref<128x1xf32, #tpu.memory_space<vmem>>, vector<128x1xf32>
      %c0_31 = arith.constant 0 : index
      %c0_32 = arith.constant 0 : index
      %37 = vector.load %arg4[%c0_31, %c0_32] : memref<128x1xf32, #tpu.memory_space<vmem>>, vector<128x1xf32>
      %38 = arith.mulf %35, %36 : vector<128x1xf32>
      %c0_33 = arith.constant 0 : index
      %c0_34 = arith.constant 0 : index
      %c0_35 = arith.constant 0 : index
      %39 = vector.load %arg7[%c0_33, %c0_34, %c0_35] : memref<1x128x1xf32, #tpu.memory_space<vmem>>, vector<1x128x1xf32>
      %40 = vector.shape_cast %39 : vector<1x128x1xf32> to vector<128x1xf32>
      %41 = vector.shape_cast %38 : vector<128x1xf32> to vector<1x128x1xf32>
      tpu.vector_store %arg7[%c0_33, %c0_34, %c0_35], %41 {strides = array<i32>} : memref<1x128x1xf32, #tpu.memory_space<vmem>>, vector<1x128x1xf32>,
      %42 = arith.mulf %34, %38 : vector<128x1xf32>
      %43 = arith.subf %37, %42 : vector<128x1xf32>
      %c0_36 = arith.constant 0 : index
      %c0_37 = arith.constant 0 : index
      %c0_38 = arith.constant 0 : index
      %44 = vector.load %arg8[%c0_36, %c0_37, %c0_38] : memref<1x128x1xf32, #tpu.memory_space<vmem>>, vector<1x128x1xf32>
      %45 = vector.shape_cast %44 : vector<1x128x1xf32> to vector<128x1xf32>
      %46 = vector.shape_cast %43 : vector<128x1xf32> to vector<1x128x1xf32>
      tpu.vector_store %arg8[%c0_36, %c0_37, %c0_38], %46 {strides = array<i32>} : memref<1x128x1xf32, #tpu.memory_space<vmem>>, vector<1x128x1xf32>,
    } else {
    }
    return
  }
  func.func @transform_0(%arg0: i32, %arg1: i32) -> (i32, i32, i32) {
    %c0_i32 = arith.constant 0 : i32
    %c0_i32_0 = arith.constant 0 : i32
    return %arg0, %c0_i32, %arg1 : i32, i32, i32
  }
  func.func @transform_1(%arg0: i32, %arg1: i32) -> (i32, i32) {
    %c0_i32 = arith.constant 0 : i32
    %c0_i32_0 = arith.constant 0 : i32
    %c0_i32_1 = arith.constant 0 : i32
    return %c0_i32, %c0_i32_0 : i32, i32
  }
  func.func @transform_2(%arg0: i32, %arg1: i32) -> (i32, i32) {
    %c0_i32 = arith.constant 0 : i32
    %c0_i32_0 = arith.constant 0 : i32
    %c0_i32_1 = arith.constant 0 : i32
    return %c0_i32, %c0_i32_0 : i32, i32
  }
  func.func @transform_3(%arg0: i32, %arg1: i32) -> (i32, i32) {
    %c0_i32 = arith.constant 0 : i32
    %c0_i32_0 = arith.constant 0 : i32
    %c0_i32_1 = arith.constant 0 : i32
    return %c0_i32, %c0_i32_0 : i32, i32
  }
  func.func @transform_4(%arg0: i32, %arg1: i32) -> (i32, i32) {
    %c0_i32 = arith.constant 0 : i32
    %c0_i32_0 = arith.constant 0 : i32
    %c0_i32_1 = arith.constant 0 : i32
    return %c0_i32, %c0_i32_0 : i32, i32
  }
  func.func @transform_5(%arg0: i32, %arg1: i32) -> (i32, i32, i32) {
    %c0_i32 = arith.constant 0 : i32
    %c0_i32_0 = arith.constant 0 : i32
    %c0_i32_1 = arith.constant 0 : i32
    return %arg0, %c0_i32, %c0_i32_0 : i32, i32, i32
  }
  func.func @transform_6(%arg0: i32, %arg1: i32) -> (i32, i32, i32) {
    %c0_i32 = arith.constant 0 : i32
    %c0_i32_0 = arith.constant 0 : i32
    %c0_i32_1 = arith.constant 0 : i32
    return %arg0, %c0_i32, %c0_i32_0 : i32, i32, i32
  }
}

module attributes {stable_mosaic.version = 11 : i64} {
  func.func @_attn_single_block_kernel(%arg0: i32, %arg1: i32, %arg2: memref<1x64x128xf32, #tpu.memory_space<vmem>>, %arg3: memref<1x64x128xf32, #tpu.memory_space<vmem>>, %arg4: memref<1x64x128xf32, #tpu.memory_space<vmem>>, %arg5: memref<1x64x128xf32, #tpu.memory_space<vmem>>) attributes {dimension_semantics = [#tpu.dimension_semantics<parallel>, #tpu.dimension_semantics<parallel>], iteration_bounds = array<i64: 2, 1>, scalar_prefetch = 0 : i64, scratch_operands = 0 : i64, tpu.core_type = #tpu.core_type<tc>, window_params = [{transform_indices = @transform_0, window_bounds = array<i64: 1, 64, 128>}, {transform_indices = @transform_1, window_bounds = array<i64: 1, 64, 128>}, {transform_indices = @transform_2, window_bounds = array<i64: 1, 64, 128>}, {transform_indices = @transform_3, window_bounds = array<i64: 1, 64, 128>}]} {
    %c0 = arith.constant 0 : index
    %c0_0 = arith.constant 0 : index
    %c0_1 = arith.constant 0 : index
    %0 = vector.load %arg2[%c0, %c0_0, %c0_1] : memref<1x64x128xf32, #tpu.memory_space<vmem>>, vector<1x64x128xf32>
    %1 = vector.shape_cast %0 : vector<1x64x128xf32> to vector<64x128xf32>
    %c0_2 = arith.constant 0 : index
    %c0_3 = arith.constant 0 : index
    %c0_4 = arith.constant 0 : index
    %2 = vector.load %arg3[%c0_2, %c0_3, %c0_4] : memref<1x64x128xf32, #tpu.memory_space<vmem>>, vector<1x64x128xf32>
    %3 = vector.shape_cast %2 : vector<1x64x128xf32> to vector<64x128xf32>
    %c0_5 = arith.constant 0 : index
    %c0_6 = arith.constant 0 : index
    %c0_7 = arith.constant 0 : index
    %4 = vector.load %arg4[%c0_5, %c0_6, %c0_7] : memref<1x64x128xf32, #tpu.memory_space<vmem>>, vector<1x64x128xf32>
    %5 = vector.shape_cast %4 : vector<1x64x128xf32> to vector<64x128xf32>
    %cst = arith.constant dense<0.000000e+00> : vector<64x64xf32>
    %6 = tpu.matmul %1, %3, %cst {dimension_numbers = #tpu.dot_dimension_numbers<[1], [1], [0], [0], [0, 0, 1, 0], [], []>} : vector<64x128xf32>, vector<64x128xf32>, vector<64x64xf32> -> vector<64x64xf32>
    %cst_8 = arith.constant dense<0xFF800000> : vector<64xf32>
    %7 = vector.multi_reduction <maximumf>, %6, %cst_8 [1] : vector<64x64xf32> to vector<64xf32>
    %8 = vector.shape_cast %7 : vector<64xf32> to vector<64x1xf32>
    %9 = vector.broadcast %8 : vector<64x1xf32> to vector<64x64xf32>
    %10 = arith.subf %6, %9 : vector<64x64xf32>
    %11 = math.exp %10 : vector<64x64xf32>
    %cst_9 = arith.constant dense<0.000000e+00> : vector<64xf32>
    %12 = vector.multi_reduction <add>, %11, %cst_9 [1] : vector<64x64xf32> to vector<64xf32>
    %13 = vector.shape_cast %12 : vector<64xf32> to vector<64x1xf32>
    %cst_10 = arith.constant dense<0.000000e+00> : vector<64x128xf32>
    %14 = tpu.matmul %11, %5, %cst_10 {dimension_numbers = #tpu.dot_dimension_numbers<[1], [0], [0], [1], [0, 0, 1, 1], [], []>} : vector<64x64xf32>, vector<64x128xf32>, vector<64x128xf32> -> vector<64x128xf32>
    %15 = tpu.reciprocal %13 {approx = true} : vector<64x1xf32> -> vector<64x1xf32>
    %16 = vector.broadcast %15 : vector<64x1xf32> to vector<64x128xf32>
    %17 = arith.mulf %14, %16 : vector<64x128xf32>
    %c0_11 = arith.constant 0 : index
    %c0_12 = arith.constant 0 : index
    %c0_13 = arith.constant 0 : index
    %18 = vector.load %arg5[%c0_11, %c0_12, %c0_13] : memref<1x64x128xf32, #tpu.memory_space<vmem>>, vector<1x64x128xf32>
    %19 = vector.shape_cast %18 : vector<1x64x128xf32> to vector<64x128xf32>
    %20 = vector.shape_cast %17 : vector<64x128xf32> to vector<1x64x128xf32>
    tpu.vector_store %arg5[%c0_11, %c0_12, %c0_13], %20 {strides = array<i32>} : memref<1x64x128xf32, #tpu.memory_space<vmem>>, vector<1x64x128xf32>,
    return
  }
  func.func @transform_0(%arg0: i32, %arg1: i32) -> (i32, i32, i32) {
    %c0_i32 = arith.constant 0 : i32
    %c0_i32_0 = arith.constant 0 : i32
    return %arg0, %arg1, %c0_i32 : i32, i32, i32
  }
  func.func @transform_1(%arg0: i32, %arg1: i32) -> (i32, i32, i32) {
    %c0_i32 = arith.constant 0 : i32
    %c1_i32 = arith.constant 1 : i32
    %c0_i32_0 = arith.constant 0 : i32
    return %arg0, %c0_i32, %c1_i32 : i32, i32, i32
  }
  func.func @transform_2(%arg0: i32, %arg1: i32) -> (i32, i32, i32) {
    %c0_i32 = arith.constant 0 : i32
    %c2_i32 = arith.constant 2 : i32
    %c0_i32_0 = arith.constant 0 : i32
    return %arg0, %c0_i32, %c2_i32 : i32, i32, i32
  }
  func.func @transform_3(%arg0: i32, %arg1: i32) -> (i32, i32, i32) {
    %c0_i32 = arith.constant 0 : i32
    %c0_i32_0 = arith.constant 0 : i32
    return %arg0, %arg1, %c0_i32 : i32, i32, i32
  }
}

module attributes {stable_mosaic.version = 11 : i64} {
  func.func @_gn_qkv_kernel(%arg0: i32, %arg1: i32, %arg2: memref<1x128x64xf32, #tpu.memory_space<vmem>>, %arg3: memref<1x128x1xf32, #tpu.memory_space<vmem>>, %arg4: memref<1x128x1xf32, #tpu.memory_space<vmem>>, %arg5: memref<128x384xf32, #tpu.memory_space<vmem>>, %arg6: memref<1x384xf32, #tpu.memory_space<vmem>>, %arg7: memref<1x64x384xf32, #tpu.memory_space<vmem>>) attributes {dimension_semantics = [#tpu.dimension_semantics<parallel>, #tpu.dimension_semantics<parallel>], iteration_bounds = array<i64: 2, 1>, scalar_prefetch = 0 : i64, scratch_operands = 0 : i64, tpu.core_type = #tpu.core_type<tc>, window_params = [{transform_indices = @transform_0, window_bounds = array<i64: 1, 128, 64>}, {transform_indices = @transform_1, window_bounds = array<i64: 1, 128, 1>}, {transform_indices = @transform_2, window_bounds = array<i64: 1, 128, 1>}, {pipeline_mode = #tpu.pipeline_mode<synchronous>, transform_indices = @transform_3, window_bounds = array<i64: 128, 384>}, {pipeline_mode = #tpu.pipeline_mode<synchronous>, transform_indices = @transform_4, window_bounds = array<i64: 1, 384>}, {transform_indices = @transform_5, window_bounds = array<i64: 1, 64, 384>}]} {
    %c0 = arith.constant 0 : index
    %c0_0 = arith.constant 0 : index
    %c0_1 = arith.constant 0 : index
    %0 = vector.load %arg2[%c0, %c0_0, %c0_1] : memref<1x128x64xf32, #tpu.memory_space<vmem>>, vector<1x128x64xf32>
    %1 = vector.shape_cast %0 : vector<1x128x64xf32> to vector<128x64xf32>
    %c0_2 = arith.constant 0 : index
    %c0_3 = arith.constant 0 : index
    %c0_4 = arith.constant 0 : index
    %2 = vector.load %arg3[%c0_2, %c0_3, %c0_4] : memref<1x128x1xf32, #tpu.memory_space<vmem>>, vector<1x128x1xf32>
    %3 = vector.shape_cast %2 : vector<1x128x1xf32> to vector<128x1xf32>
    %4 = vector.broadcast %3 : vector<128x1xf32> to vector<128x64xf32>
    %5 = arith.mulf %1, %4 : vector<128x64xf32>
    %c0_5 = arith.constant 0 : index
    %c0_6 = arith.constant 0 : index
    %c0_7 = arith.constant 0 : index
    %6 = vector.load %arg4[%c0_5, %c0_6, %c0_7] : memref<1x128x1xf32, #tpu.memory_space<vmem>>, vector<1x128x1xf32>
    %7 = vector.shape_cast %6 : vector<1x128x1xf32> to vector<128x1xf32>
    %8 = vector.broadcast %7 : vector<128x1xf32> to vector<128x64xf32>
    %9 = arith.addf %5, %8 : vector<128x64xf32>
    %10 = tpu.transpose %9, [1, 0] : vector<128x64xf32> -> vector<64x128xf32>
    %c0_8 = arith.constant 0 : index
    %c0_9 = arith.constant 0 : index
    %11 = vector.load %arg5[%c0_8, %c0_9] : memref<128x384xf32, #tpu.memory_space<vmem>>, vector<128x384xf32>
    %cst = arith.constant dense<0.000000e+00> : vector<64x384xf32>
    %12 = tpu.matmul %10, %11, %cst {dimension_numbers = #tpu.dot_dimension_numbers<[1], [0], [0], [1], [0, 0, 1, 1], [], []>} : vector<64x128xf32>, vector<128x384xf32>, vector<64x384xf32> -> vector<64x384xf32>
    %c0_10 = arith.constant 0 : index
    %c0_11 = arith.constant 0 : index
    %13 = vector.load %arg6[%c0_10, %c0_11] : memref<1x384xf32, #tpu.memory_space<vmem>>, vector<1x384xf32>
    %14 = vector.broadcast %13 : vector<1x384xf32> to vector<64x384xf32>
    %15 = arith.addf %12, %14 : vector<64x384xf32>
    %c0_12 = arith.constant 0 : index
    %c0_13 = arith.constant 0 : index
    %c0_14 = arith.constant 0 : index
    %16 = vector.load %arg7[%c0_12, %c0_13, %c0_14] : memref<1x64x384xf32, #tpu.memory_space<vmem>>, vector<1x64x384xf32>
    %17 = vector.shape_cast %16 : vector<1x64x384xf32> to vector<64x384xf32>
    %18 = vector.shape_cast %15 : vector<64x384xf32> to vector<1x64x384xf32>
    tpu.vector_store %arg7[%c0_12, %c0_13, %c0_14], %18 {strides = array<i32>} : memref<1x64x384xf32, #tpu.memory_space<vmem>>, vector<1x64x384xf32>,
    return
  }
  func.func @transform_0(%arg0: i32, %arg1: i32) -> (i32, i32, i32) {
    %c0_i32 = arith.constant 0 : i32
    %c0_i32_0 = arith.constant 0 : i32
    return %arg0, %c0_i32, %arg1 : i32, i32, i32
  }
  func.func @transform_1(%arg0: i32, %arg1: i32) -> (i32, i32, i32) {
    %c0_i32 = arith.constant 0 : i32
    %c0_i32_0 = arith.constant 0 : i32
    %c0_i32_1 = arith.constant 0 : i32
    return %arg0, %c0_i32, %c0_i32_0 : i32, i32, i32
  }
  func.func @transform_2(%arg0: i32, %arg1: i32) -> (i32, i32, i32) {
    %c0_i32 = arith.constant 0 : i32
    %c0_i32_0 = arith.constant 0 : i32
    %c0_i32_1 = arith.constant 0 : i32
    return %arg0, %c0_i32, %c0_i32_0 : i32, i32, i32
  }
  func.func @transform_3(%arg0: i32, %arg1: i32) -> (i32, i32) {
    %c0_i32 = arith.constant 0 : i32
    %c0_i32_0 = arith.constant 0 : i32
    %c0_i32_1 = arith.constant 0 : i32
    return %c0_i32, %c0_i32_0 : i32, i32
  }
  func.func @transform_4(%arg0: i32, %arg1: i32) -> (i32, i32) {
    %c0_i32 = arith.constant 0 : i32
    %c0_i32_0 = arith.constant 0 : i32
    %c0_i32_1 = arith.constant 0 : i32
    return %c0_i32, %c0_i32_0 : i32, i32
  }
  func.func @transform_5(%arg0: i32, %arg1: i32) -> (i32, i32, i32) {
    %c0_i32 = arith.constant 0 : i32
    %c0_i32_0 = arith.constant 0 : i32
    return %arg0, %arg1, %c0_i32 : i32, i32, i32
  }
}

module attributes {stable_mosaic.version = 11 : i64} {
  func.func @_proj_residual_kernel(%arg0: i32, %arg1: i32, %arg2: memref<1x64x128xf32, #tpu.memory_space<vmem>>, %arg3: memref<128x128xf32, #tpu.memory_space<vmem>>, %arg4: memref<1x128xf32, #tpu.memory_space<vmem>>, %arg5: memref<1x128x64xf32, #tpu.memory_space<vmem>>, %arg6: memref<1x128x64xf32, #tpu.memory_space<vmem>>) attributes {dimension_semantics = [#tpu.dimension_semantics<parallel>, #tpu.dimension_semantics<parallel>], iteration_bounds = array<i64: 2, 1>, scalar_prefetch = 0 : i64, scratch_operands = 0 : i64, tpu.core_type = #tpu.core_type<tc>, window_params = [{transform_indices = @transform_0, window_bounds = array<i64: 1, 64, 128>}, {pipeline_mode = #tpu.pipeline_mode<synchronous>, transform_indices = @transform_1, window_bounds = array<i64: 128, 128>}, {pipeline_mode = #tpu.pipeline_mode<synchronous>, transform_indices = @transform_2, window_bounds = array<i64: 1, 128>}, {transform_indices = @transform_3, window_bounds = array<i64: 1, 128, 64>}, {transform_indices = @transform_4, window_bounds = array<i64: 1, 128, 64>}]} {
    %c0 = arith.constant 0 : index
    %c0_0 = arith.constant 0 : index
    %c0_1 = arith.constant 0 : index
    %0 = vector.load %arg2[%c0, %c0_0, %c0_1] : memref<1x64x128xf32, #tpu.memory_space<vmem>>, vector<1x64x128xf32>
    %1 = vector.shape_cast %0 : vector<1x64x128xf32> to vector<64x128xf32>
    %c0_2 = arith.constant 0 : index
    %c0_3 = arith.constant 0 : index
    %2 = vector.load %arg3[%c0_2, %c0_3] : memref<128x128xf32, #tpu.memory_space<vmem>>, vector<128x128xf32>
    %cst = arith.constant dense<0.000000e+00> : vector<64x128xf32>
    %3 = tpu.matmul %1, %2, %cst {dimension_numbers = #tpu.dot_dimension_numbers<[1], [0], [0], [1], [0, 0, 1, 1], [], []>} : vector<64x128xf32>, vector<128x128xf32>, vector<64x128xf32> -> vector<64x128xf32>
    %c0_4 = arith.constant 0 : index
    %c0_5 = arith.constant 0 : index
    %4 = vector.load %arg4[%c0_4, %c0_5] : memref<1x128xf32, #tpu.memory_space<vmem>>, vector<1x128xf32>
    %5 = vector.broadcast %4 : vector<1x128xf32> to vector<64x128xf32>
    %6 = arith.addf %3, %5 : vector<64x128xf32>
    %7 = tpu.transpose %6, [1, 0] : vector<64x128xf32> -> vector<128x64xf32>
    %c0_6 = arith.constant 0 : index
    %c0_7 = arith.constant 0 : index
    %c0_8 = arith.constant 0 : index
    %8 = vector.load %arg5[%c0_6, %c0_7, %c0_8] : memref<1x128x64xf32, #tpu.memory_space<vmem>>, vector<1x128x64xf32>
    %9 = vector.shape_cast %8 : vector<1x128x64xf32> to vector<128x64xf32>
    %10 = arith.addf %7, %9 : vector<128x64xf32>
    %c0_9 = arith.constant 0 : index
    %c0_10 = arith.constant 0 : index
    %c0_11 = arith.constant 0 : index
    %11 = vector.load %arg6[%c0_9, %c0_10, %c0_11] : memref<1x128x64xf32, #tpu.memory_space<vmem>>, vector<1x128x64xf32>
    %12 = vector.shape_cast %11 : vector<1x128x64xf32> to vector<128x64xf32>
    %13 = vector.shape_cast %10 : vector<128x64xf32> to vector<1x128x64xf32>
    tpu.vector_store %arg6[%c0_9, %c0_10, %c0_11], %13 {strides = array<i32>} : memref<1x128x64xf32, #tpu.memory_space<vmem>>, vector<1x128x64xf32>,
    return
  }
  func.func @transform_0(%arg0: i32, %arg1: i32) -> (i32, i32, i32) {
    %c0_i32 = arith.constant 0 : i32
    %c0_i32_0 = arith.constant 0 : i32
    return %arg0, %arg1, %c0_i32 : i32, i32, i32
  }
  func.func @transform_1(%arg0: i32, %arg1: i32) -> (i32, i32) {
    %c0_i32 = arith.constant 0 : i32
    %c0_i32_0 = arith.constant 0 : i32
    %c0_i32_1 = arith.constant 0 : i32
    return %c0_i32, %c0_i32_0 : i32, i32
  }
  func.func @transform_2(%arg0: i32, %arg1: i32) -> (i32, i32) {
    %c0_i32 = arith.constant 0 : i32
    %c0_i32_0 = arith.constant 0 : i32
    %c0_i32_1 = arith.constant 0 : i32
    return %c0_i32, %c0_i32_0 : i32, i32
  }
  func.func @transform_3(%arg0: i32, %arg1: i32) -> (i32, i32, i32) {
    %c0_i32 = arith.constant 0 : i32
    %c0_i32_0 = arith.constant 0 : i32
    return %arg0, %c0_i32, %arg1 : i32, i32, i32
  }
  func.func @transform_4(%arg0: i32, %arg1: i32) -> (i32, i32, i32) {
    %c0_i32 = arith.constant 0 : i32
    %c0_i32_0 = arith.constant 0 : i32
    return %arg0, %c0_i32, %arg1 : i32, i32, i32
  }
}

</mosaic_0001>

<llo_original>
// kernel: spatial_self_attention.6
$region0: #{spatial_self_attention.6}
  #allocation0 [shape = 'u32[]', space=smem, size = 0x4, offset = 0x4, fixed_abs, tag = 'smem constant byte address 0x4 - core index']
  #allocation1 [shape = 'u32[72,128]{1,0:T(1,128)}', space=vmem, size = 0x9000, scoped, tag = 'internal scratch']
  %s0 = inlined_call_operand.vmem [shape: f32[2,64,384], index: 0, kind: input, shape index: {}, may-alias: {0,1,2}]
  %s1 = inlined_call_operand.vmem [shape: f32[2,64,384], index: 1, kind: input, shape index: {}, may-alias: {0,1,2}]
  %s2 = inlined_call_operand.vmem [shape: f32[2,64,384], index: 2, kind: input, shape index: {}, may-alias: {0,1,2}]
  %s3 = inlined_call_operand.vmem [shape: f32[2,64,128], index: 3, kind: output, shape index: {}]
  %s4 = sld [smem:[#allocation0]]
  $region159: #{spatial_self_attention.6} parent=0
    _
  %s6 = ssub.s32 1, %s4
  %s7 = scalar_select 0, %s6, %s4
  $region1: #{spatial_self_attention.6} parent=0
    #allocation2 [shape = 'u8[65536]{0}', space=vmem, size = 0x10000, scoped, tag = 'input window, operand 0']
    #allocation3 [shape = 'u8[65536]{0}', space=vmem, size = 0x10000, scoped, tag = 'input window, operand 1']
    #allocation4 [shape = 'u8[65536]{0}', space=vmem, size = 0x10000, scoped, tag = 'input window, operand 2']
    loop: start=0, step=1, limit=4
    $region2: #{spatial_self_attention.6} parent=1 // loop_pre_header
      _
    $region3: #{spatial_self_attention.6} parent=1 // loop_header
      %s9 = sphi 0, %s13
      %p10 = scmp.ge.s32.totalorder %s9, 4
      %s16 = sphi 0, %s28
      %s17 = sphi 0, %s24
      %s18 = sphi 0, %s16
      %s19 = sphi 0, %s17
      %s20 = sphi 0, %s18
      %s21 = sphi 0, %s19
      %s33 = sphi 0, %s35
      %s36 = sphi 0, %s33
      %s37 = sphi 0, %s36
      %s53 = sphi 0, %s37
      %s59 = sphi 0, %s61
      %s62 = sphi 0, %s59
      %s63 = sphi 0, %s62
      %s79 = sphi 0, %s63
      %s85 = sphi 0, %s87
      %s88 = sphi 0, %s85
      %s89 = sphi 0, %s88
      %s105 = sphi 0, %s89
      %s113 = sphi 0, %s115
      %s116 = sphi 0, %s113
      %s117 = sphi 0, %s116
      %s133 = sphi 0, %s117
    $region4: #{spatial_self_attention.6} parent=1 // loop_header_branch
      %12 = sbr.rel (%p10) target = $region8
    $region5: #{spatial_self_attention.6} parent=1 // loop_body
      %s14 = ssub.s32 %s9, 1
      %s15 = ssub.s32 %s9, 2
      %s22 = sadd.s32 1, %s17
      %p23 = scmp.ge.s32.totalorder %s22, 1
      %s24 = scalar_select %p23, 0, %s22
      %s25 = sadd.s32 1, %s16
      %s26 = scalar_select %p23, %s25, %s16
      %p27 = scmp.ge.s32.totalorder %s26, 2
      %s28 = scalar_select %p27, 0, %s26
      %s29 = ssub.s32 %s16, %s28
      %s30 = ssub.s32 %s17, %s24
      %s31 = sor.u32 %s29, %s30
      %p32 = scmp.eq.s32.totalorder %s31, 0
      %s34 = sadd.s32 %s33, 1
      %s35 = scalar_select %p32, %s33, %s34
      %p38 = pneg %p32
      %p39 = scmp.eq.s32.totalorder %s9, 1
      %p40 = por %p38, %p39
      %p41 = scmp.ne.s32.totalorder %s33, %s36
      %p42 = scmp.eq.s32.totalorder %s9, 0
      %p43 = por %p41, %p42
      %p44 = scmp.ne.s32.totalorder %s33, %s36
      %p45 = scmp.eq.s32.totalorder %s14, 1
      %p46 = por %p44, %p45
      %p47 = scmp.ne.s32.totalorder %s36, %s37
      %p48 = scmp.eq.s32.totalorder %s14, 0
      %p49 = por %p47, %p48
      %p50 = scmp.ne.s32.totalorder %s36, %s37
      %p51 = scmp.eq.s32.totalorder %s15, 1
      %p52 = por %p50, %p51
      %p54 = scmp.ne.s32.totalorder %s37, %s53
      %p55 = scmp.eq.s32.totalorder %s15, 0
      %p56 = por %p54, %p55
      %s57 = ssub.s32 %s16, %s28
      %p58 = scmp.eq.s32.totalorder %s57, 0
      %s60 = sadd.s32 %s59, 1
      %s61 = scalar_select %p58, %s59, %s60
      %p64 = pneg %p58
      %p65 = scmp.eq.s32.totalorder %s9, 1
      %p66 = por %p64, %p65
      %p67 = scmp.ne.s32.totalorder %s59, %s62
      %p68 = scmp.eq.s32.totalorder %s9, 0
      %p69 = por %p67, %p68
      %p70 = scmp.ne.s32.totalorder %s59, %s62
      %p71 = scmp.eq.s32.totalorder %s14, 1
      %p72 = por %p70, %p71
      %p73 = scmp.ne.s32.totalorder %s62, %s63
      %p74 = scmp.eq.s32.totalorder %s14, 0
      %p75 = por %p73, %p74
      %p76 = scmp.ne.s32.totalorder %s62, %s63
      %p77 = scmp.eq.s32.totalorder %s15, 1
      %p78 = por %p76, %p77
      %p80 = scmp.ne.s32.totalorder %s63, %s79
      %p81 = scmp.eq.s32.totalorder %s15, 0
      %p82 = por %p80, %p81
      %s83 = ssub.s32 %s16, %s28
      %p84 = scmp.eq.s32.totalorder %s83, 0
      %s86 = sadd.s32 %s85, 1
      %s87 = scalar_select %p84, %s85, %s86
      %p90 = pneg %p84
      %p91 = scmp.eq.s32.totalorder %s9, 1
      %p92 = por %p90, %p91
      %p93 = scmp.ne.s32.totalorder %s85, %s88
      %p94 = scmp.eq.s32.totalorder %s9, 0
      %p95 = por %p93, %p94
      %p96 = scmp.ne.s32.totalorder %s85, %s88
      %p97 = scmp.eq.s32.totalorder %s14, 1
      %p98 = por %p96, %p97
      %p99 = scmp.ne.s32.totalorder %s88, %s89
      %p100 = scmp.eq.s32.totalorder %s14, 0
      %p101 = por %p99, %p100
      %p102 = scmp.ne.s32.totalorder %s88, %s89
      %p103 = scmp.eq.s32.totalorder %s15, 1
      %p104 = por %p102, %p103
      %p106 = scmp.ne.s32.totalorder %s89, %s105
      %p107 = scmp.eq.s32.totalorder %s15, 0
      %p108 = por %p106, %p107
      %s109 = ssub.s32 %s16, %s28
      %s110 = ssub.s32 %s17, %s24
      %s111 = sor.u32 %s109, %s110
      %p112 = scmp.eq.s32.totalorder %s111, 0
      %s114 = sadd.s32 %s113, 1
      %s115 = scalar_select %p112, %s113, %s114
      %p118 = pneg %p112
      %p119 = scmp.eq.s32.totalorder %s9, 1
      %p120 = por %p118, %p119
      %p121 = scmp.ne.s32.totalorder %s113, %s116
      %p122 = scmp.eq.s32.totalorder %s9, 0
      %p123 = por %p121, %p122
      %p124 = scmp.ne.s32.totalorder %s113, %s116
      %p125 = scmp.eq.s32.totalorder %s14, 1
      %p126 = por %p124, %p125
      %p127 = scmp.ne.s32.totalorder %s116, %s117
      %p128 = scmp.eq.s32.totalorder %s14, 0
      %p129 = por %p127, %p128
      %p130 = scmp.ne.s32.totalorder %s116, %s117
      %p131 = scmp.eq.s32.totalorder %s15, 1
      %p132 = por %p130, %p131
      %p134 = scmp.ne.s32.totalorder %s117, %s133
      %p135 = scmp.eq.s32.totalorder %s15, 0
      %p136 = por %p134, %p135
      %p137 = scmp.le.s32.totalorder 1, %s9
      %p138 = scmp.lt.s32.totalorder %s9, 3
      %p139 = pnand %p137, %p138
      %p140 = pneg %p139
      // Predicated region
      $region9: #{spatial_self_attention.6} parent=5 // pred_check
        _
      $region10: #{spatial_self_attention.6} parent=5 // pred_check_branch
        %142 = sbr.rel (%p139) target = $region12
      $region11: #{spatial_self_attention.6} parent=5 // pred_region
        %s143 = ssub.s32 %s9, 1
      $region12: #{spatial_self_attention.6} parent=5 // pred_fallthru
        _
      %p144 = scmp.lt.s32.totalorder %s9, 2
      // Predicated region
      $region13: #{spatial_self_attention.6} parent=5 // pred_check
        %p145 = pneg %p144
      $region14: #{spatial_self_attention.6} parent=5 // pred_check_branch
        %147 = sbr.rel (%p145) target = $region16
      $region15: #{spatial_self_attention.6} parent=5 // pred_region
        // Predicated region
        $region17: #{spatial_self_attention.6} parent=15 // pred_check
          %p148 = pneg %p43
        $region18: #{spatial_self_attention.6} parent=15 // pred_check_branch
          %150 = sbr.rel (%p148) target = $region20
        $region19: #{spatial_self_attention.6} parent=15 // pred_region
          %s151 = sand.u32 %s33, 1
          %s152 = sand.u32 %s33, 1
          %s153 = smul.addr %s152, 64
          %s154 = scalar_lea.vmem [#allocation2], %s153
          %s155 = smul.u32 8, %s17
          %s156 = smul.addr %s155, 3
          %s157 = smul.addr %s16, 24
          %s158 = sadd.s32 %s156, %s157
          %s159 = smul.addr %s158, 8
          %s160 = scalar_lea.vmem %s0, %s159
          // Predicated region
          $region21: #{spatial_self_attention.6} parent=19 // pred_check
            _
          $region22: #{spatial_self_attention.6} parent=19 // pred_check_branch
            %162 = sbr.rel (0) target = $region24
          $region23: #{spatial_self_attention.6} parent=19 // pred_region
            // Predicated region
            $region25: #{spatial_self_attention.6} parent=23 // pred_check
              _
            $region26: #{spatial_self_attention.6} parent=23 // pred_check_branch
              %164 = sbr.rel (0) target = $region28
            $region27: #{spatial_self_attention.6} parent=23 // pred_region
              // Predicated region
              $region40: #{spatial_self_attention.6} parent=27 // pred_check
                _
              $region41: #{spatial_self_attention.6} parent=27 // pred_check_branch
                %194 = sbr.rel (0) target = $region43
              $region42: #{spatial_self_attention.6} parent=27 // pred_region
                loop: start=0, step=1, limit=1
                $region44: #{spatial_self_attention.6} parent=42 // loop_pre_header
                  _
                $region45: #{spatial_self_attention.6} parent=42 // loop_header
                  %s196 = sphi 0, %s200
                  %p197 = scmp.ge.s32.totalorder %s196, 1
                  %s201 = sphi %s160, %s160
                  %s202 = sphi %s154, %s154
                $region46: #{spatial_self_attention.6} parent=42 // loop_header_branch
                  %199 = sbr.rel (%p197) target = $region50
                $region47: #{spatial_self_attention.6} parent=42 // loop_body
                  %v203 = vld [vmem:[%s201] sm:$0xff]
                  %204 = vst [vmem:[%s202] sm:$0xff] %v203
                  %v205 = vld [vmem:[%s201 + $0x18] sm:$0xff]
                  %206 = vst [vmem:[%s202 + $0x8] sm:$0xff] %v205
                  %v207 = vld [vmem:[%s201 + $0x30] sm:$0xff]
                  %208 = vst [vmem:[%s202 + $0x10] sm:$0xff] %v207
                  %v209 = vld [vmem:[%s201 + $0x48] sm:$0xff]
                  %210 = vst [vmem:[%s202 + $0x18] sm:$0xff] %v209
                  %v211 = vld [vmem:[%s201 + $0x60] sm:$0xff]
                  %212 = vst [vmem:[%s202 + $0x20] sm:$0xff] %v211
                  %v213 = vld [vmem:[%s201 + $0x78] sm:$0xff]
                  %214 = vst [vmem:[%s202 + $0x28] sm:$0xff] %v213
                  %v215 = vld [vmem:[%s201 + $0x90] sm:$0xff]
                  %216 = vst [vmem:[%s202 + $0x30] sm:$0xff] %v215
                  %v217 = vld [vmem:[%s201 + $0xa8] sm:$0xff]
                  %218 = vst [vmem:[%s202 + $0x38] sm:$0xff] %v217
                $region48: #{spatial_self_attention.6} parent=42 // loop_footer
                  %s200 = sadd.s32 1, %s196
                $region49: #{spatial_self_attention.6} parent=42 // loop_footer_branch
                  %195 = sbr.rel target = $region45
                $region50: #{spatial_self_attention.6} parent=42 // loop_exit
                  _
              $region43: #{spatial_self_attention.6} parent=27 // pred_fallthru
                _
              // Predicated region
              $region51: #{spatial_self_attention.6} parent=27 // pred_check
                _
              $region52: #{spatial_self_attention.6} parent=27 // pred_check_branch
                %220 = sbr.rel target = $region54
              $region53: #{spatial_self_attention.6} parent=27 // pred_region
                _
              $region54: #{spatial_self_attention.6} parent=27 // pred_fallthru
                _
            $region28: #{spatial_self_attention.6} parent=23 // pred_fallthru
              _
            // Predicated region
            $region29: #{spatial_self_attention.6} parent=23 // pred_check
              _
            $region30: #{spatial_self_attention.6} parent=23 // pred_check_branch
              %166 = sbr.rel target = $region32
            $region31: #{spatial_self_attention.6} parent=23 // pred_region
              %s168 = ssub.s32 256, 1
              loop: start=0, step=1, limit=1
              $region33: #{spatial_self_attention.6} parent=31 // loop_pre_header
                _
              $region34: #{spatial_self_attention.6} parent=31 // loop_header
                %s170 = sphi 0, %s174
                %p171 = scmp.ge.s32.totalorder %s170, 1
                %s175 = sphi %s160, %s160
                %s176 = sphi %s154, %s154
              $region35: #{spatial_self_attention.6} parent=31 // loop_header_branch
                %173 = sbr.rel (%p171) target = $region39
              $region36: #{spatial_self_attention.6} parent=31 // loop_body
                %v177 = vld [vmem:[%s175] sm:%s168]
                %178 = vst [vmem:[%s176] sm:%s168] %v177
                %v179 = vld [vmem:[%s175 + $0x18] sm:%s168]
                %180 = vst [vmem:[%s176 + $0x8] sm:%s168] %v179
                %v181 = vld [vmem:[%s175 + $0x30] sm:%s168]
                %182 = vst [vmem:[%s176 + $0x10] sm:%s168] %v181
                %v183 = vld [vmem:[%s175 + $0x48] sm:%s168]
                %184 = vst [vmem:[%s176 + $0x18] sm:%s168] %v183
                %v185 = vld [vmem:[%s175 + $0x60] sm:%s168]
                %186 = vst [vmem:[%s176 + $0x20] sm:%s168] %v185
                %v187 = vld [vmem:[%s175 + $0x78] sm:%s168]
                %188 = vst [vmem:[%s176 + $0x28] sm:%s168] %v187
                %v189 = vld [vmem:[%s175 + $0x90] sm:%s168]
                %190 = vst [vmem:[%s176 + $0x30] sm:%s168] %v189
                %v191 = vld [vmem:[%s175 + $0xa8] sm:%s168]
                %192 = vst [vmem:[%s176 + $0x38] sm:%s168] %v191
              $region37: #{spatial_self_attention.6} parent=31 // loop_footer
                %s174 = sadd.s32 1, %s170
              $region38: #{spatial_self_attention.6} parent=31 // loop_footer_branch
                %169 = sbr.rel target = $region34
              $region39: #{spatial_self_attention.6} parent=31 // loop_exit
                _
            $region32: #{spatial_self_attention.6} parent=23 // pred_fallthru
              _
          $region24: #{spatial_self_attention.6} parent=19 // pred_fallthru
            _
          %221 = vnop
        $region20: #{spatial_self_attention.6} parent=15 // pred_fallthru
          _
        // Predicated region
        $region55: #{spatial_self_attention.6} parent=15 // pred_check
          %p222 = pneg %p69
        $region56: #{spatial_self_attention.6} parent=15 // pred_check_branch
          %224 = sbr.rel (%p222) target = $region58
        $region57: #{spatial_self_attention.6} parent=15 // pred_region
          %s225 = sand.u32 %s59, 1
          %s226 = sand.u32 %s59, 1
          %s227 = smul.addr %s226, 64
          %s228 = scalar_lea.vmem [#allocation3], %s227
          %s229 = smul.addr %s16, 24
          %s230 = sadd.s32 1, %s229
          %s231 = smul.addr %s230, 8
          %s232 = scalar_lea.vmem %s1, %s231
          // Predicated region
          $region59: #{spatial_self_attention.6} parent=57 // pred_check
            _
          $region60: #{spatial_self_attention.6} parent=57 // pred_check_branch
            %234 = sbr.rel (0) target = $region62
          $region61: #{spatial_self_attention.6} parent=57 // pred_region
            // Predicated region
            $region63: #{spatial_self_attention.6} parent=61 // pred_check
              _
            $region64: #{spatial_self_attention.6} parent=61 // pred_check_branch
              %236 = sbr.rel (0) target = $region66
            $region65: #{spatial_self_attention.6} parent=61 // pred_region
              // Predicated region
              $region78: #{spatial_self_attention.6} parent=65 // pred_check
                _
              $region79: #{spatial_self_attention.6} parent=65 // pred_check_branch
                %266 = sbr.rel (0) target = $region81
              $region80: #{spatial_self_attention.6} parent=65 // pred_region
                loop: start=0, step=1, limit=1
                $region82: #{spatial_self_attention.6} parent=80 // loop_pre_header
                  _
                $region83: #{spatial_self_attention.6} parent=80 // loop_header
                  %s268 = sphi 0, %s272
                  %p269 = scmp.ge.s32.totalorder %s268, 1
                  %s273 = sphi %s232, %s232
                  %s274 = sphi %s228, %s228
                $region84: #{spatial_self_attention.6} parent=80 // loop_header_branch
                  %271 = sbr.rel (%p269) target = $region88
                $region85: #{spatial_self_attention.6} parent=80 // loop_body
                  %v275 = vld [vmem:[%s273] sm:$0xff]
                  %276 = vst [vmem:[%s274] sm:$0xff] %v275
                  %v277 = vld [vmem:[%s273 + $0x18] sm:$0xff]
                  %278 = vst [vmem:[%s274 + $0x8] sm:$0xff] %v277
                  %v279 = vld [vmem:[%s273 + $0x30] sm:$0xff]
                  %280 = vst [vmem:[%s274 + $0x10] sm:$0xff] %v279
                  %v281 = vld [vmem:[%s273 + $0x48] sm:$0xff]
                  %282 = vst [vmem:[%s274 + $0x18] sm:$0xff] %v281
                  %v283 = vld [vmem:[%s273 + $0x60] sm:$0xff]
                  %284 = vst [vmem:[%s274 + $0x20] sm:$0xff] %v283
                  %v285 = vld [vmem:[%s273 + $0x78] sm:$0xff]
                  %286 = vst [vmem:[%s274 + $0x28] sm:$0xff] %v285
                  %v287 = vld [vmem:[%s273 + $0x90] sm:$0xff]
                  %288 = vst [vmem:[%s274 + $0x30] sm:$0xff] %v287
                  %v289 = vld [vmem:[%s273 + $0xa8] sm:$0xff]
                  %290 = vst [vmem:[%s274 + $0x38] sm:$0xff] %v289
                $region86: #{spatial_self_attention.6} parent=80 // loop_footer
                  %s272 = sadd.s32 1, %s268
                $region87: #{spatial_self_attention.6} parent=80 // loop_footer_branch
                  %267 = sbr.rel target = $region83
                $region88: #{spatial_self_attention.6} parent=80 // loop_exit
                  _
              $region81: #{spatial_self_attention.6} parent=65 // pred_fallthru
                _
              // Predicated region
              $region89: #{spatial_self_attention.6} parent=65 // pred_check
                _
              $region90: #{spatial_self_attention.6} parent=65 // pred_check_branch
                %292 = sbr.rel target = $region92
              $region91: #{spatial_self_attention.6} parent=65 // pred_region
                _
              $region92: #{spatial_self_attention.6} parent=65 // pred_fallthru
                _
            $region66: #{spatial_self_attention.6} parent=61 // pred_fallthru
              _
            // Predicated region
            $region67: #{spatial_self_attention.6} parent=61 // pred_check
              _
            $region68: #{spatial_self_attention.6} parent=61 // pred_check_branch
              %238 = sbr.rel target = $region70
            $region69: #{spatial_self_attention.6} parent=61 // pred_region
              %s240 = ssub.s32 256, 1
              loop: start=0, step=1, limit=1
              $region71: #{spatial_self_attention.6} parent=69 // loop_pre_header
                _
              $region72: #{spatial_self_attention.6} parent=69 // loop_header
                %s242 = sphi 0, %s246
                %p243 = scmp.ge.s32.totalorder %s242, 1
                %s247 = sphi %s232, %s232
                %s248 = sphi %s228, %s228
              $region73: #{spatial_self_attention.6} parent=69 // loop_header_branch
                %245 = sbr.rel (%p243) target = $region77
              $region74: #{spatial_self_attention.6} parent=69 // loop_body
                %v249 = vld [vmem:[%s247] sm:%s240]
                %250 = vst [vmem:[%s248] sm:%s240] %v249
                %v251 = vld [vmem:[%s247 + $0x18] sm:%s240]
                %252 = vst [vmem:[%s248 + $0x8] sm:%s240] %v251
                %v253 = vld [vmem:[%s247 + $0x30] sm:%s240]
                %254 = vst [vmem:[%s248 + $0x10] sm:%s240] %v253
                %v255 = vld [vmem:[%s247 + $0x48] sm:%s240]
                %256 = vst [vmem:[%s248 + $0x18] sm:%s240] %v255
                %v257 = vld [vmem:[%s247 + $0x60] sm:%s240]
                %258 = vst [vmem:[%s248 + $0x20] sm:%s240] %v257
                %v259 = vld [vmem:[%s247 + $0x78] sm:%s240]
                %260 = vst [vmem:[%s248 + $0x28] sm:%s240] %v259
                %v261 = vld [vmem:[%s247 + $0x90] sm:%s240]
                %262 = vst [vmem:[%s248 + $0x30] sm:%s240] %v261
                %v263 = vld [vmem:[%s247 + $0xa8] sm:%s240]
                %264 = vst [vmem:[%s248 + $0x38] sm:%s240] %v263
              $region75: #{spatial_self_attention.6} parent=69 // loop_footer
                %s246 = sadd.s32 1, %s242
              $region76: #{spatial_self_attention.6} parent=69 // loop_footer_branch
                %241 = sbr.rel target = $region72
              $region77: #{spatial_self_attention.6} parent=69 // loop_exit
                _
            $region70: #{spatial_self_attention.6} parent=61 // pred_fallthru
              _
          $region62: #{spatial_self_attention.6} parent=57 // pred_fallthru
            _
          %293 = vnop
        $region58: #{spatial_self_attention.6} parent=15 // pred_fallthru
          _
        // Predicated region
        $region93: #{spatial_self_attention.6} parent=15 // pred_check
          %p294 = pneg %p95
        $region94: #{spatial_self_attention.6} parent=15 // pred_check_branch
          %296 = sbr.rel (%p294) target = $region96
        $region95: #{spatial_self_attention.6} parent=15 // pred_region
          %s297 = sand.u32 %s85, 1
          %s298 = sand.u32 %s85, 1
          %s299 = smul.addr %s298, 64
          %s300 = scalar_lea.vmem [#allocation4], %s299
          %s301 = smul.addr %s16, 24
          %s302 = sadd.s32 2, %s301
          %s303 = smul.addr %s302, 8
          %s304 = scalar_lea.vmem %s2, %s303
          // Predicated region
          $region97: #{spatial_self_attention.6} parent=95 // pred_check
            _
          $region98: #{spatial_self_attention.6} parent=95 // pred_check_branch
            %306 = sbr.rel (0) target = $region100
          $region99: #{spatial_self_attention.6} parent=95 // pred_region
            // Predicated region
            $region101: #{spatial_self_attention.6} parent=99 // pred_check
              _
            $region102: #{spatial_self_attention.6} parent=99 // pred_check_branch
              %308 = sbr.rel (0) target = $region104
            $region103: #{spatial_self_attention.6} parent=99 // pred_region
              // Predicated region
              $region116: #{spatial_self_attention.6} parent=103 // pred_check
                _
              $region117: #{spatial_self_attention.6} parent=103 // pred_check_branch
                %338 = sbr.rel (0) target = $region119
              $region118: #{spatial_self_attention.6} parent=103 // pred_region
                loop: start=0, step=1, limit=1
                $region120: #{spatial_self_attention.6} parent=118 // loop_pre_header
                  _
                $region121: #{spatial_self_attention.6} parent=118 // loop_header
                  %s340 = sphi 0, %s344
                  %p341 = scmp.ge.s32.totalorder %s340, 1
                  %s345 = sphi %s304, %s304
                  %s346 = sphi %s300, %s300
                $region122: #{spatial_self_attention.6} parent=118 // loop_header_branch
                  %343 = sbr.rel (%p341) target = $region126
                $region123: #{spatial_self_attention.6} parent=118 // loop_body
                  %v347 = vld [vmem:[%s345] sm:$0xff]
                  %348 = vst [vmem:[%s346] sm:$0xff] %v347
                  %v349 = vld [vmem:[%s345 + $0x18] sm:$0xff]
                  %350 = vst [vmem:[%s346 + $0x8] sm:$0xff] %v349
                  %v351 = vld [vmem:[%s345 + $0x30] sm:$0xff]
                  %352 = vst [vmem:[%s346 + $0x10] sm:$0xff] %v351
                  %v353 = vld [vmem:[%s345 + $0x48] sm:$0xff]
                  %354 = vst [vmem:[%s346 + $0x18] sm:$0xff] %v353
                  %v355 = vld [vmem:[%s345 + $0x60] sm:$0xff]
                  %356 = vst [vmem:[%s346 + $0x20] sm:$0xff] %v355
                  %v357 = vld [vmem:[%s345 + $0x78] sm:$0xff]
                  %358 = vst [vmem:[%s346 + $0x28] sm:$0xff] %v357
                  %v359 = vld [vmem:[%s345 + $0x90] sm:$0xff]
                  %360 = vst [vmem:[%s346 + $0x30] sm:$0xff] %v359
                  %v361 = vld [vmem:[%s345 + $0xa8] sm:$0xff]
                  %362 = vst [vmem:[%s346 + $0x38] sm:$0xff] %v361
                $region124: #{spatial_self_attention.6} parent=118 // loop_footer
                  %s344 = sadd.s32 1, %s340
                $region125: #{spatial_self_attention.6} parent=118 // loop_footer_branch
                  %339 = sbr.rel target = $region121
                $region126: #{spatial_self_attention.6} parent=118 // loop_exit
                  _
              $region119: #{spatial_self_attention.6} parent=103 // pred_fallthru
                _
              // Predicated region
              $region127: #{spatial_self_attention.6} parent=103 // pred_check
                _
              $region128: #{spatial_self_attention.6} parent=103 // pred_check_branch
                %364 = sbr.rel target = $region130
              $region129: #{spatial_self_attention.6} parent=103 // pred_region
                _
              $region130: #{spatial_self_attention.6} parent=103 // pred_fallthru
                _
            $region104: #{spatial_self_attention.6} parent=99 // pred_fallthru
              _
            // Predicated region
            $region105: #{spatial_self_attention.6} parent=99 // pred_check
              _
            $region106: #{spatial_self_attention.6} parent=99 // pred_check_branch
              %310 = sbr.rel target = $region108
            $region107: #{spatial_self_attention.6} parent=99 // pred_region
              %s312 = ssub.s32 256, 1
              loop: start=0, step=1, limit=1
              $region109: #{spatial_self_attention.6} parent=107 // loop_pre_header
                _
              $region110: #{spatial_self_attention.6} parent=107 // loop_header
                %s314 = sphi 0, %s318
                %p315 = scmp.ge.s32.totalorder %s314, 1
                %s319 = sphi %s304, %s304
                %s320 = sphi %s300, %s300
              $region111: #{spatial_self_attention.6} parent=107 // loop_header_branch
                %317 = sbr.rel (%p315) target = $region115
              $region112: #{spatial_self_attention.6} parent=107 // loop_body
                %v321 = vld [vmem:[%s319] sm:%s312]
                %322 = vst [vmem:[%s320] sm:%s312] %v321
                %v323 = vld [vmem:[%s319 + $0x18] sm:%s312]
                %324 = vst [vmem:[%s320 + $0x8] sm:%s312] %v323
                %v325 = vld [vmem:[%s319 + $0x30] sm:%s312]
                %326 = vst [vmem:[%s320 + $0x10] sm:%s312] %v325
                %v327 = vld [vmem:[%s319 + $0x48] sm:%s312]
                %328 = vst [vmem:[%s320 + $0x18] sm:%s312] %v327
                %v329 = vld [vmem:[%s319 + $0x60] sm:%s312]
                %330 = vst [vmem:[%s320 + $0x20] sm:%s312] %v329
                %v331 = vld [vmem:[%s319 + $0x78] sm:%s312]
                %332 = vst [vmem:[%s320 + $0x28] sm:%s312] %v331
                %v333 = vld [vmem:[%s319 + $0x90] sm:%s312]
                %334 = vst [vmem:[%s320 + $0x30] sm:%s312] %v333
                %v335 = vld [vmem:[%s319 + $0xa8] sm:%s312]
                %336 = vst [vmem:[%s320 + $0x38] sm:%s312] %v335
              $region113: #{spatial_self_attention.6} parent=107 // loop_footer
                %s318 = sadd.s32 1, %s314
              $region114: #{spatial_self_attention.6} parent=107 // loop_footer_branch
                %313 = sbr.rel target = $region110
              $region115: #{spatial_self_attention.6} parent=107 // loop_exit
                _
            $region108: #{spatial_self_attention.6} parent=99 // pred_fallthru
              _
          $region100: #{spatial_self_attention.6} parent=95 // pred_fallthru
            _
          %365 = vnop
        $region96: #{spatial_self_attention.6} parent=15 // pred_fallthru
          _
      $region16: #{spatial_self_attention.6} parent=5 // pred_fallthru
        _
      %p366 = scmp.le.s32.totalorder 1, %s9
      %p367 = scmp.lt.s32.totalorder %s9, 3
      %p368 = pnand %p366, %p367
      %p369 = pneg %p368
      // Predicated region
      $region131: #{spatial_self_attention.6} parent=5 // pred_check
        _
      $region132: #{spatial_self_attention.6} parent=5 // pred_check_branch
        %371 = sbr.rel (%p368) target = $region134
      $region133: #{spatial_self_attention.6} parent=5 // pred_region
        %s372 = ssub.s32 %s9, 1
        %s373 = sand.u32 %s36, 1
        %s374 = sand.u32 %s36, 1
        %s375 = smul.addr %s374, 64
        %s376 = scalar_lea.vmem [#allocation2], %s375
        // Predicated region
        $region135: #{spatial_self_attention.6} parent=133 // pred_check
          %p377 = pneg %p49
        $region136: #{spatial_self_attention.6} parent=133 // pred_check_branch
          %379 = sbr.rel (%p377) target = $region138
        $region137: #{spatial_self_attention.6} parent=133 // pred_region
          _
        $region138: #{spatial_self_attention.6} parent=133 // pred_fallthru
          _
        %s380 = sand.u32 %s62, 1
        %s381 = sand.u32 %s62, 1
        %s382 = smul.addr %s381, 64
        %s383 = scalar_lea.vmem [#allocation3], %s382
        // Predicated region
        $region139: #{spatial_self_attention.6} parent=133 // pred_check
          %p384 = pneg %p75
        $region140: #{spatial_self_attention.6} parent=133 // pred_check_branch
          %386 = sbr.rel (%p384) target = $region142
        $region141: #{spatial_self_attention.6} parent=133 // pred_region
          _
        $region142: #{spatial_self_attention.6} parent=133 // pred_fallthru
          _
        %s387 = sand.u32 %s88, 1
        %s388 = sand.u32 %s88, 1
        %s389 = smul.addr %s388, 64
        %s390 = scalar_lea.vmem [#allocation4], %s389
        // Predicated region
        $region143: #{spatial_self_attention.6} parent=133 // pred_check
          %p391 = pneg %p101
        $region144: #{spatial_self_attention.6} parent=133 // pred_check_branch
          %393 = sbr.rel (%p391) target = $region146
        $region145: #{spatial_self_attention.6} parent=133 // pred_region
          _
        $region146: #{spatial_self_attention.6} parent=133 // pred_fallthru
          _
        %s394 = sand.u32 %s36, 1
        %s395 = sand.u32 %s36, 1
        %s396 = smul.addr %s395, 64
        %s397 = scalar_lea.vmem [#allocation2], %s396
        %p398 = pneg %p49
        %p399 = pneg %p46
        %s400 = sand.u32 %s62, 1
        %s401 = sand.u32 %s62, 1
        %s402 = smul.addr %s401, 64
        %s403 = scalar_lea.vmem [#allocation3], %s402
        %p404 = pneg %p75
        %p405 = pneg %p72
        %s406 = sand.u32 %s88, 1
        %s407 = sand.u32 %s88, 1
        %s408 = smul.addr %s407, 64
        %s409 = scalar_lea.vmem [#allocation4], %s408
        %p410 = pneg %p101
        %p411 = pneg %p98
        %p412 = pneg %p129
        %p413 = pneg %p126
        %s414 = smul.u32 8, %s19
        %p415 = scmp.lt.s32.totalorder %s18, 1
        %s416 = scalar_select %p415, %s18, 1
        %p417 = scmp.lt.s32.totalorder %s414, 7
        %s418 = scalar_select %p417, %s414, 7
        %s419 = smul.addr %s416, 8
        %s420 = sadd.s32 %s418, %s419
        %s421 = smul.addr %s420, 8
        %s422 = scalar_lea.vmem %s3, %s421
        %s423 = smul.u32 8, %s19
        %s424 = smul.u32 8, %s19
        %p425 = scmp.lt.s32.totalorder %s18, 1
        %s426 = scalar_select %p425, %s18, 1
        %p427 = scmp.lt.s32.totalorder %s424, 7
        %s428 = scalar_select %p427, %s424, 7
        %s429 = smul.addr %s426, 8
        %s430 = sadd.s32 %s428, %s429
        %s431 = smul.addr %s430, 8
        %s432 = scalar_lea.vmem %s3, %s431
        %s433 = smul.u32 8, %s19
        %v434 = vld [vmem:[%s376] sm:$0xff]
        %v435 = vld [vmem:[%s376 + $0x8] sm:$0xff]
        %v436 = vld [vmem:[%s376 + $0x10] sm:$0xff]
        %v437 = vld [vmem:[%s376 + $0x18] sm:$0xff]
        %v438 = vld [vmem:[%s376 + $0x20] sm:$0xff]
        %v439 = vld [vmem:[%s376 + $0x28] sm:$0xff]
        %v440 = vld [vmem:[%s376 + $0x30] sm:$0xff]
        %v441 = vld [vmem:[%s376 + $0x38] sm:$0xff]
        %v442 = vld [vmem:[%s383] sm:$0xff]
        %v443 = vld [vmem:[%s383 + $0x8] sm:$0xff]
        %v444 = vld [vmem:[%s383 + $0x10] sm:$0xff]
        %v445 = vld [vmem:[%s383 + $0x18] sm:$0xff]
        %v446 = vld [vmem:[%s383 + $0x20] sm:$0xff]
        %v447 = vld [vmem:[%s383 + $0x28] sm:$0xff]
        %v448 = vld [vmem:[%s383 + $0x30] sm:$0xff]
        %v449 = vld [vmem:[%s383 + $0x38] sm:$0xff]
        %v450 = vld [vmem:[%s390] sm:$0xff]
        %v451 = vld [vmem:[%s390 + $0x8] sm:$0xff]
        %v452 = vld [vmem:[%s390 + $0x10] sm:$0xff]
        %v453 = vld [vmem:[%s390 + $0x18] sm:$0xff]
        %v454 = vld [vmem:[%s390 + $0x20] sm:$0xff]
        %v455 = vld [vmem:[%s390 + $0x28] sm:$0xff]
        %v456 = vld [vmem:[%s390 + $0x30] sm:$0xff]
        %v457 = vld [vmem:[%s390 + $0x38] sm:$0xff]
        %458 = vmatpush.xpose.msra.mxu0 0.0
        %459 = vmatpush.xpose.msra.mxu0 0.0
        %460 = vmatpush.xpose.msra.mxu0 0.0
        %461 = vmatpush.xpose.msra.mxu0 0.0
        %462 = vmatpush.xpose.msra.mxu0 0.0
        %463 = vmatpush.xpose.msra.mxu0 0.0
        %464 = vmatpush.xpose.msra.mxu0 0.0
        %465 = vmatpush.xpose.msra.mxu0 0.0
        %466 = vmatpush.xpose.msra.mxu0 %v449
        %467 = vmatpush.xpose.msra.mxu0 %v448
        %468 = vmatpush.xpose.msra.mxu0 %v447
        %469 = vmatpush.xpose.msra.mxu0 %v446
        %470 = vmatpush.xpose.msra.mxu0 %v445
        %471 = vmatpush.xpose.msra.mxu0 %v444
        %472 = vmatpush.xpose.msra.mxu0 %v443
        %473 = vmatpush.xpose.msra.mxu0 %v442
        %474 = vmatmul.f32.gmra.mxu0 %v434
        %v475 = vpop.f32.mrf.mxu0
        %v476 = vadd.f32 0.0, %v475
        %477 = vmatmul.f32.gmra.mxu0 %v435
        %v478 = vpop.f32.mrf.mxu0
        %v479 = vadd.f32 0.0, %v478
        %480 = vmatmul.f32.gmra.mxu0 %v436
        %v481 = vpop.f32.mrf.mxu0
        %v482 = vadd.f32 0.0, %v481
        %483 = vmatmul.f32.gmra.mxu0 %v437
        %v484 = vpop.f32.mrf.mxu0
        %v485 = vadd.f32 0.0, %v484
        %486 = vmatmul.f32.gmra.mxu0 %v438
        %v487 = vpop.f32.mrf.mxu0
        %v488 = vadd.f32 0.0, %v487
        %489 = vmatmul.f32.gmra.mxu0 %v439
        %v490 = vpop.f32.mrf.mxu0
        %v491 = vadd.f32 0.0, %v490
        %492 = vmatmul.f32.gmra.mxu0 %v440
        %v493 = vpop.f32.mrf.mxu0
        %v494 = vadd.f32 0.0, %v493
        %495 = vmatmul.f32.gmra.mxu0 %v441
        %v496 = vpop.f32.mrf.mxu0
        %v497 = vadd.f32 0.0, %v496
        %498 = vdwg.mxu0
        %vm499 = vcmask 523264
        %v500 = vsel %vm499, %v476, -inf
        %501 = vmax.xlane.f32.xlu0 %v500
        %v502 = vpop.xlane.xlu0 %501
        %v503 = vsel %vm499, %v479, -inf
        %504 = vmax.xlane.f32.xlu0 %v503
        %v505 = vpop.xlane.xlu0 %504
        %v506 = vsel %vm499, %v482, -inf
        %507 = vmax.xlane.f32.xlu0 %v506
        %v508 = vpop.xlane.xlu0 %507
        %v509 = vsel %vm499, %v485, -inf
        %510 = vmax.xlane.f32.xlu0 %v509
        %v511 = vpop.xlane.xlu0 %510
        %v512 = vsel %vm499, %v488, -inf
        %513 = vmax.xlane.f32.xlu0 %v512
        %v514 = vpop.xlane.xlu0 %513
        %v515 = vsel %vm499, %v491, -inf
        %516 = vmax.xlane.f32.xlu0 %v515
        %v517 = vpop.xlane.xlu0 %516
        %v518 = vsel %vm499, %v494, -inf
        %519 = vmax.xlane.f32.xlu0 %v518
        %v520 = vpop.xlane.xlu0 %519
        %v521 = vsel %vm499, %v497, -inf
        %522 = vmax.xlane.f32.xlu0 %v521
        %v523 = vpop.xlane.xlu0 %522
        %v524 = vsub.f32 %v476, %v502
        %v525 = vsub.f32 %v479, %v505
        %v526 = vsub.f32 %v482, %v508
        %v527 = vsub.f32 %v485, %v511
        %v528 = vsub.f32 %v488, %v514
        %v529 = vsub.f32 %v491, %v517
        %v530 = vsub.f32 %v494, %v520
        %v531 = vsub.f32 %v497, %v523
        %v532 = vmul.f32 %v524, 1.442695
        %v533 = vpow.pop %v532
        %v534 = vmul.f32 %v525, 1.442695
        %v535 = vpow.pop %v534
        %v536 = vmul.f32 %v526, 1.442695
        %v537 = vpow.pop %v536
        %v538 = vmul.f32 %v527, 1.442695
        %v539 = vpow.pop %v538
        %v540 = vmul.f32 %v528, 1.442695
        %v541 = vpow.pop %v540
        %v542 = vmul.f32 %v529, 1.442695
        %v543 = vpow.pop %v542
        %v544 = vmul.f32 %v530, 1.442695
        %v545 = vpow.pop %v544
        %v546 = vmul.f32 %v531, 1.442695
        %v547 = vpow.pop %v546
        %v548 = vsel %vm499, %v533, 0.0
        %549 = vadd.xlane.f32.xlu0 %v548
        %v550 = vpop.xlane.xlu0 %549
        %v551 = vsel %vm499, %v535, 0.0
        %552 = vadd.xlane.f32.xlu0 %v551
        %v553 = vpop.xlane.xlu0 %552
        %v554 = vsel %vm499, %v537, 0.0
        %555 = vadd.xlane.f32.xlu0 %v554
        %v556 = vpop.xlane.xlu0 %555
        %v557 = vsel %vm499, %v539, 0.0
        %558 = vadd.xlane.f32.xlu0 %v557
        %v559 = vpop.xlane.xlu0 %558
        %v560 = vsel %vm499, %v541, 0.0
        %561 = vadd.xlane.f32.xlu0 %v560
        %v562 = vpop.xlane.xlu0 %561
        %v563 = vsel %vm499, %v543, 0.0
        %564 = vadd.xlane.f32.xlu0 %v563
        %v565 = vpop.xlane.xlu0 %564
        %v566 = vsel %vm499, %v545, 0.0
        %567 = vadd.xlane.f32.xlu0 %v566
        %v568 = vpop.xlane.xlu0 %567
        %v569 = vsel %vm499, %v547, 0.0
        %570 = vadd.xlane.f32.xlu0 %v569
        %v571 = vpop.xlane.xlu0 %570
        %v573 = vsel %vm499, %v533, 0
        %v576 = vsel %vm499, %v535, 0
        %v579 = vsel %vm499, %v537, 0
        %v582 = vsel %vm499, %v539, 0
        %v585 = vsel %vm499, %v541, 0
        %v588 = vsel %vm499, %v543, 0
        %v591 = vsel %vm499, %v545, 0
        %v594 = vsel %vm499, %v547, 0
        %596 = vmatpush.msra.mxu0 0.0
        %597 = vmatpush.msra.mxu0 0.0
        %598 = vmatpush.msra.mxu0 0.0
        %599 = vmatpush.msra.mxu0 0.0
        %600 = vmatpush.msra.mxu0 0.0
        %601 = vmatpush.msra.mxu0 0.0
        %602 = vmatpush.msra.mxu0 0.0
        %603 = vmatpush.msra.mxu0 0.0
        %604 = vmatpush.msra.mxu0 %v457
        %605 = vmatpush.msra.mxu0 %v456
        %606 = vmatpush.msra.mxu0 %v455
        %607 = vmatpush.msra.mxu0 %v454
        %608 = vmatpush.msra.mxu0 %v453
        %609 = vmatpush.msra.mxu0 %v452
        %610 = vmatpush.msra.mxu0 %v451
        %611 = vmatpush.msra.mxu0 %v450
        %612 = vmatmul.f32.gmra.mxu0 %v573
        %v613 = vpop.f32.mrf.mxu0
        %v614 = vadd.f32 0.0, %v613
        %615 = vmatmul.f32.gmra.mxu0 %v576
        %v616 = vpop.f32.mrf.mxu0
        %v617 = vadd.f32 0.0, %v616
        %618 = vmatmul.f32.gmra.mxu0 %v579
        %v619 = vpop.f32.mrf.mxu0
        %v620 = vadd.f32 0.0, %v619
        %621 = vmatmul.f32.gmra.mxu0 %v582
        %v622 = vpop.f32.mrf.mxu0
        %v623 = vadd.f32 0.0, %v622
        %624 = vmatmul.f32.gmra.mxu0 %v585
        %v625 = vpop.f32.mrf.mxu0
        %v626 = vadd.f32 0.0, %v625
        %627 = vmatmul.f32.gmra.mxu0 %v588
        %v628 = vpop.f32.mrf.mxu0
        %v629 = vadd.f32 0.0, %v628
        %630 = vmatmul.f32.gmra.mxu0 %v591
        %v631 = vpop.f32.mrf.mxu0
        %v632 = vadd.f32 0.0, %v631
        %633 = vmatmul.f32.gmra.mxu0 %v594
        %v634 = vpop.f32.mrf.mxu0
        %v635 = vadd.f32 0.0, %v634
        %636 = vdwg.mxu0
        %v637 = vrcp.pop %v550
        %v638 = vrcp.pop %v553
        %v639 = vrcp.pop %v556
        %v640 = vrcp.pop %v559
        %v641 = vrcp.pop %v562
        %v642 = vrcp.pop %v565
        %v643 = vrcp.pop %v568
        %v644 = vrcp.pop %v571
        %v645 = vmul.f32 %v614, %v637
        %v646 = vmul.f32 %v617, %v638
        %v647 = vmul.f32 %v620, %v639
        %v648 = vmul.f32 %v623, %v640
        %v649 = vmul.f32 %v626, %v641
        %v650 = vmul.f32 %v629, %v642
        %v651 = vmul.f32 %v632, %v643
        %v652 = vmul.f32 %v635, %v644
        %653 = vst [vmem:[%s432] sm:$0xff] %v645
        %654 = vst [vmem:[%s432 + $0x8] sm:$0xff] %v646
        %655 = vst [vmem:[%s432 + $0x10] sm:$0xff] %v647
        %656 = vst [vmem:[%s432 + $0x18] sm:$0xff] %v648
        %657 = vst [vmem:[%s432 + $0x20] sm:$0xff] %v649
        %658 = vst [vmem:[%s432 + $0x28] sm:$0xff] %v650
        %659 = vst [vmem:[%s432 + $0x30] sm:$0xff] %v651
        %660 = vst [vmem:[%s432 + $0x38] sm:$0xff] %v652
        %s661 = smul.u32 8, %s19
        %p662 = scmp.lt.s32.totalorder %s18, 1
        %s663 = scalar_select %p662, %s18, 1
        %p664 = scmp.lt.s32.totalorder %s661, 7
        %s665 = scalar_select %p664, %s661, 7
        %s666 = smul.addr %s663, 8
        %s667 = sadd.s32 %s665, %s666
        %s668 = smul.addr %s667, 8
        %s669 = scalar_lea.vmem %s3, %s668
        // Predicated region
        $region147: #{spatial_self_attention.6} parent=133 // pred_check
          %p670 = pneg %p126
        $region148: #{spatial_self_attention.6} parent=133 // pred_check_branch
          %672 = sbr.rel (%p670) target = $region150
        $region149: #{spatial_self_attention.6} parent=133 // pred_region
          %s673 = smul.u32 8, %s19
        $region150: #{spatial_self_attention.6} parent=133 // pred_fallthru
          _
      $region134: #{spatial_self_attention.6} parent=5 // pred_fallthru
        _
      %p674 = scmp.le.s32.totalorder 2, %s9
      // Predicated region
      $region151: #{spatial_self_attention.6} parent=5 // pred_check
        %p675 = pneg %p674
      $region152: #{spatial_self_attention.6} parent=5 // pred_check_branch
        %677 = sbr.rel (%p675) target = $region154
      $region153: #{spatial_self_attention.6} parent=5 // pred_region
        %s678 = ssub.s32 %s9, 2
        // Predicated region
        $region155: #{spatial_self_attention.6} parent=153 // pred_check
          %p679 = pneg %p132
        $region156: #{spatial_self_attention.6} parent=153 // pred_check_branch
          %681 = sbr.rel (%p679) target = $region158
        $region157: #{spatial_self_attention.6} parent=153 // pred_region
          %s682 = smul.u32 8, %s21
          %p683 = scmp.lt.s32.totalorder %s20, 1
          %s684 = scalar_select %p683, %s20, 1
          %p685 = scmp.lt.s32.totalorder %s682, 7
          %s686 = scalar_select %p685, %s682, 7
          %s687 = smul.addr %s684, 8
          %s688 = sadd.s32 %s686, %s687
          %s689 = smul.addr %s688, 8
          %s690 = scalar_lea.vmem %s3, %s689
        $region158: #{spatial_self_attention.6} parent=153 // pred_fallthru
          _
      $region154: #{spatial_self_attention.6} parent=5 // pred_fallthru
        _
    $region6: #{spatial_self_attention.6} parent=1 // loop_footer
      %s13 = sadd.s32 1, %s9
    $region7: #{spatial_self_attention.6} parent=1 // loop_footer_branch
      %8 = sbr.rel target = $region3
    $region8: #{spatial_self_attention.6} parent=1 // loop_exit
      _

// kernel: spatial_self_attention.7
$region0: #{spatial_self_attention.7}
  #allocation0 [shape = 'u32[]', space=smem, size = 0x4, offset = 0x4, fixed_abs, tag = 'smem constant byte address 0x4 - core index']
  #allocation1 [shape = 'u32[72,128]{1,0:T(1,128)}', space=vmem, size = 0x9000, scoped, tag = 'internal scratch']
  %s0 = inlined_call_operand.vmem [shape: f32[2,64,128], index: 0, kind: input, shape index: {}]
  %s1 = inlined_call_operand.vmem [shape: f32[128,128], index: 1, kind: input, shape index: {}]
  %s2 = inlined_call_operand.vmem [shape: f32[1,128], index: 2, kind: input, shape index: {}]
  %s3 = inlined_call_operand.vmem [shape: f32[2,128,64], index: 3, kind: input, shape index: {}]
  %s4 = inlined_call_operand.vmem [shape: f32[2,128,64], index: 4, kind: output, shape index: {}]
  %s5 = sld [smem:[#allocation0]]
  $region49: #{spatial_self_attention.7} parent=0
    _
  %s7 = ssub.s32 1, %s5
  %s8 = scalar_select 0, %s7, %s5
  loop: start=0, step=1, limit=4
  $region2: #{spatial_self_attention.7} parent=0 // loop_pre_header
    _
  $region3: #{spatial_self_attention.7} parent=0 // loop_header
    %s10 = sphi 0, %s14
    %p11 = scmp.ge.s32.totalorder %s10, 4
    %s17 = sphi 0, %s29
    %s18 = sphi 0, %s25
    %s19 = sphi 0, %s17
    %s20 = sphi 0, %s18
    %s21 = sphi 0, %s19
    %s22 = sphi 0, %s20
    %s34 = sphi 0, %s36
    %s37 = sphi 0, %s34
    %s38 = sphi 0, %s37
    %s54 = sphi 0, %s38
    %s58 = sphi 0, %s58
    %s60 = sphi 0, %s58
    %s61 = sphi 0, %s60
    %s75 = sphi 0, %s61
    %s79 = sphi 0, %s79
    %s81 = sphi 0, %s79
    %s82 = sphi 0, %s81
    %s96 = sphi 0, %s82
    %s104 = sphi 0, %s106
    %s107 = sphi 0, %s104
    %s108 = sphi 0, %s107
    %s124 = sphi 0, %s108
    %s132 = sphi 0, %s134
    %s135 = sphi 0, %s132
    %s136 = sphi 0, %s135
    %s152 = sphi 0, %s136
  $region4: #{spatial_self_attention.7} parent=0 // loop_header_branch
    %13 = sbr.rel (%p11) target = $region8
  $region5: #{spatial_self_attention.7} parent=0 // loop_body
    %s15 = ssub.s32 %s10, 1
    %s16 = ssub.s32 %s10, 2
    %s23 = sadd.s32 1, %s18
    %p24 = scmp.ge.s32.totalorder %s23, 1
    %s25 = scalar_select %p24, 0, %s23
    %s26 = sadd.s32 1, %s17
    %s27 = scalar_select %p24, %s26, %s17
    %p28 = scmp.ge.s32.totalorder %s27, 2
    %s29 = scalar_select %p28, 0, %s27
    %s30 = ssub.s32 %s17, %s29
    %s31 = ssub.s32 %s18, %s25
    %s32 = sor.u32 %s30, %s31
    %p33 = scmp.eq.s32.totalorder %s32, 0
    %s35 = sadd.s32 %s34, 1
    %s36 = scalar_select %p33, %s34, %s35
    %p39 = pneg %p33
    %p40 = scmp.eq.s32.totalorder %s10, 1
    %p41 = por %p39, %p40
    %p42 = scmp.ne.s32.totalorder %s34, %s37
    %p43 = scmp.eq.s32.totalorder %s10, 0
    %p44 = por %p42, %p43
    %p45 = scmp.ne.s32.totalorder %s34, %s37
    %p46 = scmp.eq.s32.totalorder %s15, 1
    %p47 = por %p45, %p46
    %p48 = scmp.ne.s32.totalorder %s37, %s38
    %p49 = scmp.eq.s32.totalorder %s15, 0
    %p50 = por %p48, %p49
    %p51 = scmp.ne.s32.totalorder %s37, %s38
    %p52 = scmp.eq.s32.totalorder %s16, 1
    %p53 = por %p51, %p52
    %p55 = scmp.ne.s32.totalorder %s38, %s54
    %p56 = scmp.eq.s32.totalorder %s16, 0
    %p57 = por %p55, %p56
    %s59 = sadd.s32 %s58, 1
    %p62 = scmp.eq.s32.totalorder %s10, 1
    %p63 = scmp.ne.s32.totalorder %s58, %s60
    %p64 = scmp.eq.s32.totalorder %s10, 0
    %p65 = por %p63, %p64
    %p66 = scmp.ne.s32.totalorder %s58, %s60
    %p67 = scmp.eq.s32.totalorder %s15, 1
    %p68 = por %p66, %p67
    %p69 = scmp.ne.s32.totalorder %s60, %s61
    %p70 = scmp.eq.s32.totalorder %s15, 0
    %p71 = por %p69, %p70
    %p72 = scmp.ne.s32.totalorder %s60, %s61
    %p73 = scmp.eq.s32.totalorder %s16, 1
    %p74 = por %p72, %p73
    %p76 = scmp.ne.s32.totalorder %s61, %s75
    %p77 = scmp.eq.s32.totalorder %s16, 0
    %p78 = por %p76, %p77
    %s80 = sadd.s32 %s79, 1
    %p83 = scmp.eq.s32.totalorder %s10, 1
    %p84 = scmp.ne.s32.totalorder %s79, %s81
    %p85 = scmp.eq.s32.totalorder %s10, 0
    %p86 = por %p84, %p85
    %p87 = scmp.ne.s32.totalorder %s79, %s81
    %p88 = scmp.eq.s32.totalorder %s15, 1
    %p89 = por %p87, %p88
    %p90 = scmp.ne.s32.totalorder %s81, %s82
    %p91 = scmp.eq.s32.totalorder %s15, 0
    %p92 = por %p90, %p91
    %p93 = scmp.ne.s32.totalorder %s81, %s82
    %p94 = scmp.eq.s32.totalorder %s16, 1
    %p95 = por %p93, %p94
    %p97 = scmp.ne.s32.totalorder %s82, %s96
    %p98 = scmp.eq.s32.totalorder %s16, 0
    %p99 = por %p97, %p98
    %s100 = ssub.s32 %s17, %s29
    %s101 = ssub.s32 %s18, %s25
    %s102 = sor.u32 %s100, %s101
    %p103 = scmp.eq.s32.totalorder %s102, 0
    %s105 = sadd.s32 %s104, 1
    %s106 = scalar_select %p103, %s104, %s105
    %p109 = pneg %p103
    %p110 = scmp.eq.s32.totalorder %s10, 1
    %p111 = por %p109, %p110
    %p112 = scmp.ne.s32.totalorder %s104, %s107
    %p113 = scmp.eq.s32.totalorder %s10, 0
    %p114 = por %p112, %p113
    %p115 = scmp.ne.s32.totalorder %s104, %s107
    %p116 = scmp.eq.s32.totalorder %s15, 1
    %p117 = por %p115, %p116
    %p118 = scmp.ne.s32.totalorder %s107, %s108
    %p119 = scmp.eq.s32.totalorder %s15, 0
    %p120 = por %p118, %p119
    %p121 = scmp.ne.s32.totalorder %s107, %s108
    %p122 = scmp.eq.s32.totalorder %s16, 1
    %p123 = por %p121, %p122
    %p125 = scmp.ne.s32.totalorder %s108, %s124
    %p126 = scmp.eq.s32.totalorder %s16, 0
    %p127 = por %p125, %p126
    %s128 = ssub.s32 %s17, %s29
    %s129 = ssub.s32 %s18, %s25
    %s130 = sor.u32 %s128, %s129
    %p131 = scmp.eq.s32.totalorder %s130, 0
    %s133 = sadd.s32 %s132, 1
    %s134 = scalar_select %p131, %s132, %s133
    %p137 = pneg %p131
    %p138 = scmp.eq.s32.totalorder %s10, 1
    %p139 = por %p137, %p138
    %p140 = scmp.ne.s32.totalorder %s132, %s135
    %p141 = scmp.eq.s32.totalorder %s10, 0
    %p142 = por %p140, %p141
    %p143 = scmp.ne.s32.totalorder %s132, %s135
    %p144 = scmp.eq.s32.totalorder %s15, 1
    %p145 = por %p143, %p144
    %p146 = scmp.ne.s32.totalorder %s135, %s136
    %p147 = scmp.eq.s32.totalorder %s15, 0
    %p148 = por %p146, %p147
    %p149 = scmp.ne.s32.totalorder %s135, %s136
    %p150 = scmp.eq.s32.totalorder %s16, 1
    %p151 = por %p149, %p150
    %p153 = scmp.ne.s32.totalorder %s136, %s152
    %p154 = scmp.eq.s32.totalorder %s16, 0
    %p155 = por %p153, %p154
    %p156 = scmp.le.s32.totalorder 1, %s10
    %p157 = scmp.lt.s32.totalorder %s10, 3
    %p158 = pnand %p156, %p157
    %p159 = pneg %p158
    // Predicated region
    $region9: #{spatial_self_attention.7} parent=5 // pred_check
      _
    $region10: #{spatial_self_attention.7} parent=5 // pred_check_branch
      %161 = sbr.rel (%p158) target = $region12
    $region11: #{spatial_self_attention.7} parent=5 // pred_region
      %s162 = ssub.s32 %s10, 1
      // Predicated region
      $region13: #{spatial_self_attention.7} parent=11 // pred_check
        %p163 = pneg %p71
      $region14: #{spatial_self_attention.7} parent=11 // pred_check_branch
        %165 = sbr.rel (%p163) target = $region16
      $region15: #{spatial_self_attention.7} parent=11 // pred_region
        _
      $region16: #{spatial_self_attention.7} parent=11 // pred_fallthru
        _
      // Predicated region
      $region17: #{spatial_self_attention.7} parent=11 // pred_check
        %p166 = pneg %p92
      $region18: #{spatial_self_attention.7} parent=11 // pred_check_branch
        %168 = sbr.rel (%p166) target = $region20
      $region19: #{spatial_self_attention.7} parent=11 // pred_region
        _
      $region20: #{spatial_self_attention.7} parent=11 // pred_fallthru
        _
    $region12: #{spatial_self_attention.7} parent=5 // pred_fallthru
      _
    %p169 = scmp.lt.s32.totalorder %s10, 2
    // Predicated region
    $region21: #{spatial_self_attention.7} parent=5 // pred_check
      %p170 = pneg %p169
    $region22: #{spatial_self_attention.7} parent=5 // pred_check_branch
      %172 = sbr.rel (%p170) target = $region24
    $region23: #{spatial_self_attention.7} parent=5 // pred_region
      // Predicated region
      $region25: #{spatial_self_attention.7} parent=23 // pred_check
        %p173 = pneg %p44
      $region26: #{spatial_self_attention.7} parent=23 // pred_check_branch
        %175 = sbr.rel (%p173) target = $region28
      $region27: #{spatial_self_attention.7} parent=23 // pred_region
        %s176 = smul.u32 8, %s18
        %p177 = scmp.lt.s32.totalorder %s17, 1
        %s178 = scalar_select %p177, %s17, 1
        %p179 = scmp.lt.s32.totalorder %s176, 7
        %s180 = scalar_select %p179, %s176, 7
        %s181 = smul.addr %s178, 8
        %s182 = sadd.s32 %s180, %s181
        %s183 = smul.addr %s182, 8
        %s184 = scalar_lea.vmem %s0, %s183
        %s185 = smul.u32 8, %s18
      $region28: #{spatial_self_attention.7} parent=23 // pred_fallthru
        _
      // Predicated region
      $region29: #{spatial_self_attention.7} parent=23 // pred_check
        %p186 = pneg %p114
      $region30: #{spatial_self_attention.7} parent=23 // pred_check_branch
        %188 = sbr.rel (%p186) target = $region32
      $region31: #{spatial_self_attention.7} parent=23 // pred_region
        %p189 = scmp.lt.s32.totalorder %s17, 1
        %s190 = scalar_select %p189, %s17, 1
        %p191 = scmp.lt.s32.totalorder %s18, 0
        %s192 = scalar_select %p191, %s18, 0
        %s193 = smul.addr %s190, 16
        %s194 = sadd.s32 %s192, %s193
        %s195 = smul.addr %s194, 8
        %s196 = scalar_lea.vmem %s3, %s195
      $region32: #{spatial_self_attention.7} parent=23 // pred_fallthru
        _
    $region24: #{spatial_self_attention.7} parent=5 // pred_fallthru
      _
    %p197 = scmp.le.s32.totalorder 1, %s10
    %p198 = scmp.lt.s32.totalorder %s10, 3
    %p199 = pnand %p197, %p198
    %p200 = pneg %p199
    // Predicated region
    $region33: #{spatial_self_attention.7} parent=5 // pred_check
      _
    $region34: #{spatial_self_attention.7} parent=5 // pred_check_branch
      %202 = sbr.rel (%p199) target = $region36
    $region35: #{spatial_self_attention.7} parent=5 // pred_region
      %s203 = ssub.s32 %s10, 1
      %s204 = smul.u32 8, %s20
      %p205 = scmp.lt.s32.totalorder %s19, 1
      %s206 = scalar_select %p205, %s19, 1
      %p207 = scmp.lt.s32.totalorder %s204, 7
      %s208 = scalar_select %p207, %s204, 7
      %s209 = smul.addr %s206, 8
      %s210 = sadd.s32 %s208, %s209
      %s211 = smul.addr %s210, 8
      %s212 = scalar_lea.vmem %s0, %s211
      %p213 = pneg %p50
      %p214 = pneg %p47
      %p215 = pneg %p71
      %p216 = pneg %p68
      %p217 = pneg %p92
      %p218 = pneg %p89
      %p219 = scmp.lt.s32.totalorder %s19, 1
      %s220 = scalar_select %p219, %s19, 1
      %p221 = scmp.lt.s32.totalorder %s20, 0
      %s222 = scalar_select %p221, %s20, 0
      %s223 = smul.addr %s220, 16
      %s224 = sadd.s32 %s222, %s223
      %s225 = smul.addr %s224, 8
      %s226 = scalar_lea.vmem %s3, %s225
      %p227 = pneg %p120
      %p228 = pneg %p117
      %p229 = pneg %p148
      %p230 = pneg %p145
      %p231 = scmp.lt.s32.totalorder %s19, 1
      %s232 = scalar_select %p231, %s19, 1
      %p233 = scmp.lt.s32.totalorder %s20, 0
      %s234 = scalar_select %p233, %s20, 0
      %s235 = smul.addr %s232, 16
      %s236 = sadd.s32 %s234, %s235
      %s237 = smul.addr %s236, 8
      %s238 = scalar_lea.vmem %s4, %s237
      %s239 = smul.u32 8, %s20
      %p240 = scmp.lt.s32.totalorder %s19, 1
      %s241 = scalar_select %p240, %s19, 1
      %p242 = scmp.lt.s32.totalorder %s239, 7
      %s243 = scalar_select %p242, %s239, 7
      %s244 = smul.addr %s241, 8
      %s245 = sadd.s32 %s243, %s244
      %s246 = smul.addr %s245, 8
      %s247 = scalar_lea.vmem %s0, %s246
      %s248 = smul.u32 8, %s20
      %p249 = scmp.lt.s32.totalorder %s19, 1
      %s250 = scalar_select %p249, %s19, 1
      %p251 = scmp.lt.s32.totalorder %s20, 0
      %s252 = scalar_select %p251, %s20, 0
      %s253 = smul.addr %s250, 16
      %s254 = sadd.s32 %s252, %s253
      %s255 = smul.addr %s254, 8
      %s256 = scalar_lea.vmem %s3, %s255
      %p257 = scmp.lt.s32.totalorder %s19, 1
      %s258 = scalar_select %p257, %s19, 1
      %p259 = scmp.lt.s32.totalorder %s20, 0
      %s260 = scalar_select %p259, %s20, 0
      %s261 = smul.addr %s258, 16
      %s262 = sadd.s32 %s260, %s261
      %s263 = smul.addr %s262, 8
      %s264 = scalar_lea.vmem %s4, %s263
      %v265 = vld [vmem:[%s247] sm:$0xff]
      %v266 = vld [vmem:[%s247 + $0x8] sm:$0xff]
      %v267 = vld [vmem:[%s247 + $0x10] sm:$0xff]
      %v268 = vld [vmem:[%s247 + $0x18] sm:$0xff]
      %v269 = vld [vmem:[%s247 + $0x20] sm:$0xff]
      %v270 = vld [vmem:[%s247 + $0x28] sm:$0xff]
      %v271 = vld [vmem:[%s247 + $0x30] sm:$0xff]
      %v272 = vld [vmem:[%s247 + $0x38] sm:$0xff]
      %v273 = vld [vmem:[%s1] sm:$0xff]
      %v274 = vld [vmem:[%s1 + $0x8] sm:$0xff]
      %v275 = vld [vmem:[%s1 + $0x10] sm:$0xff]
      %v276 = vld [vmem:[%s1 + $0x18] sm:$0xff]
      %v277 = vld [vmem:[%s1 + $0x20] sm:$0xff]
      %v278 = vld [vmem:[%s1 + $0x28] sm:$0xff]
      %v279 = vld [vmem:[%s1 + $0x30] sm:$0xff]
      %v280 = vld [vmem:[%s1 + $0x38] sm:$0xff]
      %v281 = vld [vmem:[%s1 + $0x40] sm:$0xff]
      %v282 = vld [vmem:[%s1 + $0x48] sm:$0xff]
      %v283 = vld [vmem:[%s1 + $0x50] sm:$0xff]
      %v284 = vld [vmem:[%s1 + $0x58] sm:$0xff]
      %v285 = vld [vmem:[%s1 + $0x60] sm:$0xff]
      %v286 = vld [vmem:[%s1 + $0x68] sm:$0xff]
      %v287 = vld [vmem:[%s1 + $0x70] sm:$0xff]
      %v288 = vld [vmem:[%s1 + $0x78] sm:$0xff]
      %v289 = vld [vmem:[%s2] sm:$0x1]
      %v291 = vperm.slane %v289, 0
      %293 = vmatpush.msra.mxu0 %v288
      %294 = vmatpush.msra.mxu0 %v287
      %295 = vmatpush.msra.mxu0 %v286
      %296 = vmatpush.msra.mxu0 %v285
      %297 = vmatpush.msra.mxu0 %v284
      %298 = vmatpush.msra.mxu0 %v283
      %299 = vmatpush.msra.mxu0 %v282
      %300 = vmatpush.msra.mxu0 %v281
      %301 = vmatpush.msra.mxu0 %v280
      %302 = vmatpush.msra.mxu0 %v279
      %303 = vmatpush.msra.mxu0 %v278
      %304 = vmatpush.msra.mxu0 %v277
      %305 = vmatpush.msra.mxu0 %v276
      %306 = vmatpush.msra.mxu0 %v275
      %307 = vmatpush.msra.mxu0 %v274
      %308 = vmatpush.msra.mxu0 %v273
      %309 = vmatmul.f32.gmra.mxu0 %v265
      %v310 = vpop.f32.mrf.mxu0
      %v311 = vadd.f32 %v291, %v310
      %312 = vmatmul.f32.gmra.mxu0 %v266
      %v313 = vpop.f32.mrf.mxu0
      %v314 = vadd.f32 %v291, %v313
      %315 = vmatmul.f32.gmra.mxu0 %v267
      %v316 = vpop.f32.mrf.mxu0
      %v317 = vadd.f32 %v291, %v316
      %318 = vmatmul.f32.gmra.mxu0 %v268
      %v319 = vpop.f32.mrf.mxu0
      %v320 = vadd.f32 %v291, %v319
      %321 = vmatmul.f32.gmra.mxu0 %v269
      %v322 = vpop.f32.mrf.mxu0
      %v323 = vadd.f32 %v291, %v322
      %324 = vmatmul.f32.gmra.mxu0 %v270
      %v325 = vpop.f32.mrf.mxu0
      %v326 = vadd.f32 %v291, %v325
      %327 = vmatmul.f32.gmra.mxu0 %v271
      %v328 = vpop.f32.mrf.mxu0
      %v329 = vadd.f32 %v291, %v328
      %330 = vmatmul.f32.gmra.mxu0 %v272
      %v331 = vpop.f32.mrf.mxu0
      %v332 = vadd.f32 %v291, %v331
      %333 = vdwg.mxu0
      %334 = vxpose.xlu0.b32.start [1/16] %v311, 128
      %335 = vxpose.xlu0.b32.cont [2/16] %v314, 128
      %336 = vxpose.xlu0.b32.cont [3/16] %v317, 128
      %337 = vxpose.xlu0.b32.cont [4/16] %v320, 128
      %338 = vxpose.xlu0.b32.cont [5/16] %v323, 128
      %339 = vxpose.xlu0.b32.cont [6/16] %v326, 128
      %340 = vxpose.xlu0.b32.cont [7/16] %v329, 128
      %341 = vxpose.xlu0.b32.cont [8/16] %v332, 128
      %342 = vxpose.xlu0.b32.cont [9/16] 0.0, 128
      %343 = vxpose.xlu0.b32.cont [10/16] 0.0, 128
      %344 = vxpose.xlu0.b32.cont [11/16] 0.0, 128
      %345 = vxpose.xlu0.b32.cont [12/16] 0.0, 128
      %346 = vxpose.xlu0.b32.cont [13/16] 0.0, 128
      %347 = vxpose.xlu0.b32.cont [14/16] 0.0, 128
      %348 = vxpose.xlu0.b32.cont [15/16] 0.0, 128
      %349 = vxpose.xlu0.b32.end [16/16] 0.0, 128
      %v350 = vpop.trf.xlu0
      %v351 = vpop.trf.xlu0
      %v352 = vpop.trf.xlu0
      %v353 = vpop.trf.xlu0
      %v354 = vpop.trf.xlu0
      %v355 = vpop.trf.xlu0
      %v356 = vpop.trf.xlu0
      %v357 = vpop.trf.xlu0
      %v358 = vpop.trf.xlu0
      %v359 = vpop.trf.xlu0
      %v360 = vpop.trf.xlu0
      %v361 = vpop.trf.xlu0
      %v362 = vpop.trf.xlu0
      %v363 = vpop.trf.xlu0
      %v364 = vpop.trf.xlu0
      %v365 = vpop.trf.xlu0
      %v366 = vld [vmem:[%s256] sm:$0xff]
      %v367 = vld [vmem:[%s256 + $0x8] sm:$0xff]
      %v368 = vld [vmem:[%s256 + $0x10] sm:$0xff]
      %v369 = vld [vmem:[%s256 + $0x18] sm:$0xff]
      %v370 = vld [vmem:[%s256 + $0x20] sm:$0xff]
      %v371 = vld [vmem:[%s256 + $0x28] sm:$0xff]
      %v372 = vld [vmem:[%s256 + $0x30] sm:$0xff]
      %v373 = vld [vmem:[%s256 + $0x38] sm:$0xff]
      %v374 = vld [vmem:[%s256 + $0x40] sm:$0xff]
      %v375 = vld [vmem:[%s256 + $0x48] sm:$0xff]
      %v376 = vld [vmem:[%s256 + $0x50] sm:$0xff]
      %v377 = vld [vmem:[%s256 + $0x58] sm:$0xff]
      %v378 = vld [vmem:[%s256 + $0x60] sm:$0xff]
      %v379 = vld [vmem:[%s256 + $0x68] sm:$0xff]
      %v380 = vld [vmem:[%s256 + $0x70] sm:$0xff]
      %v381 = vld [vmem:[%s256 + $0x78] sm:$0xff]
      %v382 = vadd.f32 %v350, %v366
      %v383 = vadd.f32 %v351, %v367
      %v384 = vadd.f32 %v352, %v368
      %v385 = vadd.f32 %v353, %v369
      %v386 = vadd.f32 %v354, %v370
      %v387 = vadd.f32 %v355, %v371
      %v388 = vadd.f32 %v356, %v372
      %v389 = vadd.f32 %v357, %v373
      %v390 = vadd.f32 %v358, %v374
      %v391 = vadd.f32 %v359, %v375
      %v392 = vadd.f32 %v360, %v376
      %v393 = vadd.f32 %v361, %v377
      %v394 = vadd.f32 %v362, %v378
      %v395 = vadd.f32 %v363, %v379
      %v396 = vadd.f32 %v364, %v380
      %v397 = vadd.f32 %v365, %v381
      %vm398 = vcmask 523264
      %399 = vst.msk [vmem:[%s264] sm:$0xff] %vm398, %v382
      %400 = vst.msk [vmem:[%s264 + $0x8] sm:$0xff] %vm398, %v383
      %401 = vst.msk [vmem:[%s264 + $0x10] sm:$0xff] %vm398, %v384
      %402 = vst.msk [vmem:[%s264 + $0x18] sm:$0xff] %vm398, %v385
      %403 = vst.msk [vmem:[%s264 + $0x20] sm:$0xff] %vm398, %v386
      %404 = vst.msk [vmem:[%s264 + $0x28] sm:$0xff] %vm398, %v387
      %405 = vst.msk [vmem:[%s264 + $0x30] sm:$0xff] %vm398, %v388
      %406 = vst.msk [vmem:[%s264 + $0x38] sm:$0xff] %vm398, %v389
      %407 = vst.msk [vmem:[%s264 + $0x40] sm:$0xff] %vm398, %v390
      %408 = vst.msk [vmem:[%s264 + $0x48] sm:$0xff] %vm398, %v391
      %409 = vst.msk [vmem:[%s264 + $0x50] sm:$0xff] %vm398, %v392
      %410 = vst.msk [vmem:[%s264 + $0x58] sm:$0xff] %vm398, %v393
      %411 = vst.msk [vmem:[%s264 + $0x60] sm:$0xff] %vm398, %v394
      %412 = vst.msk [vmem:[%s264 + $0x68] sm:$0xff] %vm398, %v395
      %413 = vst.msk [vmem:[%s264 + $0x70] sm:$0xff] %vm398, %v396
      %414 = vst.msk [vmem:[%s264 + $0x78] sm:$0xff] %vm398, %v397
      %p415 = scmp.lt.s32.totalorder %s19, 1
      %s416 = scalar_select %p415, %s19, 1
      %p417 = scmp.lt.s32.totalorder %s20, 0
      %s418 = scalar_select %p417, %s20, 0
      %s419 = smul.addr %s416, 16
      %s420 = sadd.s32 %s418, %s419
      %s421 = smul.addr %s420, 8
      %s422 = scalar_lea.vmem %s4, %s421
      // Predicated region
      $region37: #{spatial_self_attention.7} parent=35 // pred_check
        %p423 = pneg %p145
      $region38: #{spatial_self_attention.7} parent=35 // pred_check_branch
        %425 = sbr.rel (%p423) target = $region40
      $region39: #{spatial_self_attention.7} parent=35 // pred_region
        _
      $region40: #{spatial_self_attention.7} parent=35 // pred_fallthru
        _
    $region36: #{spatial_self_attention.7} parent=5 // pred_fallthru
      _
    %p426 = scmp.le.s32.totalorder 2, %s10
    // Predicated region
    $region41: #{spatial_self_attention.7} parent=5 // pred_check
      %p427 = pneg %p426
    $region42: #{spatial_self_attention.7} parent=5 // pred_check_branch
      %429 = sbr.rel (%p427) target = $region44
    $region43: #{spatial_self_attention.7} parent=5 // pred_region
      %s430 = ssub.s32 %s10, 2
      // Predicated region
      $region45: #{spatial_self_attention.7} parent=43 // pred_check
        %p431 = pneg %p151
      $region46: #{spatial_self_attention.7} parent=43 // pred_check_branch
        %433 = sbr.rel (%p431) target = $region48
      $region47: #{spatial_self_attention.7} parent=43 // pred_region
        %p434 = scmp.lt.s32.totalorder %s21, 1
        %s435 = scalar_select %p434, %s21, 1
        %p436 = scmp.lt.s32.totalorder %s22, 0
        %s437 = scalar_select %p436, %s22, 0
        %s438 = smul.addr %s435, 16
        %s439 = sadd.s32 %s437, %s438
        %s440 = smul.addr %s439, 8
        %s441 = scalar_lea.vmem %s4, %s440
      $region48: #{spatial_self_attention.7} parent=43 // pred_fallthru
        _
    $region44: #{spatial_self_attention.7} parent=5 // pred_fallthru
      _
  $region6: #{spatial_self_attention.7} parent=0 // loop_footer
    %s14 = sadd.s32 1, %s10
  $region7: #{spatial_self_attention.7} parent=0 // loop_footer_branch
    %9 = sbr.rel target = $region3
  $region8: #{spatial_self_attention.7} parent=0 // loop_exit
    _

// kernel: spatial_self_attention.5
$region0: #{spatial_self_attention.5}
  #allocation0 [shape = 'u32[]', space=smem, size = 0x4, offset = 0x4, fixed_abs, tag = 'smem constant byte address 0x4 - core index']
  #allocation1 [shape = 'u32[72,128]{1,0:T(1,128)}', space=vmem, size = 0x9000, scoped, tag = 'internal scratch']
  %s0 = inlined_call_operand.vmem [shape: f32[2,128,64], index: 0, kind: input, shape index: {}]
  %s1 = inlined_call_operand.vmem [shape: f32[2,128,1], index: 1, kind: input, shape index: {}]
  %s2 = inlined_call_operand.vmem [shape: f32[2,128,1], index: 2, kind: input, shape index: {}]
  %s3 = inlined_call_operand.vmem [shape: f32[128,384], index: 3, kind: input, shape index: {}]
  %s4 = inlined_call_operand.vmem [shape: f32[1,384], index: 4, kind: input, shape index: {}]
  %s5 = inlined_call_operand.vmem [shape: f32[2,64,384], index: 5, kind: output, shape index: {}]
  %s6 = sld [smem:[#allocation0]]
  $region53: #{spatial_self_attention.5} parent=0
    _
  %s8 = ssub.s32 1, %s6
  %s9 = scalar_select 0, %s8, %s6
  loop: start=0, step=1, limit=4
  $region2: #{spatial_self_attention.5} parent=0 // loop_pre_header
    _
  $region3: #{spatial_self_attention.5} parent=0 // loop_header
    %s11 = sphi 0, %s15
    %p12 = scmp.ge.s32.totalorder %s11, 4
    %s18 = sphi 0, %s30
    %s19 = sphi 0, %s26
    %s20 = sphi 0, %s18
    %s21 = sphi 0, %s19
    %s22 = sphi 0, %s20
    %s23 = sphi 0, %s21
    %s35 = sphi 0, %s37
    %s38 = sphi 0, %s35
    %s39 = sphi 0, %s38
    %s55 = sphi 0, %s39
    %s61 = sphi 0, %s63
    %s64 = sphi 0, %s61
    %s65 = sphi 0, %s64
    %s81 = sphi 0, %s65
    %s87 = sphi 0, %s89
    %s90 = sphi 0, %s87
    %s91 = sphi 0, %s90
    %s107 = sphi 0, %s91
    %s111 = sphi 0, %s111
    %s113 = sphi 0, %s111
    %s114 = sphi 0, %s113
    %s128 = sphi 0, %s114
    %s132 = sphi 0, %s132
    %s134 = sphi 0, %s132
    %s135 = sphi 0, %s134
    %s149 = sphi 0, %s135
    %s157 = sphi 0, %s159
    %s160 = sphi 0, %s157
    %s161 = sphi 0, %s160
    %s177 = sphi 0, %s161
  $region4: #{spatial_self_attention.5} parent=0 // loop_header_branch
    %14 = sbr.rel (%p12) target = $region8
  $region5: #{spatial_self_attention.5} parent=0 // loop_body
    %s16 = ssub.s32 %s11, 1
    %s17 = ssub.s32 %s11, 2
    %s24 = sadd.s32 1, %s19
    %p25 = scmp.ge.s32.totalorder %s24, 1
    %s26 = scalar_select %p25, 0, %s24
    %s27 = sadd.s32 1, %s18
    %s28 = scalar_select %p25, %s27, %s18
    %p29 = scmp.ge.s32.totalorder %s28, 2
    %s30 = scalar_select %p29, 0, %s28
    %s31 = ssub.s32 %s18, %s30
    %s32 = ssub.s32 %s19, %s26
    %s33 = sor.u32 %s31, %s32
    %p34 = scmp.eq.s32.totalorder %s33, 0
    %s36 = sadd.s32 %s35, 1
    %s37 = scalar_select %p34, %s35, %s36
    %p40 = pneg %p34
    %p41 = scmp.eq.s32.totalorder %s11, 1
    %p42 = por %p40, %p41
    %p43 = scmp.ne.s32.totalorder %s35, %s38
    %p44 = scmp.eq.s32.totalorder %s11, 0
    %p45 = por %p43, %p44
    %p46 = scmp.ne.s32.totalorder %s35, %s38
    %p47 = scmp.eq.s32.totalorder %s16, 1
    %p48 = por %p46, %p47
    %p49 = scmp.ne.s32.totalorder %s38, %s39
    %p50 = scmp.eq.s32.totalorder %s16, 0
    %p51 = por %p49, %p50
    %p52 = scmp.ne.s32.totalorder %s38, %s39
    %p53 = scmp.eq.s32.totalorder %s17, 1
    %p54 = por %p52, %p53
    %p56 = scmp.ne.s32.totalorder %s39, %s55
    %p57 = scmp.eq.s32.totalorder %s17, 0
    %p58 = por %p56, %p57
    %s59 = ssub.s32 %s18, %s30
    %p60 = scmp.eq.s32.totalorder %s59, 0
    %s62 = sadd.s32 %s61, 1
    %s63 = scalar_select %p60, %s61, %s62
    %p66 = pneg %p60
    %p67 = scmp.eq.s32.totalorder %s11, 1
    %p68 = por %p66, %p67
    %p69 = scmp.ne.s32.totalorder %s61, %s64
    %p70 = scmp.eq.s32.totalorder %s11, 0
    %p71 = por %p69, %p70
    %p72 = scmp.ne.s32.totalorder %s61, %s64
    %p73 = scmp.eq.s32.totalorder %s16, 1
    %p74 = por %p72, %p73
    %p75 = scmp.ne.s32.totalorder %s64, %s65
    %p76 = scmp.eq.s32.totalorder %s16, 0
    %p77 = por %p75, %p76
    %p78 = scmp.ne.s32.totalorder %s64, %s65
    %p79 = scmp.eq.s32.totalorder %s17, 1
    %p80 = por %p78, %p79
    %p82 = scmp.ne.s32.totalorder %s65, %s81
    %p83 = scmp.eq.s32.totalorder %s17, 0
    %p84 = por %p82, %p83
    %s85 = ssub.s32 %s18, %s30
    %p86 = scmp.eq.s32.totalorder %s85, 0
    %s88 = sadd.s32 %s87, 1
    %s89 = scalar_select %p86, %s87, %s88
    %p92 = pneg %p86
    %p93 = scmp.eq.s32.totalorder %s11, 1
    %p94 = por %p92, %p93
    %p95 = scmp.ne.s32.totalorder %s87, %s90
    %p96 = scmp.eq.s32.totalorder %s11, 0
    %p97 = por %p95, %p96
    %p98 = scmp.ne.s32.totalorder %s87, %s90
    %p99 = scmp.eq.s32.totalorder %s16, 1
    %p100 = por %p98, %p99
    %p101 = scmp.ne.s32.totalorder %s90, %s91
    %p102 = scmp.eq.s32.totalorder %s16, 0
    %p103 = por %p101, %p102
    %p104 = scmp.ne.s32.totalorder %s90, %s91
    %p105 = scmp.eq.s32.totalorder %s17, 1
    %p106 = por %p104, %p105
    %p108 = scmp.ne.s32.totalorder %s91, %s107
    %p109 = scmp.eq.s32.totalorder %s17, 0
    %p110 = por %p108, %p109
    %s112 = sadd.s32 %s111, 1
    %p115 = scmp.eq.s32.totalorder %s11, 1
    %p116 = scmp.ne.s32.totalorder %s111, %s113
    %p117 = scmp.eq.s32.totalorder %s11, 0
    %p118 = por %p116, %p117
    %p119 = scmp.ne.s32.totalorder %s111, %s113
    %p120 = scmp.eq.s32.totalorder %s16, 1
    %p121 = por %p119, %p120
    %p122 = scmp.ne.s32.totalorder %s113, %s114
    %p123 = scmp.eq.s32.totalorder %s16, 0
    %p124 = por %p122, %p123
    %p125 = scmp.ne.s32.totalorder %s113, %s114
    %p126 = scmp.eq.s32.totalorder %s17, 1
    %p127 = por %p125, %p126
    %p129 = scmp.ne.s32.totalorder %s114, %s128
    %p130 = scmp.eq.s32.totalorder %s17, 0
    %p131 = por %p129, %p130
    %s133 = sadd.s32 %s132, 1
    %p136 = scmp.eq.s32.totalorder %s11, 1
    %p137 = scmp.ne.s32.totalorder %s132, %s134
    %p138 = scmp.eq.s32.totalorder %s11, 0
    %p139 = por %p137, %p138
    %p140 = scmp.ne.s32.totalorder %s132, %s134
    %p141 = scmp.eq.s32.totalorder %s16, 1
    %p142 = por %p140, %p141
    %p143 = scmp.ne.s32.totalorder %s134, %s135
    %p144 = scmp.eq.s32.totalorder %s16, 0
    %p145 = por %p143, %p144
    %p146 = scmp.ne.s32.totalorder %s134, %s135
    %p147 = scmp.eq.s32.totalorder %s17, 1
    %p148 = por %p146, %p147
    %p150 = scmp.ne.s32.totalorder %s135, %s149
    %p151 = scmp.eq.s32.totalorder %s17, 0
    %p152 = por %p150, %p151
    %s153 = ssub.s32 %s18, %s30
    %s154 = ssub.s32 %s19, %s26
    %s155 = sor.u32 %s153, %s154
    %p156 = scmp.eq.s32.totalorder %s155, 0
    %s158 = sadd.s32 %s157, 1
    %s159 = scalar_select %p156, %s157, %s158
    %p162 = pneg %p156
    %p163 = scmp.eq.s32.totalorder %s11, 1
    %p164 = por %p162, %p163
    %p165 = scmp.ne.s32.totalorder %s157, %s160
    %p166 = scmp.eq.s32.totalorder %s11, 0
    %p167 = por %p165, %p166
    %p168 = scmp.ne.s32.totalorder %s157, %s160
    %p169 = scmp.eq.s32.totalorder %s16, 1
    %p170 = por %p168, %p169
    %p171 = scmp.ne.s32.totalorder %s160, %s161
    %p172 = scmp.eq.s32.totalorder %s16, 0
    %p173 = por %p171, %p172
    %p174 = scmp.ne.s32.totalorder %s160, %s161
    %p175 = scmp.eq.s32.totalorder %s17, 1
    %p176 = por %p174, %p175
    %p178 = scmp.ne.s32.totalorder %s161, %s177
    %p179 = scmp.eq.s32.totalorder %s17, 0
    %p180 = por %p178, %p179
    %p181 = scmp.le.s32.totalorder 1, %s11
    %p182 = scmp.lt.s32.totalorder %s11, 3
    %p183 = pnand %p181, %p182
    %p184 = pneg %p183
    // Predicated region
    $region9: #{spatial_self_attention.5} parent=5 // pred_check
      _
    $region10: #{spatial_self_attention.5} parent=5 // pred_check_branch
      %186 = sbr.rel (%p183) target = $region12
    $region11: #{spatial_self_attention.5} parent=5 // pred_region
      %s187 = ssub.s32 %s11, 1
      // Predicated region
      $region13: #{spatial_self_attention.5} parent=11 // pred_check
        %p188 = pneg %p124
      $region14: #{spatial_self_attention.5} parent=11 // pred_check_branch
        %190 = sbr.rel (%p188) target = $region16
      $region15: #{spatial_self_attention.5} parent=11 // pred_region
        _
      $region16: #{spatial_self_attention.5} parent=11 // pred_fallthru
        _
      // Predicated region
      $region17: #{spatial_self_attention.5} parent=11 // pred_check
        %p191 = pneg %p145
      $region18: #{spatial_self_attention.5} parent=11 // pred_check_branch
        %193 = sbr.rel (%p191) target = $region20
      $region19: #{spatial_self_attention.5} parent=11 // pred_region
        _
      $region20: #{spatial_self_attention.5} parent=11 // pred_fallthru
        _
    $region12: #{spatial_self_attention.5} parent=5 // pred_fallthru
      _
    %p194 = scmp.lt.s32.totalorder %s11, 2
    // Predicated region
    $region21: #{spatial_self_attention.5} parent=5 // pred_check
      %p195 = pneg %p194
    $region22: #{spatial_self_attention.5} parent=5 // pred_check_branch
      %197 = sbr.rel (%p195) target = $region24
    $region23: #{spatial_self_attention.5} parent=5 // pred_region
      // Predicated region
      $region25: #{spatial_self_attention.5} parent=23 // pred_check
        %p198 = pneg %p45
      $region26: #{spatial_self_attention.5} parent=23 // pred_check_branch
        %200 = sbr.rel (%p198) target = $region28
      $region27: #{spatial_self_attention.5} parent=23 // pred_region
        %p201 = scmp.lt.s32.totalorder %s18, 1
        %s202 = scalar_select %p201, %s18, 1
        %p203 = scmp.lt.s32.totalorder %s19, 0
        %s204 = scalar_select %p203, %s19, 0
        %s205 = smul.addr %s202, 16
        %s206 = sadd.s32 %s204, %s205
        %s207 = smul.addr %s206, 8
        %s208 = scalar_lea.vmem %s0, %s207
      $region28: #{spatial_self_attention.5} parent=23 // pred_fallthru
        _
      // Predicated region
      $region29: #{spatial_self_attention.5} parent=23 // pred_check
        %p209 = pneg %p71
      $region30: #{spatial_self_attention.5} parent=23 // pred_check_branch
        %211 = sbr.rel (%p209) target = $region32
      $region31: #{spatial_self_attention.5} parent=23 // pred_region
        %p212 = scmp.lt.s32.totalorder %s18, 1
        %s213 = scalar_select %p212, %s18, 1
        %s214 = smul.addr %s213, 16
        %s215 = smul.addr %s214, 8
        %s216 = scalar_lea.vmem %s1, %s215
      $region32: #{spatial_self_attention.5} parent=23 // pred_fallthru
        _
      // Predicated region
      $region33: #{spatial_self_attention.5} parent=23 // pred_check
        %p217 = pneg %p97
      $region34: #{spatial_self_attention.5} parent=23 // pred_check_branch
        %219 = sbr.rel (%p217) target = $region36
      $region35: #{spatial_self_attention.5} parent=23 // pred_region
        %p220 = scmp.lt.s32.totalorder %s18, 1
        %s221 = scalar_select %p220, %s18, 1
        %s222 = smul.addr %s221, 16
        %s223 = smul.addr %s222, 8
        %s224 = scalar_lea.vmem %s2, %s223
      $region36: #{spatial_self_attention.5} parent=23 // pred_fallthru
        _
    $region24: #{spatial_self_attention.5} parent=5 // pred_fallthru
      _
    %p225 = scmp.le.s32.totalorder 1, %s11
    %p226 = scmp.lt.s32.totalorder %s11, 3
    %p227 = pnand %p225, %p226
    %p228 = pneg %p227
    // Predicated region
    $region37: #{spatial_self_attention.5} parent=5 // pred_check
      _
    $region38: #{spatial_self_attention.5} parent=5 // pred_check_branch
      %230 = sbr.rel (%p227) target = $region40
    $region39: #{spatial_self_attention.5} parent=5 // pred_region
      %s231 = ssub.s32 %s11, 1
      %p232 = scmp.lt.s32.totalorder %s20, 1
      %s233 = scalar_select %p232, %s20, 1
      %p234 = scmp.lt.s32.totalorder %s21, 0
      %s235 = scalar_select %p234, %s21, 0
      %s236 = smul.addr %s233, 16
      %s237 = sadd.s32 %s235, %s236
      %s238 = smul.addr %s237, 8
      %s239 = scalar_lea.vmem %s0, %s238
      %p240 = pneg %p51
      %p241 = pneg %p48
      %p242 = scmp.lt.s32.totalorder %s20, 1
      %s243 = scalar_select %p242, %s20, 1
      %s244 = smul.addr %s243, 16
      %s245 = smul.addr %s244, 8
      %s246 = scalar_lea.vmem %s1, %s245
      %p247 = pneg %p77
      %p248 = pneg %p74
      %p249 = scmp.lt.s32.totalorder %s20, 1
      %s250 = scalar_select %p249, %s20, 1
      %s251 = smul.addr %s250, 16
      %s252 = smul.addr %s251, 8
      %s253 = scalar_lea.vmem %s2, %s252
      %p254 = pneg %p103
      %p255 = pneg %p100
      %p256 = pneg %p124
      %p257 = pneg %p121
      %p258 = pneg %p145
      %p259 = pneg %p142
      %p260 = pneg %p173
      %p261 = pneg %p170
      %s262 = smul.u32 8, %s21
      %p263 = scmp.lt.s32.totalorder %s20, 1
      %s264 = scalar_select %p263, %s20, 1
      %p265 = scmp.lt.s32.totalorder %s262, 7
      %s266 = scalar_select %p265, %s262, 7
      %s267 = smul.addr %s266, 3
      %s268 = smul.addr %s264, 24
      %s269 = sadd.s32 %s267, %s268
      %s270 = smul.addr %s269, 8
      %s271 = scalar_lea.vmem %s5, %s270
      %p272 = scmp.lt.s32.totalorder %s20, 1
      %s273 = scalar_select %p272, %s20, 1
      %p274 = scmp.lt.s32.totalorder %s21, 0
      %s275 = scalar_select %p274, %s21, 0
      %s276 = smul.addr %s273, 16
      %s277 = sadd.s32 %s275, %s276
      %s278 = smul.addr %s277, 8
      %s279 = scalar_lea.vmem %s0, %s278
      %p280 = scmp.lt.s32.totalorder %s20, 1
      %s281 = scalar_select %p280, %s20, 1
      %s282 = smul.addr %s281, 16
      %s283 = smul.addr %s282, 8
      %s284 = scalar_lea.vmem %s1, %s283
      %p285 = scmp.lt.s32.totalorder %s20, 1
      %s286 = scalar_select %p285, %s20, 1
      %s287 = smul.addr %s286, 16
      %s288 = smul.addr %s287, 8
      %s289 = scalar_lea.vmem %s2, %s288
      %s290 = smul.u32 8, %s21
      %p291 = scmp.lt.s32.totalorder %s20, 1
      %s292 = scalar_select %p291, %s20, 1
      %p293 = scmp.lt.s32.totalorder %s290, 7
      %s294 = scalar_select %p293, %s290, 7
      %s295 = smul.addr %s294, 3
      %s296 = smul.addr %s292, 24
      %s297 = sadd.s32 %s295, %s296
      %s298 = smul.addr %s297, 8
      %s299 = scalar_lea.vmem %s5, %s298
      %s300 = smul.u32 8, %s21
      %v301 = vld [vmem:[%s279] sm:$0xff]
      %v302 = vld [vmem:[%s279 + $0x8] sm:$0xff]
      %v303 = vld [vmem:[%s279 + $0x10] sm:$0xff]
      %v304 = vld [vmem:[%s279 + $0x18] sm:$0xff]
      %v305 = vld [vmem:[%s279 + $0x20] sm:$0xff]
      %v306 = vld [vmem:[%s279 + $0x28] sm:$0xff]
      %v307 = vld [vmem:[%s279 + $0x30] sm:$0xff]
      %v308 = vld [vmem:[%s279 + $0x38] sm:$0xff]
      %v309 = vld [vmem:[%s279 + $0x40] sm:$0xff]
      %v310 = vld [vmem:[%s279 + $0x48] sm:$0xff]
      %v311 = vld [vmem:[%s279 + $0x50] sm:$0xff]
      %v312 = vld [vmem:[%s279 + $0x58] sm:$0xff]
      %v313 = vld [vmem:[%s279 + $0x60] sm:$0xff]
      %v314 = vld [vmem:[%s279 + $0x68] sm:$0xff]
      %v315 = vld [vmem:[%s279 + $0x70] sm:$0xff]
      %v316 = vld [vmem:[%s279 + $0x78] sm:$0xff]
      %v317 = vld [vmem:[%s284] sm:$0xff]
      %v318 = vld [vmem:[%s284 + $0x8] sm:$0xff]
      %v319 = vld [vmem:[%s284 + $0x10] sm:$0xff]
      %v320 = vld [vmem:[%s284 + $0x18] sm:$0xff]
      %v321 = vld [vmem:[%s284 + $0x20] sm:$0xff]
      %v322 = vld [vmem:[%s284 + $0x28] sm:$0xff]
      %v323 = vld [vmem:[%s284 + $0x30] sm:$0xff]
      %v324 = vld [vmem:[%s284 + $0x38] sm:$0xff]
      %v325 = vld [vmem:[%s284 + $0x40] sm:$0xff]
      %v326 = vld [vmem:[%s284 + $0x48] sm:$0xff]
      %v327 = vld [vmem:[%s284 + $0x50] sm:$0xff]
      %v328 = vld [vmem:[%s284 + $0x58] sm:$0xff]
      %v329 = vld [vmem:[%s284 + $0x60] sm:$0xff]
      %v330 = vld [vmem:[%s284 + $0x68] sm:$0xff]
      %v331 = vld [vmem:[%s284 + $0x70] sm:$0xff]
      %v332 = vld [vmem:[%s284 + $0x78] sm:$0xff]
      %334 = vset.pattern.permute.xlu0 0
      %335 = vperm.xlu0 %334, %v317
      %v336 = vpop.permute.xlu0 %335
      %339 = vset.pattern.permute.xlu0 0
      %340 = vperm.xlu0 %339, %v318
      %v341 = vpop.permute.xlu0 %340
      %344 = vset.pattern.permute.xlu0 0
      %345 = vperm.xlu0 %344, %v319
      %v346 = vpop.permute.xlu0 %345
      %349 = vset.pattern.permute.xlu0 0
      %350 = vperm.xlu0 %349, %v320
      %v351 = vpop.permute.xlu0 %350
      %354 = vset.pattern.permute.xlu0 0
      %355 = vperm.xlu0 %354, %v321
      %v356 = vpop.permute.xlu0 %355
      %359 = vset.pattern.permute.xlu0 0
      %360 = vperm.xlu0 %359, %v322
      %v361 = vpop.permute.xlu0 %360
      %364 = vset.pattern.permute.xlu0 0
      %365 = vperm.xlu0 %364, %v323
      %v366 = vpop.permute.xlu0 %365
      %369 = vset.pattern.permute.xlu0 0
      %370 = vperm.xlu0 %369, %v324
      %v371 = vpop.permute.xlu0 %370
      %374 = vset.pattern.permute.xlu0 0
      %375 = vperm.xlu0 %374, %v325
      %v376 = vpop.permute.xlu0 %375
      %379 = vset.pattern.permute.xlu0 0
      %380 = vperm.xlu0 %379, %v326
      %v381 = vpop.permute.xlu0 %380
      %384 = vset.pattern.permute.xlu0 0
      %385 = vperm.xlu0 %384, %v327
      %v386 = vpop.permute.xlu0 %385
      %389 = vset.pattern.permute.xlu0 0
      %390 = vperm.xlu0 %389, %v328
      %v391 = vpop.permute.xlu0 %390
      %394 = vset.pattern.permute.xlu0 0
      %395 = vperm.xlu0 %394, %v329
      %v396 = vpop.permute.xlu0 %395
      %399 = vset.pattern.permute.xlu0 0
      %400 = vperm.xlu0 %399, %v330
      %v401 = vpop.permute.xlu0 %400
      %404 = vset.pattern.permute.xlu0 0
      %405 = vperm.xlu0 %404, %v331
      %v406 = vpop.permute.xlu0 %405
      %409 = vset.pattern.permute.xlu0 0
      %410 = vperm.xlu0 %409, %v332
      %v411 = vpop.permute.xlu0 %410
      %v413 = vmul.f32 %v301, %v336
      %v414 = vmul.f32 %v302, %v341
      %v415 = vmul.f32 %v303, %v346
      %v416 = vmul.f32 %v304, %v351
      %v417 = vmul.f32 %v305, %v356
      %v418 = vmul.f32 %v306, %v361
      %v419 = vmul.f32 %v307, %v366
      %v420 = vmul.f32 %v308, %v371
      %v421 = vmul.f32 %v309, %v376
      %v422 = vmul.f32 %v310, %v381
      %v423 = vmul.f32 %v311, %v386
      %v424 = vmul.f32 %v312, %v391
      %v425 = vmul.f32 %v313, %v396
      %v426 = vmul.f32 %v314, %v401
      %v427 = vmul.f32 %v315, %v406
      %v428 = vmul.f32 %v316, %v411
      %v429 = vld [vmem:[%s289] sm:$0xff]
      %v430 = vld [vmem:[%s289 + $0x8] sm:$0xff]
      %v431 = vld [vmem:[%s289 + $0x10] sm:$0xff]
      %v432 = vld [vmem:[%s289 + $0x18] sm:$0xff]
      %v433 = vld [vmem:[%s289 + $0x20] sm:$0xff]
      %v434 = vld [vmem:[%s289 + $0x28] sm:$0xff]
      %v435 = vld [vmem:[%s289 + $0x30] sm:$0xff]
      %v436 = vld [vmem:[%s289 + $0x38] sm:$0xff]
      %v437 = vld [vmem:[%s289 + $0x40] sm:$0xff]
      %v438 = vld [vmem:[%s289 + $0x48] sm:$0xff]
      %v439 = vld [vmem:[%s289 + $0x50] sm:$0xff]
      %v440 = vld [vmem:[%s289 + $0x58] sm:$0xff]
      %v441 = vld [vmem:[%s289 + $0x60] sm:$0xff]
      %v442 = vld [vmem:[%s289 + $0x68] sm:$0xff]
      %v443 = vld [vmem:[%s289 + $0x70] sm:$0xff]
      %v444 = vld [vmem:[%s289 + $0x78] sm:$0xff]
      %446 = vset.pattern.permute.xlu0 0
      %447 = vperm.xlu0 %446, %v429
      %v448 = vpop.permute.xlu0 %447
      %451 = vset.pattern.permute.xlu0 0
      %452 = vperm.xlu0 %451, %v430
      %v453 = vpop.permute.xlu0 %452
      %456 = vset.pattern.permute.xlu0 0
      %457 = vperm.xlu0 %456, %v431
      %v458 = vpop.permute.xlu0 %457
      %461 = vset.pattern.permute.xlu0 0
      %462 = vperm.xlu0 %461, %v432
      %v463 = vpop.permute.xlu0 %462
      %466 = vset.pattern.permute.xlu0 0
      %467 = vperm.xlu0 %466, %v433
      %v468 = vpop.permute.xlu0 %467
      %471 = vset.pattern.permute.xlu0 0
      %472 = vperm.xlu0 %471, %v434
      %v473 = vpop.permute.xlu0 %472
      %476 = vset.pattern.permute.xlu0 0
      %477 = vperm.xlu0 %476, %v435
      %v478 = vpop.permute.xlu0 %477
      %481 = vset.pattern.permute.xlu0 0
      %482 = vperm.xlu0 %481, %v436
      %v483 = vpop.permute.xlu0 %482
      %486 = vset.pattern.permute.xlu0 0
      %487 = vperm.xlu0 %486, %v437
      %v488 = vpop.permute.xlu0 %487
      %491 = vset.pattern.permute.xlu0 0
      %492 = vperm.xlu0 %491, %v438
      %v493 = vpop.permute.xlu0 %492
      %496 = vset.pattern.permute.xlu0 0
      %497 = vperm.xlu0 %496, %v439
      %v498 = vpop.permute.xlu0 %497
      %501 = vset.pattern.permute.xlu0 0
      %502 = vperm.xlu0 %501, %v440
      %v503 = vpop.permute.xlu0 %502
      %506 = vset.pattern.permute.xlu0 0
      %507 = vperm.xlu0 %506, %v441
      %v508 = vpop.permute.xlu0 %507
      %511 = vset.pattern.permute.xlu0 0
      %512 = vperm.xlu0 %511, %v442
      %v513 = vpop.permute.xlu0 %512
      %516 = vset.pattern.permute.xlu0 0
      %517 = vperm.xlu0 %516, %v443
      %v518 = vpop.permute.xlu0 %517
      %521 = vset.pattern.permute.xlu0 0
      %522 = vperm.xlu0 %521, %v444
      %v523 = vpop.permute.xlu0 %522
      %v525 = vadd.f32 %v413, %v448
      %v526 = vadd.f32 %v414, %v453
      %v527 = vadd.f32 %v415, %v458
      %v528 = vadd.f32 %v416, %v463
      %v529 = vadd.f32 %v417, %v468
      %v530 = vadd.f32 %v418, %v473
      %v531 = vadd.f32 %v419, %v478
      %v532 = vadd.f32 %v420, %v483
      %v533 = vadd.f32 %v421, %v488
      %v534 = vadd.f32 %v422, %v493
      %v535 = vadd.f32 %v423, %v498
      %v536 = vadd.f32 %v424, %v503
      %v537 = vadd.f32 %v425, %v508
      %v538 = vadd.f32 %v426, %v513
      %v539 = vadd.f32 %v427, %v518
      %v540 = vadd.f32 %v428, %v523
      %541 = vxpose.xlu0.b32.start [1/16] %v525, 128
      %542 = vxpose.xlu0.b32.cont [2/16] %v526, 128
      %543 = vxpose.xlu0.b32.cont [3/16] %v527, 128
      %544 = vxpose.xlu0.b32.cont [4/16] %v528, 128
      %545 = vxpose.xlu0.b32.cont [5/16] %v529, 128
      %546 = vxpose.xlu0.b32.cont [6/16] %v530, 128
      %547 = vxpose.xlu0.b32.cont [7/16] %v531, 128
      %548 = vxpose.xlu0.b32.cont [8/16] %v532, 128
      %549 = vxpose.xlu0.b32.cont [9/16] %v533, 128
      %550 = vxpose.xlu0.b32.cont [10/16] %v534, 128
      %551 = vxpose.xlu0.b32.cont [11/16] %v535, 128
      %552 = vxpose.xlu0.b32.cont [12/16] %v536, 128
      %553 = vxpose.xlu0.b32.cont [13/16] %v537, 128
      %554 = vxpose.xlu0.b32.cont [14/16] %v538, 128
      %555 = vxpose.xlu0.b32.cont [15/16] %v539, 128
      %556 = vxpose.xlu0.b32.end [16/16] %v540, 128
      %v557 = vpop.trf.xlu0
      %v558 = vpop.trf.xlu0
      %v559 = vpop.trf.xlu0
      %v560 = vpop.trf.xlu0
      %v561 = vpop.trf.xlu0
      %v562 = vpop.trf.xlu0
      %v563 = vpop.trf.xlu0
      %v564 = vpop.trf.xlu0
      %v565 = vpop.trf.xlu0
      %v566 = vpop.trf.xlu0
      %v567 = vpop.trf.xlu0
      %v568 = vpop.trf.xlu0
      %v569 = vpop.trf.xlu0
      %v570 = vpop.trf.xlu0
      %v571 = vpop.trf.xlu0
      %v572 = vpop.trf.xlu0
      %v573 = vld [vmem:[%s3] sm:$0xff]
      %v574 = vld [vmem:[%s3 + $0x8] sm:$0xff]
      %v575 = vld [vmem:[%s3 + $0x10] sm:$0xff]
      %v576 = vld [vmem:[%s3 + $0x18] sm:$0xff]
      %v577 = vld [vmem:[%s3 + $0x20] sm:$0xff]
      %v578 = vld [vmem:[%s3 + $0x28] sm:$0xff]
      %v579 = vld [vmem:[%s3 + $0x30] sm:$0xff]
      %v580 = vld [vmem:[%s3 + $0x38] sm:$0xff]
      %v581 = vld [vmem:[%s3 + $0x40] sm:$0xff]
      %v582 = vld [vmem:[%s3 + $0x48] sm:$0xff]
      %v583 = vld [vmem:[%s3 + $0x50] sm:$0xff]
      %v584 = vld [vmem:[%s3 + $0x58] sm:$0xff]
      %v585 = vld [vmem:[%s3 + $0x60] sm:$0xff]
      %v586 = vld [vmem:[%s3 + $0x68] sm:$0xff]
      %v587 = vld [vmem:[%s3 + $0x70] sm:$0xff]
      %v588 = vld [vmem:[%s3 + $0x78] sm:$0xff]
      %v589 = vld [vmem:[%s3 + $0x80] sm:$0xff]
      %v590 = vld [vmem:[%s3 + $0x88] sm:$0xff]
      %v591 = vld [vmem:[%s3 + $0x90] sm:$0xff]
      %v592 = vld [vmem:[%s3 + $0x98] sm:$0xff]
      %v593 = vld [vmem:[%s3 + $0xa0] sm:$0xff]
      %v594 = vld [vmem:[%s3 + $0xa8] sm:$0xff]
      %v595 = vld [vmem:[%s3 + $0xb0] sm:$0xff]
      %v596 = vld [vmem:[%s3 + $0xb8] sm:$0xff]
      %v597 = vld [vmem:[%s3 + $0xc0] sm:$0xff]
      %v598 = vld [vmem:[%s3 + $0xc8] sm:$0xff]
      %v599 = vld [vmem:[%s3 + $0xd0] sm:$0xff]
      %v600 = vld [vmem:[%s3 + $0xd8] sm:$0xff]
      %v601 = vld [vmem:[%s3 + $0xe0] sm:$0xff]
      %v602 = vld [vmem:[%s3 + $0xe8] sm:$0xff]
      %v603 = vld [vmem:[%s3 + $0xf0] sm:$0xff]
      %v604 = vld [vmem:[%s3 + $0xf8] sm:$0xff]
      %v605 = vld [vmem:[%s3 + $0x100] sm:$0xff]
      %v606 = vld [vmem:[%s3 + $0x108] sm:$0xff]
      %v607 = vld [vmem:[%s3 + $0x110] sm:$0xff]
      %v608 = vld [vmem:[%s3 + $0x118] sm:$0xff]
      %v609 = vld [vmem:[%s3 + $0x120] sm:$0xff]
      %v610 = vld [vmem:[%s3 + $0x128] sm:$0xff]
      %v611 = vld [vmem:[%s3 + $0x130] sm:$0xff]
      %v612 = vld [vmem:[%s3 + $0x138] sm:$0xff]
      %v613 = vld [vmem:[%s3 + $0x140] sm:$0xff]
      %v614 = vld [vmem:[%s3 + $0x148] sm:$0xff]
      %v615 = vld [vmem:[%s3 + $0x150] sm:$0xff]
      %v616 = vld [vmem:[%s3 + $0x158] sm:$0xff]
      %v617 = vld [vmem:[%s3 + $0x160] sm:$0xff]
      %v618 = vld [vmem:[%s3 + $0x168] sm:$0xff]
      %v619 = vld [vmem:[%s3 + $0x170] sm:$0xff]
      %v620 = vld [vmem:[%s3 + $0x178] sm:$0xff]
      %v621 = vld [vmem:[%s4] sm:$0x7]
      %v623 = vperm.slane %v621, 0
      %v624 = vperm.slane %v621, 1
      %v625 = vperm.slane %v621, 2
      %629 = vmatpush.msra.mxu0 %v618
      %630 = vmatpush.msra.mxu0 %v615
      %631 = vmatpush.msra.mxu0 %v612
      %632 = vmatpush.msra.mxu0 %v609
      %633 = vmatpush.msra.mxu0 %v606
      %634 = vmatpush.msra.mxu0 %v603
      %635 = vmatpush.msra.mxu0 %v600
      %636 = vmatpush.msra.mxu0 %v597
      %637 = vmatpush.msra.mxu0 %v594
      %638 = vmatpush.msra.mxu0 %v591
      %639 = vmatpush.msra.mxu0 %v588
      %640 = vmatpush.msra.mxu0 %v585
      %641 = vmatpush.msra.mxu0 %v582
      %642 = vmatpush.msra.mxu0 %v579
      %643 = vmatpush.msra.mxu0 %v576
      %644 = vmatpush.msra.mxu0 %v573
      %645 = vmatmul.f32.gmra.mxu0 %v557
      %v646 = vpop.f32.mrf.mxu0
      %v647 = vadd.f32 %v623, %v646
      %648 = vmatmul.f32.gmra.mxu0 %v558
      %v649 = vpop.f32.mrf.mxu0
      %v650 = vadd.f32 %v623, %v649
      %651 = vmatmul.f32.gmra.mxu0 %v559
      %v652 = vpop.f32.mrf.mxu0
      %v653 = vadd.f32 %v623, %v652
      %654 = vmatmul.f32.gmra.mxu0 %v560
      %v655 = vpop.f32.mrf.mxu0
      %v656 = vadd.f32 %v623, %v655
      %657 = vmatmul.f32.gmra.mxu0 %v561
      %v658 = vpop.f32.mrf.mxu0
      %v659 = vadd.f32 %v623, %v658
      %660 = vmatmul.f32.gmra.mxu0 %v562
      %v661 = vpop.f32.mrf.mxu0
      %v662 = vadd.f32 %v623, %v661
      %663 = vmatmul.f32.gmra.mxu0 %v563
      %v664 = vpop.f32.mrf.mxu0
      %v665 = vadd.f32 %v623, %v664
      %666 = vmatmul.f32.gmra.mxu0 %v564
      %v667 = vpop.f32.mrf.mxu0
      %v668 = vadd.f32 %v623, %v667
      %669 = vdwg.mxu0
      %670 = vmatpush.msra.mxu0 %v619
      %671 = vmatpush.msra.mxu0 %v616
      %672 = vmatpush.msra.mxu0 %v613
      %673 = vmatpush.msra.mxu0 %v610
      %674 = vmatpush.msra.mxu0 %v607
      %675 = vmatpush.msra.mxu0 %v604
      %676 = vmatpush.msra.mxu0 %v601
      %677 = vmatpush.msra.mxu0 %v598
      %678 = vmatpush.msra.mxu0 %v595
      %679 = vmatpush.msra.mxu0 %v592
      %680 = vmatpush.msra.mxu0 %v589
      %681 = vmatpush.msra.mxu0 %v586
      %682 = vmatpush.msra.mxu0 %v583
      %683 = vmatpush.msra.mxu0 %v580
      %684 = vmatpush.msra.mxu0 %v577
      %685 = vmatpush.msra.mxu0 %v574
      %686 = vmatmul.f32.gmra.mxu0 %v557
      %v687 = vpop.f32.mrf.mxu0
      %v688 = vadd.f32 %v624, %v687
      %689 = vmatmul.f32.gmra.mxu0 %v558
      %v690 = vpop.f32.mrf.mxu0
      %v691 = vadd.f32 %v624, %v690
      %692 = vmatmul.f32.gmra.mxu0 %v559
      %v693 = vpop.f32.mrf.mxu0
      %v694 = vadd.f32 %v624, %v693
      %695 = vmatmul.f32.gmra.mxu0 %v560
      %v696 = vpop.f32.mrf.mxu0
      %v697 = vadd.f32 %v624, %v696
      %698 = vmatmul.f32.gmra.mxu0 %v561
      %v699 = vpop.f32.mrf.mxu0
      %v700 = vadd.f32 %v624, %v699
      %701 = vmatmul.f32.gmra.mxu0 %v562
      %v702 = vpop.f32.mrf.mxu0
      %v703 = vadd.f32 %v624, %v702
      %704 = vmatmul.f32.gmra.mxu0 %v563
      %v705 = vpop.f32.mrf.mxu0
      %v706 = vadd.f32 %v624, %v705
      %707 = vmatmul.f32.gmra.mxu0 %v564
      %v708 = vpop.f32.mrf.mxu0
      %v709 = vadd.f32 %v624, %v708
      %710 = vdwg.mxu0
      %711 = vmatpush.msra.mxu0 %v620
      %712 = vmatpush.msra.mxu0 %v617
      %713 = vmatpush.msra.mxu0 %v614
      %714 = vmatpush.msra.mxu0 %v611
      %715 = vmatpush.msra.mxu0 %v608
      %716 = vmatpush.msra.mxu0 %v605
      %717 = vmatpush.msra.mxu0 %v602
      %718 = vmatpush.msra.mxu0 %v599
      %719 = vmatpush.msra.mxu0 %v596
      %720 = vmatpush.msra.mxu0 %v593
      %721 = vmatpush.msra.mxu0 %v590
      %722 = vmatpush.msra.mxu0 %v587
      %723 = vmatpush.msra.mxu0 %v584
      %724 = vmatpush.msra.mxu0 %v581
      %725 = vmatpush.msra.mxu0 %v578
      %726 = vmatpush.msra.mxu0 %v575
      %727 = vmatmul.f32.gmra.mxu0 %v557
      %v728 = vpop.f32.mrf.mxu0
      %v729 = vadd.f32 %v625, %v728
      %730 = vmatmul.f32.gmra.mxu0 %v558
      %v731 = vpop.f32.mrf.mxu0
      %v732 = vadd.f32 %v625, %v731
      %733 = vmatmul.f32.gmra.mxu0 %v559
      %v734 = vpop.f32.mrf.mxu0
      %v735 = vadd.f32 %v625, %v734
      %736 = vmatmul.f32.gmra.mxu0 %v560
      %v737 = vpop.f32.mrf.mxu0
      %v738 = vadd.f32 %v625, %v737
      %739 = vmatmul.f32.gmra.mxu0 %v561
      %v740 = vpop.f32.mrf.mxu0
      %v741 = vadd.f32 %v625, %v740
      %742 = vmatmul.f32.gmra.mxu0 %v562
      %v743 = vpop.f32.mrf.mxu0
      %v744 = vadd.f32 %v625, %v743
      %745 = vmatmul.f32.gmra.mxu0 %v563
      %v746 = vpop.f32.mrf.mxu0
      %v747 = vadd.f32 %v625, %v746
      %748 = vmatmul.f32.gmra.mxu0 %v564
      %v749 = vpop.f32.mrf.mxu0
      %v750 = vadd.f32 %v625, %v749
      %751 = vdwg.mxu0
      %752 = vst [vmem:[%s299] sm:$0xff] %v647
      %753 = vst [vmem:[%s299 + $0x8] sm:$0xff] %v688
      %754 = vst [vmem:[%s299 + $0x10] sm:$0xff] %v729
      %755 = vst [vmem:[%s299 + $0x18] sm:$0xff] %v650
      %756 = vst [vmem:[%s299 + $0x20] sm:$0xff] %v691
      %757 = vst [vmem:[%s299 + $0x28] sm:$0xff] %v732
      %758 = vst [vmem:[%s299 + $0x30] sm:$0xff] %v653
      %759 = vst [vmem:[%s299 + $0x38] sm:$0xff] %v694
      %760 = vst [vmem:[%s299 + $0x40] sm:$0xff] %v735
      %761 = vst [vmem:[%s299 + $0x48] sm:$0xff] %v656
      %762 = vst [vmem:[%s299 + $0x50] sm:$0xff] %v697
      %763 = vst [vmem:[%s299 + $0x58] sm:$0xff] %v738
      %764 = vst [vmem:[%s299 + $0x60] sm:$0xff] %v659
      %765 = vst [vmem:[%s299 + $0x68] sm:$0xff] %v700
      %766 = vst [vmem:[%s299 + $0x70] sm:$0xff] %v741
      %767 = vst [vmem:[%s299 + $0x78] sm:$0xff] %v662
      %768 = vst [vmem:[%s299 + $0x80] sm:$0xff] %v703
      %769 = vst [vmem:[%s299 + $0x88] sm:$0xff] %v744
      %770 = vst [vmem:[%s299 + $0x90] sm:$0xff] %v665
      %771 = vst [vmem:[%s299 + $0x98] sm:$0xff] %v706
      %772 = vst [vmem:[%s299 + $0xa0] sm:$0xff] %v747
      %773 = vst [vmem:[%s299 + $0xa8] sm:$0xff] %v668
      %774 = vst [vmem:[%s299 + $0xb0] sm:$0xff] %v709
      %775 = vst [vmem:[%s299 + $0xb8] sm:$0xff] %v750
      %s776 = smul.u32 8, %s21
      %p777 = scmp.lt.s32.totalorder %s20, 1
      %s778 = scalar_select %p777, %s20, 1
      %p779 = scmp.lt.s32.totalorder %s776, 7
      %s780 = scalar_select %p779, %s776, 7
      %s781 = smul.addr %s780, 3
      %s782 = smul.addr %s778, 24
      %s783 = sadd.s32 %s781, %s782
      %s784 = smul.addr %s783, 8
      %s785 = scalar_lea.vmem %s5, %s784
      // Predicated region
      $region41: #{spatial_self_attention.5} parent=39 // pred_check
        %p786 = pneg %p170
      $region42: #{spatial_self_attention.5} parent=39 // pred_check_branch
        %788 = sbr.rel (%p786) target = $region44
      $region43: #{spatial_self_attention.5} parent=39 // pred_region
        %s789 = smul.u32 8, %s21
      $region44: #{spatial_self_attention.5} parent=39 // pred_fallthru
        _
    $region40: #{spatial_self_attention.5} parent=5 // pred_fallthru
      _
    %p790 = scmp.le.s32.totalorder 2, %s11
    // Predicated region
    $region45: #{spatial_self_attention.5} parent=5 // pred_check
      %p791 = pneg %p790
    $region46: #{spatial_self_attention.5} parent=5 // pred_check_branch
      %793 = sbr.rel (%p791) target = $region48
    $region47: #{spatial_self_attention.5} parent=5 // pred_region
      %s794 = ssub.s32 %s11, 2
      // Predicated region
      $region49: #{spatial_self_attention.5} parent=47 // pred_check
        %p795 = pneg %p176
      $region50: #{spatial_self_attention.5} parent=47 // pred_check_branch
        %797 = sbr.rel (%p795) target = $region52
      $region51: #{spatial_self_attention.5} parent=47 // pred_region
        %s798 = smul.u32 8, %s23
        %p799 = scmp.lt.s32.totalorder %s22, 1
        %s800 = scalar_select %p799, %s22, 1
        %p801 = scmp.lt.s32.totalorder %s798, 7
        %s802 = scalar_select %p801, %s798, 7
        %s803 = smul.addr %s802, 3
        %s804 = smul.addr %s800, 24
        %s805 = sadd.s32 %s803, %s804
        %s806 = smul.addr %s805, 8
        %s807 = scalar_lea.vmem %s5, %s806
      $region52: #{spatial_self_attention.5} parent=47 // pred_fallthru
        _
    $region48: #{spatial_self_attention.5} parent=5 // pred_fallthru
      _
  $region6: #{spatial_self_attention.5} parent=0 // loop_footer
    %s15 = sadd.s32 1, %s11
  $region7: #{spatial_self_attention.5} parent=0 // loop_footer_branch
    %10 = sbr.rel target = $region3
  $region8: #{spatial_self_attention.5} parent=0 // loop_exit
    _

// kernel: spatial_self_attention.4
$region0: #{spatial_self_attention.4}
  #allocation0 [shape = 'u32[]', space=smem, size = 0x4, offset = 0x4, fixed_abs, tag = 'smem constant byte address 0x4 - core index']
  #allocation1 [shape = 'u32[72,128]{1,0:T(1,128)}', space=vmem, size = 0x9000, scoped, tag = 'internal scratch']
  #allocation2 [shape = 'f32[128,1]{1,0:T(8,128)}', space=vmem, size = 0x10000, scoped, tag = 'scratch operand']
  #allocation3 [shape = 'f32[128,1]{1,0:T(8,128)}', space=vmem, size = 0x10000, scoped, tag = 'scratch operand']
  %s0 = inlined_call_operand.vmem [shape: f32[2,128,64], index: 0, kind: input, shape index: {}]
  %s1 = inlined_call_operand.vmem [shape: f32[128,1], index: 1, kind: input, shape index: {}]
  %s2 = inlined_call_operand.vmem [shape: f32[128,1], index: 2, kind: input, shape index: {}]
  %s3 = inlined_call_operand.vmem [shape: f32[128,32], index: 3, kind: input, shape index: {}]
  %s4 = inlined_call_operand.vmem [shape: f32[32,128], index: 4, kind: input, shape index: {}]
  %s5 = inlined_call_operand.vmem [shape: f32[2,128,1], index: 5, kind: output, shape index: {0}]
  %s6 = inlined_call_operand.vmem [shape: f32[2,128,1], index: 6, kind: output, shape index: {1}]
  %7 = xla_tuple %s5, %s6
  %s8 = sld [smem:[#allocation0]]
  $region69: #{spatial_self_attention.4} parent=0
    _
  %s10 = ssub.s32 1, %s8
  %s11 = scalar_select 0, %s10, %s8
  loop: start=0, step=1, limit=4
  $region2: #{spatial_self_attention.4} parent=0 // loop_pre_header
    _
  $region3: #{spatial_self_attention.4} parent=0 // loop_header
    %s13 = sphi 0, %s17
    %p14 = scmp.ge.s32.totalorder %s13, 4
    %s20 = sphi 0, %s32
    %s21 = sphi 0, %s28
    %s22 = sphi 0, %s20
    %s23 = sphi 0, %s21
    %s24 = sphi 0, %s22
    %s25 = sphi 0, %s23
    %s37 = sphi 0, %s39
    %s40 = sphi 0, %s37
    %s41 = sphi 0, %s40
    %s57 = sphi 0, %s41
    %s61 = sphi 0, %s61
    %s63 = sphi 0, %s61
    %s64 = sphi 0, %s63
    %s78 = sphi 0, %s64
    %s82 = sphi 0, %s82
    %s84 = sphi 0, %s82
    %s85 = sphi 0, %s84
    %s99 = sphi 0, %s85
    %s103 = sphi 0, %s103
    %s105 = sphi 0, %s103
    %s106 = sphi 0, %s105
    %s120 = sphi 0, %s106
    %s124 = sphi 0, %s124
    %s126 = sphi 0, %s124
    %s127 = sphi 0, %s126
    %s141 = sphi 0, %s127
    %s147 = sphi 0, %s149
    %s150 = sphi 0, %s147
    %s151 = sphi 0, %s150
    %s167 = sphi 0, %s151
    %s173 = sphi 0, %s175
    %s176 = sphi 0, %s173
    %s177 = sphi 0, %s176
    %s193 = sphi 0, %s177
  $region4: #{spatial_self_attention.4} parent=0 // loop_header_branch
    %16 = sbr.rel (%p14) target = $region8
  $region5: #{spatial_self_attention.4} parent=0 // loop_body
    %s18 = ssub.s32 %s13, 1
    %s19 = ssub.s32 %s13, 2
    %s26 = sadd.s32 1, %s21
    %p27 = scmp.ge.s32.totalorder %s26, 1
    %s28 = scalar_select %p27, 0, %s26
    %s29 = sadd.s32 1, %s20
    %s30 = scalar_select %p27, %s29, %s20
    %p31 = scmp.ge.s32.totalorder %s30, 2
    %s32 = scalar_select %p31, 0, %s30
    %s33 = ssub.s32 %s20, %s32
    %s34 = ssub.s32 %s21, %s28
    %s35 = sor.u32 %s33, %s34
    %p36 = scmp.eq.s32.totalorder %s35, 0
    %s38 = sadd.s32 %s37, 1
    %s39 = scalar_select %p36, %s37, %s38
    %p42 = pneg %p36
    %p43 = scmp.eq.s32.totalorder %s13, 1
    %p44 = por %p42, %p43
    %p45 = scmp.ne.s32.totalorder %s37, %s40
    %p46 = scmp.eq.s32.totalorder %s13, 0
    %p47 = por %p45, %p46
    %p48 = scmp.ne.s32.totalorder %s37, %s40
    %p49 = scmp.eq.s32.totalorder %s18, 1
    %p50 = por %p48, %p49
    %p51 = scmp.ne.s32.totalorder %s40, %s41
    %p52 = scmp.eq.s32.totalorder %s18, 0
    %p53 = por %p51, %p52
    %p54 = scmp.ne.s32.totalorder %s40, %s41
    %p55 = scmp.eq.s32.totalorder %s19, 1
    %p56 = por %p54, %p55
    %p58 = scmp.ne.s32.totalorder %s41, %s57
    %p59 = scmp.eq.s32.totalorder %s19, 0
    %p60 = por %p58, %p59
    %s62 = sadd.s32 %s61, 1
    %p65 = scmp.eq.s32.totalorder %s13, 1
    %p66 = scmp.ne.s32.totalorder %s61, %s63
    %p67 = scmp.eq.s32.totalorder %s13, 0
    %p68 = por %p66, %p67
    %p69 = scmp.ne.s32.totalorder %s61, %s63
    %p70 = scmp.eq.s32.totalorder %s18, 1
    %p71 = por %p69, %p70
    %p72 = scmp.ne.s32.totalorder %s63, %s64
    %p73 = scmp.eq.s32.totalorder %s18, 0
    %p74 = por %p72, %p73
    %p75 = scmp.ne.s32.totalorder %s63, %s64
    %p76 = scmp.eq.s32.totalorder %s19, 1
    %p77 = por %p75, %p76
    %p79 = scmp.ne.s32.totalorder %s64, %s78
    %p80 = scmp.eq.s32.totalorder %s19, 0
    %p81 = por %p79, %p80
    %s83 = sadd.s32 %s82, 1
    %p86 = scmp.eq.s32.totalorder %s13, 1
    %p87 = scmp.ne.s32.totalorder %s82, %s84
    %p88 = scmp.eq.s32.totalorder %s13, 0
    %p89 = por %p87, %p88
    %p90 = scmp.ne.s32.totalorder %s82, %s84
    %p91 = scmp.eq.s32.totalorder %s18, 1
    %p92 = por %p90, %p91
    %p93 = scmp.ne.s32.totalorder %s84, %s85
    %p94 = scmp.eq.s32.totalorder %s18, 0
    %p95 = por %p93, %p94
    %p96 = scmp.ne.s32.totalorder %s84, %s85
    %p97 = scmp.eq.s32.totalorder %s19, 1
    %p98 = por %p96, %p97
    %p100 = scmp.ne.s32.totalorder %s85, %s99
    %p101 = scmp.eq.s32.totalorder %s19, 0
    %p102 = por %p100, %p101
    %s104 = sadd.s32 %s103, 1
    %p107 = scmp.eq.s32.totalorder %s13, 1
    %p108 = scmp.ne.s32.totalorder %s103, %s105
    %p109 = scmp.eq.s32.totalorder %s13, 0
    %p110 = por %p108, %p109
    %p111 = scmp.ne.s32.totalorder %s103, %s105
    %p112 = scmp.eq.s32.totalorder %s18, 1
    %p113 = por %p111, %p112
    %p114 = scmp.ne.s32.totalorder %s105, %s106
    %p115 = scmp.eq.s32.totalorder %s18, 0
    %p116 = por %p114, %p115
    %p117 = scmp.ne.s32.totalorder %s105, %s106
    %p118 = scmp.eq.s32.totalorder %s19, 1
    %p119 = por %p117, %p118
    %p121 = scmp.ne.s32.totalorder %s106, %s120
    %p122 = scmp.eq.s32.totalorder %s19, 0
    %p123 = por %p121, %p122
    %s125 = sadd.s32 %s124, 1
    %p128 = scmp.eq.s32.totalorder %s13, 1
    %p129 = scmp.ne.s32.totalorder %s124, %s126
    %p130 = scmp.eq.s32.totalorder %s13, 0
    %p131 = por %p129, %p130
    %p132 = scmp.ne.s32.totalorder %s124, %s126
    %p133 = scmp.eq.s32.totalorder %s18, 1
    %p134 = por %p132, %p133
    %p135 = scmp.ne.s32.totalorder %s126, %s127
    %p136 = scmp.eq.s32.totalorder %s18, 0
    %p137 = por %p135, %p136
    %p138 = scmp.ne.s32.totalorder %s126, %s127
    %p139 = scmp.eq.s32.totalorder %s19, 1
    %p140 = por %p138, %p139
    %p142 = scmp.ne.s32.totalorder %s127, %s141
    %p143 = scmp.eq.s32.totalorder %s19, 0
    %p144 = por %p142, %p143
    %s145 = ssub.s32 %s20, %s32
    %p146 = scmp.eq.s32.totalorder %s145, 0
    %s148 = sadd.s32 %s147, 1
    %s149 = scalar_select %p146, %s147, %s148
    %p152 = pneg %p146
    %p153 = scmp.eq.s32.totalorder %s13, 1
    %p154 = por %p152, %p153
    %p155 = scmp.ne.s32.totalorder %s147, %s150
    %p156 = scmp.eq.s32.totalorder %s13, 0
    %p157 = por %p155, %p156
    %p158 = scmp.ne.s32.totalorder %s147, %s150
    %p159 = scmp.eq.s32.totalorder %s18, 1
    %p160 = por %p158, %p159
    %p161 = scmp.ne.s32.totalorder %s150, %s151
    %p162 = scmp.eq.s32.totalorder %s18, 0
    %p163 = por %p161, %p162
    %p164 = scmp.ne.s32.totalorder %s150, %s151
    %p165 = scmp.eq.s32.totalorder %s19, 1
    %p166 = por %p164, %p165
    %p168 = scmp.ne.s32.totalorder %s151, %s167
    %p169 = scmp.eq.s32.totalorder %s19, 0
    %p170 = por %p168, %p169
    %s171 = ssub.s32 %s20, %s32
    %p172 = scmp.eq.s32.totalorder %s171, 0
    %s174 = sadd.s32 %s173, 1
    %s175 = scalar_select %p172, %s173, %s174
    %p178 = pneg %p172
    %p179 = scmp.eq.s32.totalorder %s13, 1
    %p180 = por %p178, %p179
    %p181 = scmp.ne.s32.totalorder %s173, %s176
    %p182 = scmp.eq.s32.totalorder %s13, 0
    %p183 = por %p181, %p182
    %p184 = scmp.ne.s32.totalorder %s173, %s176
    %p185 = scmp.eq.s32.totalorder %s18, 1
    %p186 = por %p184, %p185
    %p187 = scmp.ne.s32.totalorder %s176, %s177
    %p188 = scmp.eq.s32.totalorder %s18, 0
    %p189 = por %p187, %p188
    %p190 = scmp.ne.s32.totalorder %s176, %s177
    %p191 = scmp.eq.s32.totalorder %s19, 1
    %p192 = por %p190, %p191
    %p194 = scmp.ne.s32.totalorder %s177, %s193
    %p195 = scmp.eq.s32.totalorder %s19, 0
    %p196 = por %p194, %p195
    %p197 = scmp.le.s32.totalorder 1, %s13
    %p198 = scmp.lt.s32.totalorder %s13, 3
    %p199 = pnand %p197, %p198
    %p200 = pneg %p199
    // Predicated region
    $region9: #{spatial_self_attention.4} parent=5 // pred_check
      _
    $region10: #{spatial_self_attention.4} parent=5 // pred_check_branch
      %202 = sbr.rel (%p199) target = $region12
    $region11: #{spatial_self_attention.4} parent=5 // pred_region
      %s203 = ssub.s32 %s13, 1
      // Predicated region
      $region13: #{spatial_self_attention.4} parent=11 // pred_check
        %p204 = pneg %p74
      $region14: #{spatial_self_attention.4} parent=11 // pred_check_branch
        %206 = sbr.rel (%p204) target = $region16
      $region15: #{spatial_self_attention.4} parent=11 // pred_region
        _
      $region16: #{spatial_self_attention.4} parent=11 // pred_fallthru
        _
      // Predicated region
      $region17: #{spatial_self_attention.4} parent=11 // pred_check
        %p207 = pneg %p95
      $region18: #{spatial_self_attention.4} parent=11 // pred_check_branch
        %209 = sbr.rel (%p207) target = $region20
      $region19: #{spatial_self_attention.4} parent=11 // pred_region
        _
      $region20: #{spatial_self_attention.4} parent=11 // pred_fallthru
        _
      // Predicated region
      $region21: #{spatial_self_attention.4} parent=11 // pred_check
        %p210 = pneg %p116
      $region22: #{spatial_self_attention.4} parent=11 // pred_check_branch
        %212 = sbr.rel (%p210) target = $region24
      $region23: #{spatial_self_attention.4} parent=11 // pred_region
        _
      $region24: #{spatial_self_attention.4} parent=11 // pred_fallthru
        _
      // Predicated region
      $region25: #{spatial_self_attention.4} parent=11 // pred_check
        %p213 = pneg %p137
      $region26: #{spatial_self_attention.4} parent=11 // pred_check_branch
        %215 = sbr.rel (%p213) target = $region28
      $region27: #{spatial_self_attention.4} parent=11 // pred_region
        _
      $region28: #{spatial_self_attention.4} parent=11 // pred_fallthru
        _
    $region12: #{spatial_self_attention.4} parent=5 // pred_fallthru
      _
    %p216 = scmp.lt.s32.totalorder %s13, 2
    // Predicated region
    $region29: #{spatial_self_attention.4} parent=5 // pred_check
      %p217 = pneg %p216
    $region30: #{spatial_self_attention.4} parent=5 // pred_check_branch
      %219 = sbr.rel (%p217) target = $region32
    $region31: #{spatial_self_attention.4} parent=5 // pred_region
      // Predicated region
      $region33: #{spatial_self_attention.4} parent=31 // pred_check
        %p220 = pneg %p47
      $region34: #{spatial_self_attention.4} parent=31 // pred_check_branch
        %222 = sbr.rel (%p220) target = $region36
      $region35: #{spatial_self_attention.4} parent=31 // pred_region
        %p223 = scmp.lt.s32.totalorder %s20, 1
        %s224 = scalar_select %p223, %s20, 1
        %p225 = scmp.lt.s32.totalorder %s21, 0
        %s226 = scalar_select %p225, %s21, 0
        %s227 = smul.addr %s224, 16
        %s228 = sadd.s32 %s226, %s227
        %s229 = smul.addr %s228, 8
        %s230 = scalar_lea.vmem %s0, %s229
      $region36: #{spatial_self_attention.4} parent=31 // pred_fallthru
        _
    $region32: #{spatial_self_attention.4} parent=5 // pred_fallthru
      _
    %p231 = scmp.le.s32.totalorder 1, %s13
    %p232 = scmp.lt.s32.totalorder %s13, 3
    %p233 = pnand %p231, %p232
    %p234 = pneg %p233
    // Predicated region
    $region37: #{spatial_self_attention.4} parent=5 // pred_check
      _
    $region38: #{spatial_self_attention.4} parent=5 // pred_check_branch
      %236 = sbr.rel (%p233) target = $region40
    $region39: #{spatial_self_attention.4} parent=5 // pred_region
      %s237 = ssub.s32 %s13, 1
      %p238 = scmp.lt.s32.totalorder %s22, 1
      %s239 = scalar_select %p238, %s22, 1
      %p240 = scmp.lt.s32.totalorder %s23, 0
      %s241 = scalar_select %p240, %s23, 0
      %s242 = smul.addr %s239, 16
      %s243 = sadd.s32 %s241, %s242
      %s244 = smul.addr %s243, 8
      %s245 = scalar_lea.vmem %s0, %s244
      %p246 = pneg %p53
      %p247 = pneg %p50
      %p248 = pneg %p74
      %p249 = pneg %p71
      %p250 = pneg %p95
      %p251 = pneg %p92
      %p252 = pneg %p116
      %p253 = pneg %p113
      %p254 = pneg %p137
      %p255 = pneg %p134
      %p256 = pneg %p163
      %p257 = pneg %p160
      %p258 = scmp.lt.s32.totalorder %s22, 1
      %s259 = scalar_select %p258, %s22, 1
      %s260 = smul.addr %s259, 16
      %s261 = smul.addr %s260, 8
      %s262 = scalar_lea.vmem %s5, %s261
      %p263 = pneg %p189
      %p264 = pneg %p186
      %p265 = scmp.lt.s32.totalorder %s22, 1
      %s266 = scalar_select %p265, %s22, 1
      %s267 = smul.addr %s266, 16
      %s268 = smul.addr %s267, 8
      %s269 = scalar_lea.vmem %s6, %s268
      %p270 = scmp.lt.s32.totalorder %s22, 1
      %s271 = scalar_select %p270, %s22, 1
      %p272 = scmp.lt.s32.totalorder %s23, 0
      %s273 = scalar_select %p272, %s23, 0
      %s274 = smul.addr %s271, 16
      %s275 = sadd.s32 %s273, %s274
      %s276 = smul.addr %s275, 8
      %s277 = scalar_lea.vmem %s0, %s276
      %p278 = scmp.lt.s32.totalorder %s22, 1
      %s279 = scalar_select %p278, %s22, 1
      %s280 = smul.addr %s279, 16
      %s281 = smul.addr %s280, 8
      %s282 = scalar_lea.vmem %s5, %s281
      %p283 = scmp.lt.s32.totalorder %s22, 1
      %s284 = scalar_select %p283, %s22, 1
      %s285 = smul.addr %s284, 16
      %s286 = smul.addr %s285, 8
      %s287 = scalar_lea.vmem %s6, %s286
      %p288 = scmp.eq.s32.totalorder %s23, 0
      // Predicated region
      $region41: #{spatial_self_attention.4} parent=39 // pred_check
        %p289 = pneg %p288
      $region42: #{spatial_self_attention.4} parent=39 // pred_check_branch
        %291 = sbr.rel (%p289) target = $region44
      $region43: #{spatial_self_attention.4} parent=39 // pred_region
        %vm292 = vcmask 7168
        %293 = vst.msk [vmem:[#allocation2] sm:$0xff] %vm292, 0.0
        %294 = vst.msk [vmem:[#allocation2 + $0x8] sm:$0xff] %vm292, 0.0
        %295 = vst.msk [vmem:[#allocation2 + $0x10] sm:$0xff] %vm292, 0.0
        %296 = vst.msk [vmem:[#allocation2 + $0x18] sm:$0xff] %vm292, 0.0
        %297 = vst.msk [vmem:[#allocation2 + $0x20] sm:$0xff] %vm292, 0.0
        %298 = vst.msk [vmem:[#allocation2 + $0x28] sm:$0xff] %vm292, 0.0
        %299 = vst.msk [vmem:[#allocation2 + $0x30] sm:$0xff] %vm292, 0.0
        %300 = vst.msk [vmem:[#allocation2 + $0x38] sm:$0xff] %vm292, 0.0
        %301 = vst.msk [vmem:[#allocation2 + $0x40] sm:$0xff] %vm292, 0.0
        %302 = vst.msk [vmem:[#allocation2 + $0x48] sm:$0xff] %vm292, 0.0
        %303 = vst.msk [vmem:[#allocation2 + $0x50] sm:$0xff] %vm292, 0.0
        %304 = vst.msk [vmem:[#allocation2 + $0x58] sm:$0xff] %vm292, 0.0
        %305 = vst.msk [vmem:[#allocation2 + $0x60] sm:$0xff] %vm292, 0.0
        %306 = vst.msk [vmem:[#allocation2 + $0x68] sm:$0xff] %vm292, 0.0
        %307 = vst.msk [vmem:[#allocation2 + $0x70] sm:$0xff] %vm292, 0.0
        %308 = vst.msk [vmem:[#allocation2 + $0x78] sm:$0xff] %vm292, 0.0
        %309 = vst.msk [vmem:[#allocation3] sm:$0xff] %vm292, 0.0
        %310 = vst.msk [vmem:[#allocation3 + $0x8] sm:$0xff] %vm292, 0.0
        %311 = vst.msk [vmem:[#allocation3 + $0x10] sm:$0xff] %vm292, 0.0
        %312 = vst.msk [vmem:[#allocation3 + $0x18] sm:$0xff] %vm292, 0.0
        %313 = vst.msk [vmem:[#allocation3 + $0x20] sm:$0xff] %vm292, 0.0
        %314 = vst.msk [vmem:[#allocation3 + $0x28] sm:$0xff] %vm292, 0.0
        %315 = vst.msk [vmem:[#allocation3 + $0x30] sm:$0xff] %vm292, 0.0
        %316 = vst.msk [vmem:[#allocation3 + $0x38] sm:$0xff] %vm292, 0.0
        %317 = vst.msk [vmem:[#allocation3 + $0x40] sm:$0xff] %vm292, 0.0
        %318 = vst.msk [vmem:[#allocation3 + $0x48] sm:$0xff] %vm292, 0.0
        %319 = vst.msk [vmem:[#allocation3 + $0x50] sm:$0xff] %vm292, 0.0
        %320 = vst.msk [vmem:[#allocation3 + $0x58] sm:$0xff] %vm292, 0.0
        %321 = vst.msk [vmem:[#allocation3 + $0x60] sm:$0xff] %vm292, 0.0
        %322 = vst.msk [vmem:[#allocation3 + $0x68] sm:$0xff] %vm292, 0.0
        %323 = vst.msk [vmem:[#allocation3 + $0x70] sm:$0xff] %vm292, 0.0
        %324 = vst.msk [vmem:[#allocation3 + $0x78] sm:$0xff] %vm292, 0.0
      $region44: #{spatial_self_attention.4} parent=39 // pred_fallthru
        _
      %v325 = vld [vmem:[%s277] sm:$0xff]
      %v326 = vld [vmem:[%s277 + $0x8] sm:$0xff]
      %v327 = vld [vmem:[%s277 + $0x10] sm:$0xff]
      %v328 = vld [vmem:[%s277 + $0x18] sm:$0xff]
      %v329 = vld [vmem:[%s277 + $0x20] sm:$0xff]
      %v330 = vld [vmem:[%s277 + $0x28] sm:$0xff]
      %v331 = vld [vmem:[%s277 + $0x30] sm:$0xff]
      %v332 = vld [vmem:[%s277 + $0x38] sm:$0xff]
      %v333 = vld [vmem:[%s277 + $0x40] sm:$0xff]
      %v334 = vld [vmem:[%s277 + $0x48] sm:$0xff]
      %v335 = vld [vmem:[%s277 + $0x50] sm:$0xff]
      %v336 = vld [vmem:[%s277 + $0x58] sm:$0xff]
      %v337 = vld [vmem:[%s277 + $0x60] sm:$0xff]
      %v338 = vld [vmem:[%s277 + $0x68] sm:$0xff]
      %v339 = vld [vmem:[%s277 + $0x70] sm:$0xff]
      %v340 = vld [vmem:[%s277 + $0x78] sm:$0xff]
      %v341 = vld [vmem:[#allocation2] sm:$0xff]
      %v342 = vld [vmem:[#allocation2 + $0x8] sm:$0xff]
      %v343 = vld [vmem:[#allocation2 + $0x10] sm:$0xff]
      %v344 = vld [vmem:[#allocation2 + $0x18] sm:$0xff]
      %v345 = vld [vmem:[#allocation2 + $0x20] sm:$0xff]
      %v346 = vld [vmem:[#allocation2 + $0x28] sm:$0xff]
      %v347 = vld [vmem:[#allocation2 + $0x30] sm:$0xff]
      %v348 = vld [vmem:[#allocation2 + $0x38] sm:$0xff]
      %v349 = vld [vmem:[#allocation2 + $0x40] sm:$0xff]
      %v350 = vld [vmem:[#allocation2 + $0x48] sm:$0xff]
      %v351 = vld [vmem:[#allocation2 + $0x50] sm:$0xff]
      %v352 = vld [vmem:[#allocation2 + $0x58] sm:$0xff]
      %v353 = vld [vmem:[#allocation2 + $0x60] sm:$0xff]
      %v354 = vld [vmem:[#allocation2 + $0x68] sm:$0xff]
      %v355 = vld [vmem:[#allocation2 + $0x70] sm:$0xff]
      %v356 = vld [vmem:[#allocation2 + $0x78] sm:$0xff]
      %vm357 = vcmask 523264
      %v358 = vsel %vm357, %v325, 0.0
      %359 = vadd.xlane.f32.xlu0 %v358
      %v360 = vpop.xlane.xlu0 %359
      %v361 = vsel %vm357, %v326, 0.0
      %362 = vadd.xlane.f32.xlu0 %v361
      %v363 = vpop.xlane.xlu0 %362
      %v364 = vsel %vm357, %v327, 0.0
      %365 = vadd.xlane.f32.xlu0 %v364
      %v366 = vpop.xlane.xlu0 %365
      %v367 = vsel %vm357, %v328, 0.0
      %368 = vadd.xlane.f32.xlu0 %v367
      %v369 = vpop.xlane.xlu0 %368
      %v370 = vsel %vm357, %v329, 0.0
      %371 = vadd.xlane.f32.xlu0 %v370
      %v372 = vpop.xlane.xlu0 %371
      %v373 = vsel %vm357, %v330, 0.0
      %374 = vadd.xlane.f32.xlu0 %v373
      %v375 = vpop.xlane.xlu0 %374
      %v376 = vsel %vm357, %v331, 0.0
      %377 = vadd.xlane.f32.xlu0 %v376
      %v378 = vpop.xlane.xlu0 %377
      %v379 = vsel %vm357, %v332, 0.0
      %380 = vadd.xlane.f32.xlu0 %v379
      %v381 = vpop.xlane.xlu0 %380
      %v382 = vsel %vm357, %v333, 0.0
      %383 = vadd.xlane.f32.xlu0 %v382
      %v384 = vpop.xlane.xlu0 %383
      %v385 = vsel %vm357, %v334, 0.0
      %386 = vadd.xlane.f32.xlu0 %v385
      %v387 = vpop.xlane.xlu0 %386
      %v388 = vsel %vm357, %v335, 0.0
      %389 = vadd.xlane.f32.xlu0 %v388
      %v390 = vpop.xlane.xlu0 %389
      %v391 = vsel %vm357, %v336, 0.0
      %392 = vadd.xlane.f32.xlu0 %v391
      %v393 = vpop.xlane.xlu0 %392
      %v394 = vsel %vm357, %v337, 0.0
      %395 = vadd.xlane.f32.xlu0 %v394
      %v396 = vpop.xlane.xlu0 %395
      %v397 = vsel %vm357, %v338, 0.0
      %398 = vadd.xlane.f32.xlu0 %v397
      %v399 = vpop.xlane.xlu0 %398
      %v400 = vsel %vm357, %v339, 0.0
      %401 = vadd.xlane.f32.xlu0 %v400
      %v402 = vpop.xlane.xlu0 %401
      %v403 = vsel %vm357, %v340, 0.0
      %404 = vadd.xlane.f32.xlu0 %v403
      %v405 = vpop.xlane.xlu0 %404
      %v406 = vadd.f32 %v341, %v360
      %v407 = vadd.f32 %v342, %v363
      %v408 = vadd.f32 %v343, %v366
      %v409 = vadd.f32 %v344, %v369
      %v410 = vadd.f32 %v345, %v372
      %v411 = vadd.f32 %v346, %v375
      %v412 = vadd.f32 %v347, %v378
      %v413 = vadd.f32 %v348, %v381
      %v414 = vadd.f32 %v349, %v384
      %v415 = vadd.f32 %v350, %v387
      %v416 = vadd.f32 %v351, %v390
      %v417 = vadd.f32 %v352, %v393
      %v418 = vadd.f32 %v353, %v396
      %v419 = vadd.f32 %v354, %v399
      %v420 = vadd.f32 %v355, %v402
      %v421 = vadd.f32 %v356, %v405
      %vm422 = vcmask 7168
      %423 = vst.msk [vmem:[#allocation2] sm:$0xff] %vm422, %v406
      %424 = vst.msk [vmem:[#allocation2 + $0x8] sm:$0xff] %vm422, %v407
      %425 = vst.msk [vmem:[#allocation2 + $0x10] sm:$0xff] %vm422, %v408
      %426 = vst.msk [vmem:[#allocation2 + $0x18] sm:$0xff] %vm422, %v409
      %427 = vst.msk [vmem:[#allocation2 + $0x20] sm:$0xff] %vm422, %v410
      %428 = vst.msk [vmem:[#allocation2 + $0x28] sm:$0xff] %vm422, %v411
      %429 = vst.msk [vmem:[#allocation2 + $0x30] sm:$0xff] %vm422, %v412
      %430 = vst.msk [vmem:[#allocation2 + $0x38] sm:$0xff] %vm422, %v413
      %431 = vst.msk [vmem:[#allocation2 + $0x40] sm:$0xff] %vm422, %v414
      %432 = vst.msk [vmem:[#allocation2 + $0x48] sm:$0xff] %vm422, %v415
      %433 = vst.msk [vmem:[#allocation2 + $0x50] sm:$0xff] %vm422, %v416
      %434 = vst.msk [vmem:[#allocation2 + $0x58] sm:$0xff] %vm422, %v417
      %435 = vst.msk [vmem:[#allocation2 + $0x60] sm:$0xff] %vm422, %v418
      %436 = vst.msk [vmem:[#allocation2 + $0x68] sm:$0xff] %vm422, %v419
      %437 = vst.msk [vmem:[#allocation2 + $0x70] sm:$0xff] %vm422, %v420
      %438 = vst.msk [vmem:[#allocation2 + $0x78] sm:$0xff] %vm422, %v421
      %v439 = vld [vmem:[#allocation3] sm:$0xff]
      %v440 = vld [vmem:[#allocation3 + $0x8] sm:$0xff]
      %v441 = vld [vmem:[#allocation3 + $0x10] sm:$0xff]
      %v442 = vld [vmem:[#allocation3 + $0x18] sm:$0xff]
      %v443 = vld [vmem:[#allocation3 + $0x20] sm:$0xff]
      %v444 = vld [vmem:[#allocation3 + $0x28] sm:$0xff]
      %v445 = vld [vmem:[#allocation3 + $0x30] sm:$0xff]
      %v446 = vld [vmem:[#allocation3 + $0x38] sm:$0xff]
      %v447 = vld [vmem:[#allocation3 + $0x40] sm:$0xff]
      %v448 = vld [vmem:[#allocation3 + $0x48] sm:$0xff]
      %v449 = vld [vmem:[#allocation3 + $0x50] sm:$0xff]
      %v450 = vld [vmem:[#allocation3 + $0x58] sm:$0xff]
      %v451 = vld [vmem:[#allocation3 + $0x60] sm:$0xff]
      %v452 = vld [vmem:[#allocation3 + $0x68] sm:$0xff]
      %v453 = vld [vmem:[#allocation3 + $0x70] sm:$0xff]
      %v454 = vld [vmem:[#allocation3 + $0x78] sm:$0xff]
      %v455 = vmul.f32 %v325, %v325
      %v456 = vmul.f32 %v326, %v326
      %v457 = vmul.f32 %v327, %v327
      %v458 = vmul.f32 %v328, %v328
      %v459 = vmul.f32 %v329, %v329
      %v460 = vmul.f32 %v330, %v330
      %v461 = vmul.f32 %v331, %v331
      %v462 = vmul.f32 %v332, %v332
      %v463 = vmul.f32 %v333, %v333
      %v464 = vmul.f32 %v334, %v334
      %v465 = vmul.f32 %v335, %v335
      %v466 = vmul.f32 %v336, %v336
      %v467 = vmul.f32 %v337, %v337
      %v468 = vmul.f32 %v338, %v338
      %v469 = vmul.f32 %v339, %v339
      %v470 = vmul.f32 %v340, %v340
      %v471 = vsel %vm357, %v455, 0.0
      %472 = vadd.xlane.f32.xlu0 %v471
      %v473 = vpop.xlane.xlu0 %472
      %v474 = vsel %vm357, %v456, 0.0
      %475 = vadd.xlane.f32.xlu0 %v474
      %v476 = vpop.xlane.xlu0 %475
      %v477 = vsel %vm357, %v457, 0.0
      %478 = vadd.xlane.f32.xlu0 %v477
      %v479 = vpop.xlane.xlu0 %478
      %v480 = vsel %vm357, %v458, 0.0
      %481 = vadd.xlane.f32.xlu0 %v480
      %v482 = vpop.xlane.xlu0 %481
      %v483 = vsel %vm357, %v459, 0.0
      %484 = vadd.xlane.f32.xlu0 %v483
      %v485 = vpop.xlane.xlu0 %484
      %v486 = vsel %vm357, %v460, 0.0
      %487 = vadd.xlane.f32.xlu0 %v486
      %v488 = vpop.xlane.xlu0 %487
      %v489 = vsel %vm357, %v461, 0.0
      %490 = vadd.xlane.f32.xlu0 %v489
      %v491 = vpop.xlane.xlu0 %490
      %v492 = vsel %vm357, %v462, 0.0
      %493 = vadd.xlane.f32.xlu0 %v492
      %v494 = vpop.xlane.xlu0 %493
      %v495 = vsel %vm357, %v463, 0.0
      %496 = vadd.xlane.f32.xlu0 %v495
      %v497 = vpop.xlane.xlu0 %496
      %v498 = vsel %vm357, %v464, 0.0
      %499 = vadd.xlane.f32.xlu0 %v498
      %v500 = vpop.xlane.xlu0 %499
      %v501 = vsel %vm357, %v465, 0.0
      %502 = vadd.xlane.f32.xlu0 %v501
      %v503 = vpop.xlane.xlu0 %502
      %v504 = vsel %vm357, %v466, 0.0
      %505 = vadd.xlane.f32.xlu0 %v504
      %v506 = vpop.xlane.xlu0 %505
      %v507 = vsel %vm357, %v467, 0.0
      %508 = vadd.xlane.f32.xlu0 %v507
      %v509 = vpop.xlane.xlu0 %508
      %v510 = vsel %vm357, %v468, 0.0
      %511 = vadd.xlane.f32.xlu0 %v510
      %v512 = vpop.xlane.xlu0 %511
      %v513 = vsel %vm357, %v469, 0.0
      %514 = vadd.xlane.f32.xlu0 %v513
      %v515 = vpop.xlane.xlu0 %514
      %v516 = vsel %vm357, %v470, 0.0
      %517 = vadd.xlane.f32.xlu0 %v516
      %v518 = vpop.xlane.xlu0 %517
      %v519 = vadd.f32 %v439, %v473
      %v520 = vadd.f32 %v440, %v476
      %v521 = vadd.f32 %v441, %v479
      %v522 = vadd.f32 %v442, %v482
      %v523 = vadd.f32 %v443, %v485
      %v524 = vadd.f32 %v444, %v488
      %v525 = vadd.f32 %v445, %v491
      %v526 = vadd.f32 %v446, %v494
      %v527 = vadd.f32 %v447, %v497
      %v528 = vadd.f32 %v448, %v500
      %v529 = vadd.f32 %v449, %v503
      %v530 = vadd.f32 %v450, %v506
      %v531 = vadd.f32 %v451, %v509
      %v532 = vadd.f32 %v452, %v512
      %v533 = vadd.f32 %v453, %v515
      %v534 = vadd.f32 %v454, %v518
      %535 = vst.msk [vmem:[#allocation3] sm:$0xff] %vm422, %v519
      %536 = vst.msk [vmem:[#allocation3 + $0x8] sm:$0xff] %vm422, %v520
      %537 = vst.msk [vmem:[#allocation3 + $0x10] sm:$0xff] %vm422, %v521
      %538 = vst.msk [vmem:[#allocation3 + $0x18] sm:$0xff] %vm422, %v522
      %539 = vst.msk [vmem:[#allocation3 + $0x20] sm:$0xff] %vm422, %v523
      %540 = vst.msk [vmem:[#allocation3 + $0x28] sm:$0xff] %vm422, %v524
      %541 = vst.msk [vmem:[#allocation3 + $0x30] sm:$0xff] %vm422, %v525
      %542 = vst.msk [vmem:[#allocation3 + $0x38] sm:$0xff] %vm422, %v526
      %543 = vst.msk [vmem:[#allocation3 + $0x40] sm:$0xff] %vm422, %v527
      %544 = vst.msk [vmem:[#allocation3 + $0x48] sm:$0xff] %vm422, %v528
      %545 = vst.msk [vmem:[#allocation3 + $0x50] sm:$0xff] %vm422, %v529
      %546 = vst.msk [vmem:[#allocation3 + $0x58] sm:$0xff] %vm422, %v530
      %547 = vst.msk [vmem:[#allocation3 + $0x60] sm:$0xff] %vm422, %v531
      %548 = vst.msk [vmem:[#allocation3 + $0x68] sm:$0xff] %vm422, %v532
      %549 = vst.msk [vmem:[#allocation3 + $0x70] sm:$0xff] %vm422, %v533
      %550 = vst.msk [vmem:[#allocation3 + $0x78] sm:$0xff] %vm422, %v534
      // Predicated region
      $region45: #{spatial_self_attention.4} parent=39 // pred_check
        %p551 = pneg %p288
      $region46: #{spatial_self_attention.4} parent=39 // pred_check_branch
        %553 = sbr.rel (%p551) target = $region48
      $region47: #{spatial_self_attention.4} parent=39 // pred_region
        %v554 = vld [vmem:[%s3] sm:$0xff]
        %v555 = vld [vmem:[%s3 + $0x8] sm:$0xff]
        %v556 = vld [vmem:[%s3 + $0x10] sm:$0xff]
        %v557 = vld [vmem:[%s3 + $0x18] sm:$0xff]
        %v558 = vld [vmem:[%s3 + $0x20] sm:$0xff]
        %v559 = vld [vmem:[%s3 + $0x28] sm:$0xff]
        %v560 = vld [vmem:[%s3 + $0x30] sm:$0xff]
        %v561 = vld [vmem:[%s3 + $0x38] sm:$0xff]
        %v562 = vld [vmem:[%s3 + $0x40] sm:$0xff]
        %v563 = vld [vmem:[%s3 + $0x48] sm:$0xff]
        %v564 = vld [vmem:[%s3 + $0x50] sm:$0xff]
        %v565 = vld [vmem:[%s3 + $0x58] sm:$0xff]
        %v566 = vld [vmem:[%s3 + $0x60] sm:$0xff]
        %v567 = vld [vmem:[%s3 + $0x68] sm:$0xff]
        %v568 = vld [vmem:[%s3 + $0x70] sm:$0xff]
        %v569 = vld [vmem:[%s3 + $0x78] sm:$0xff]
        %v570 = vld [vmem:[%s4] sm:$0xff]
        %v571 = vld [vmem:[%s4 + $0x8] sm:$0xff]
        %v572 = vld [vmem:[%s4 + $0x10] sm:$0xff]
        %v573 = vld [vmem:[%s4 + $0x18] sm:$0xff]
        %v574 = vld [vmem:[#allocation2] sm:$0xff]
        %v575 = vld [vmem:[#allocation2 + $0x8] sm:$0xff]
        %v576 = vld [vmem:[#allocation2 + $0x10] sm:$0xff]
        %v577 = vld [vmem:[#allocation2 + $0x18] sm:$0xff]
        %v578 = vld [vmem:[#allocation2 + $0x20] sm:$0xff]
        %v579 = vld [vmem:[#allocation2 + $0x28] sm:$0xff]
        %v580 = vld [vmem:[#allocation2 + $0x30] sm:$0xff]
        %v581 = vld [vmem:[#allocation2 + $0x38] sm:$0xff]
        %v582 = vld [vmem:[#allocation2 + $0x40] sm:$0xff]
        %v583 = vld [vmem:[#allocation2 + $0x48] sm:$0xff]
        %v584 = vld [vmem:[#allocation2 + $0x50] sm:$0xff]
        %v585 = vld [vmem:[#allocation2 + $0x58] sm:$0xff]
        %v586 = vld [vmem:[#allocation2 + $0x60] sm:$0xff]
        %v587 = vld [vmem:[#allocation2 + $0x68] sm:$0xff]
        %v588 = vld [vmem:[#allocation2 + $0x70] sm:$0xff]
        %v589 = vld [vmem:[#allocation2 + $0x78] sm:$0xff]
        %590 = vmatpush.msra.mxu0 %v589
        %591 = vmatpush.msra.mxu0 %v588
        %592 = vmatpush.msra.mxu0 %v587
        %593 = vmatpush.msra.mxu0 %v586
        %594 = vmatpush.msra.mxu0 %v585
        %595 = vmatpush.msra.mxu0 %v584
        %596 = vmatpush.msra.mxu0 %v583
        %597 = vmatpush.msra.mxu0 %v582
        %598 = vmatpush.msra.mxu0 %v581
        %599 = vmatpush.msra.mxu0 %v580
        %600 = vmatpush.msra.mxu0 %v579
        %601 = vmatpush.msra.mxu0 %v578
        %602 = vmatpush.msra.mxu0 %v577
        %603 = vmatpush.msra.mxu0 %v576
        %604 = vmatpush.msra.mxu0 %v575
        %605 = vmatpush.msra.mxu0 %v574
        %606 = vmatmul.f32.gmra.mxu0 %v570
        %v607 = vpop.f32.mrf.mxu0
        %v608 = vadd.f32 0.0, %v607
        %609 = vmatmul.f32.gmra.mxu0 %v571
        %v610 = vpop.f32.mrf.mxu0
        %v611 = vadd.f32 0.0, %v610
        %612 = vmatmul.f32.gmra.mxu0 %v572
        %v613 = vpop.f32.mrf.mxu0
        %v614 = vadd.f32 0.0, %v613
        %615 = vmatmul.f32.gmra.mxu0 %v573
        %v616 = vpop.f32.mrf.mxu0
        %v617 = vadd.f32 0.0, %v616
        %618 = vdwg.mxu0
        %v619 = vld [vmem:[#allocation3] sm:$0xff]
        %v620 = vld [vmem:[#allocation3 + $0x8] sm:$0xff]
        %v621 = vld [vmem:[#allocation3 + $0x10] sm:$0xff]
        %v622 = vld [vmem:[#allocation3 + $0x18] sm:$0xff]
        %v623 = vld [vmem:[#allocation3 + $0x20] sm:$0xff]
        %v624 = vld [vmem:[#allocation3 + $0x28] sm:$0xff]
        %v625 = vld [vmem:[#allocation3 + $0x30] sm:$0xff]
        %v626 = vld [vmem:[#allocation3 + $0x38] sm:$0xff]
        %v627 = vld [vmem:[#allocation3 + $0x40] sm:$0xff]
        %v628 = vld [vmem:[#allocation3 + $0x48] sm:$0xff]
        %v629 = vld [vmem:[#allocation3 + $0x50] sm:$0xff]
        %v630 = vld [vmem:[#allocation3 + $0x58] sm:$0xff]
        %v631 = vld [vmem:[#allocation3 + $0x60] sm:$0xff]
        %v632 = vld [vmem:[#allocation3 + $0x68] sm:$0xff]
        %v633 = vld [vmem:[#allocation3 + $0x70] sm:$0xff]
        %v634 = vld [vmem:[#allocation3 + $0x78] sm:$0xff]
        %635 = vmatpush.msra.mxu0 %v634
        %636 = vmatpush.msra.mxu0 %v633
        %637 = vmatpush.msra.mxu0 %v632
        %638 = vmatpush.msra.mxu0 %v631
        %639 = vmatpush.msra.mxu0 %v630
        %640 = vmatpush.msra.mxu0 %v629
        %641 = vmatpush.msra.mxu0 %v628
        %642 = vmatpush.msra.mxu0 %v627
        %643 = vmatpush.msra.mxu0 %v626
        %644 = vmatpush.msra.mxu0 %v625
        %645 = vmatpush.msra.mxu0 %v624
        %646 = vmatpush.msra.mxu0 %v623
        %647 = vmatpush.msra.mxu0 %v622
        %648 = vmatpush.msra.mxu0 %v621
        %649 = vmatpush.msra.mxu0 %v620
        %650 = vmatpush.msra.mxu0 %v619
        %651 = vmatmul.f32.gmra.mxu0 %v570
        %v652 = vpop.f32.mrf.mxu0
        %v653 = vadd.f32 0.0, %v652
        %654 = vmatmul.f32.gmra.mxu0 %v571
        %v655 = vpop.f32.mrf.mxu0
        %v656 = vadd.f32 0.0, %v655
        %657 = vmatmul.f32.gmra.mxu0 %v572
        %v658 = vpop.f32.mrf.mxu0
        %v659 = vadd.f32 0.0, %v658
        %660 = vmatmul.f32.gmra.mxu0 %v573
        %v661 = vpop.f32.mrf.mxu0
        %v662 = vadd.f32 0.0, %v661
        %663 = vdwg.mxu0
        %v664 = vmul.f32 %v608, 0.00390625
        %v665 = vmul.f32 %v611, 0.00390625
        %v666 = vmul.f32 %v614, 0.00390625
        %v667 = vmul.f32 %v617, 0.00390625
        %v668 = vmul.f32 %v653, 0.00390625
        %v669 = vmul.f32 %v656, 0.00390625
        %v670 = vmul.f32 %v659, 0.00390625
        %v671 = vmul.f32 %v662, 0.00390625
        %v672 = vmul.f32 %v664, %v664
        %v673 = vmul.f32 %v665, %v665
        %v674 = vmul.f32 %v666, %v666
        %v675 = vmul.f32 %v667, %v667
        %v676 = vsub.f32 %v668, %v672
        %v677 = vsub.f32 %v669, %v673
        %v678 = vsub.f32 %v670, %v674
        %v679 = vsub.f32 %v671, %v675
        %v680 = vadd.f32 %v676, 1e-06
        %v681 = vadd.f32 %v677, 1e-06
        %v682 = vadd.f32 %v678, 1e-06
        %v683 = vadd.f32 %v679, 1e-06
        %v684 = vrsqrt.pop %v680
        %v685 = vmul.f32 %v684, %v680
        %v686 = vmul.f32 %v685, %v684
        %v687 = vmul.f32 0.5, %v686
        %v688 = vsub.f32 1.5, %v687
        %v689 = vmul.f32 %v684, %v688
        %vm690 = vweird.f32 %v680
        %vm691 = vweird.f32 %v684
        %vm692 = vmor %vm690, %vm691
        %v693 = vsel %vm692, %v684, %v689
        %v694 = vrsqrt.pop %v681
        %v695 = vmul.f32 %v694, %v681
        %v696 = vmul.f32 %v695, %v694
        %v697 = vmul.f32 0.5, %v696
        %v698 = vsub.f32 1.5, %v697
        %v699 = vmul.f32 %v694, %v698
        %vm700 = vweird.f32 %v681
        %vm701 = vweird.f32 %v694
        %vm702 = vmor %vm700, %vm701
        %v703 = vsel %vm702, %v694, %v699
        %v704 = vrsqrt.pop %v682
        %v705 = vmul.f32 %v704, %v682
        %v706 = vmul.f32 %v705, %v704
        %v707 = vmul.f32 0.5, %v706
        %v708 = vsub.f32 1.5, %v707
        %v709 = vmul.f32 %v704, %v708
        %vm710 = vweird.f32 %v682
        %vm711 = vweird.f32 %v704
        %vm712 = vmor %vm710, %vm711
        %v713 = vsel %vm712, %v704, %v709
        %v714 = vrsqrt.pop %v683
        %v715 = vmul.f32 %v714, %v683
        %v716 = vmul.f32 %v715, %v714
        %v717 = vmul.f32 0.5, %v716
        %v718 = vsub.f32 1.5, %v717
        %v719 = vmul.f32 %v714, %v718
        %vm720 = vweird.f32 %v683
        %vm721 = vweird.f32 %v714
        %vm722 = vmor %vm720, %vm721
        %v723 = vsel %vm722, %v714, %v719
        %vm724 = vcmask 261120
        %v726 = vsel %vm724, %v554, 0
        %v729 = vsel %vm724, %v555, 0
        %v732 = vsel %vm724, %v556, 0
        %v735 = vsel %vm724, %v557, 0
        %v738 = vsel %vm724, %v558, 0
        %v741 = vsel %vm724, %v559, 0
        %v744 = vsel %vm724, %v560, 0
        %v747 = vsel %vm724, %v561, 0
        %v750 = vsel %vm724, %v562, 0
        %v753 = vsel %vm724, %v563, 0
        %v756 = vsel %vm724, %v564, 0
        %v759 = vsel %vm724, %v565, 0
        %v762 = vsel %vm724, %v566, 0
        %v765 = vsel %vm724, %v567, 0
        %v768 = vsel %vm724, %v568, 0
        %v771 = vsel %vm724, %v569, 0
        %773 = vmatpush.msra.mxu0 0.0
        %774 = vmatpush.msra.mxu0 0.0
        %775 = vmatpush.msra.mxu0 0.0
        %776 = vmatpush.msra.mxu0 0.0
        %777 = vmatpush.msra.mxu0 0.0
        %778 = vmatpush.msra.mxu0 0.0
        %779 = vmatpush.msra.mxu0 0.0
        %780 = vmatpush.msra.mxu0 0.0
        %781 = vmatpush.msra.mxu0 0.0
        %782 = vmatpush.msra.mxu0 0.0
        %783 = vmatpush.msra.mxu0 0.0
        %784 = vmatpush.msra.mxu0 0.0
        %785 = vmatpush.msra.mxu0 %v667
        %786 = vmatpush.msra.mxu0 %v666
        %787 = vmatpush.msra.mxu0 %v665
        %788 = vmatpush.msra.mxu0 %v664
        %789 = vmatmul.f32.gmra.mxu0 %v726
        %v790 = vpop.f32.mrf.mxu0
        %v791 = vadd.f32 0.0, %v790
        %792 = vmatmul.f32.gmra.mxu0 %v729
        %v793 = vpop.f32.mrf.mxu0
        %v794 = vadd.f32 0.0, %v793
        %795 = vmatmul.f32.gmra.mxu0 %v732
        %v796 = vpop.f32.mrf.mxu0
        %v797 = vadd.f32 0.0, %v796
        %798 = vmatmul.f32.gmra.mxu0 %v735
        %v799 = vpop.f32.mrf.mxu0
        %v800 = vadd.f32 0.0, %v799
        %801 = vmatmul.f32.gmra.mxu0 %v738
        %v802 = vpop.f32.mrf.mxu0
        %v803 = vadd.f32 0.0, %v802
        %804 = vmatmul.f32.gmra.mxu0 %v741
        %v805 = vpop.f32.mrf.mxu0
        %v806 = vadd.f32 0.0, %v805
        %807 = vmatmul.f32.gmra.mxu0 %v744
        %v808 = vpop.f32.mrf.mxu0
        %v809 = vadd.f32 0.0, %v808
        %810 = vmatmul.f32.gmra.mxu0 %v747
        %v811 = vpop.f32.mrf.mxu0
        %v812 = vadd.f32 0.0, %v811
        %813 = vmatmul.f32.gmra.mxu0 %v750
        %v814 = vpop.f32.mrf.mxu0
        %v815 = vadd.f32 0.0, %v814
        %816 = vmatmul.f32.gmra.mxu0 %v753
        %v817 = vpop.f32.mrf.mxu0
        %v818 = vadd.f32 0.0, %v817
        %819 = vmatmul.f32.gmra.mxu0 %v756
        %v820 = vpop.f32.mrf.mxu0
        %v821 = vadd.f32 0.0, %v820
        %822 = vmatmul.f32.gmra.mxu0 %v759
        %v823 = vpop.f32.mrf.mxu0
        %v824 = vadd.f32 0.0, %v823
        %825 = vmatmul.f32.gmra.mxu0 %v762
        %v826 = vpop.f32.mrf.mxu0
        %v827 = vadd.f32 0.0, %v826
        %828 = vmatmul.f32.gmra.mxu0 %v765
        %v829 = vpop.f32.mrf.mxu0
        %v830 = vadd.f32 0.0, %v829
        %831 = vmatmul.f32.gmra.mxu0 %v768
        %v832 = vpop.f32.mrf.mxu0
        %v833 = vadd.f32 0.0, %v832
        %834 = vmatmul.f32.gmra.mxu0 %v771
        %v835 = vpop.f32.mrf.mxu0
        %v836 = vadd.f32 0.0, %v835
        %837 = vdwg.mxu0
        %838 = vmatpush.msra.mxu0 0.0
        %839 = vmatpush.msra.mxu0 0.0
        %840 = vmatpush.msra.mxu0 0.0
        %841 = vmatpush.msra.mxu0 0.0
        %842 = vmatpush.msra.mxu0 0.0
        %843 = vmatpush.msra.mxu0 0.0
        %844 = vmatpush.msra.mxu0 0.0
        %845 = vmatpush.msra.mxu0 0.0
        %846 = vmatpush.msra.mxu0 0.0
        %847 = vmatpush.msra.mxu0 0.0
        %848 = vmatpush.msra.mxu0 0.0
        %849 = vmatpush.msra.mxu0 0.0
        %850 = vmatpush.msra.mxu0 %v723
        %851 = vmatpush.msra.mxu0 %v713
        %852 = vmatpush.msra.mxu0 %v703
        %853 = vmatpush.msra.mxu0 %v693
        %854 = vmatmul.f32.gmra.mxu0 %v726
        %v855 = vpop.f32.mrf.mxu0
        %v856 = vadd.f32 0.0, %v855
        %857 = vmatmul.f32.gmra.mxu0 %v729
        %v858 = vpop.f32.mrf.mxu0
        %v859 = vadd.f32 0.0, %v858
        %860 = vmatmul.f32.gmra.mxu0 %v732
        %v861 = vpop.f32.mrf.mxu0
        %v862 = vadd.f32 0.0, %v861
        %863 = vmatmul.f32.gmra.mxu0 %v735
        %v864 = vpop.f32.mrf.mxu0
        %v865 = vadd.f32 0.0, %v864
        %866 = vmatmul.f32.gmra.mxu0 %v738
        %v867 = vpop.f32.mrf.mxu0
        %v868 = vadd.f32 0.0, %v867
        %869 = vmatmul.f32.gmra.mxu0 %v741
        %v870 = vpop.f32.mrf.mxu0
        %v871 = vadd.f32 0.0, %v870
        %872 = vmatmul.f32.gmra.mxu0 %v744
        %v873 = vpop.f32.mrf.mxu0
        %v874 = vadd.f32 0.0, %v873
        %875 = vmatmul.f32.gmra.mxu0 %v747
        %v876 = vpop.f32.mrf.mxu0
        %v877 = vadd.f32 0.0, %v876
        %878 = vmatmul.f32.gmra.mxu0 %v750
        %v879 = vpop.f32.mrf.mxu0
        %v880 = vadd.f32 0.0, %v879
        %881 = vmatmul.f32.gmra.mxu0 %v753
        %v882 = vpop.f32.mrf.mxu0
        %v883 = vadd.f32 0.0, %v882
        %884 = vmatmul.f32.gmra.mxu0 %v756
        %v885 = vpop.f32.mrf.mxu0
        %v886 = vadd.f32 0.0, %v885
        %887 = vmatmul.f32.gmra.mxu0 %v759
        %v888 = vpop.f32.mrf.mxu0
        %v889 = vadd.f32 0.0, %v888
        %890 = vmatmul.f32.gmra.mxu0 %v762
        %v891 = vpop.f32.mrf.mxu0
        %v892 = vadd.f32 0.0, %v891
        %893 = vmatmul.f32.gmra.mxu0 %v765
        %v894 = vpop.f32.mrf.mxu0
        %v895 = vadd.f32 0.0, %v894
        %896 = vmatmul.f32.gmra.mxu0 %v768
        %v897 = vpop.f32.mrf.mxu0
        %v898 = vadd.f32 0.0, %v897
        %899 = vmatmul.f32.gmra.mxu0 %v771
        %v900 = vpop.f32.mrf.mxu0
        %v901 = vadd.f32 0.0, %v900
        %902 = vdwg.mxu0
        %v903 = vld [vmem:[%s1] sm:$0xff]
        %v904 = vld [vmem:[%s1 + $0x8] sm:$0xff]
        %v905 = vld [vmem:[%s1 + $0x10] sm:$0xff]
        %v906 = vld [vmem:[%s1 + $0x18] sm:$0xff]
        %v907 = vld [vmem:[%s1 + $0x20] sm:$0xff]
        %v908 = vld [vmem:[%s1 + $0x28] sm:$0xff]
        %v909 = vld [vmem:[%s1 + $0x30] sm:$0xff]
        %v910 = vld [vmem:[%s1 + $0x38] sm:$0xff]
        %v911 = vld [vmem:[%s1 + $0x40] sm:$0xff]
        %v912 = vld [vmem:[%s1 + $0x48] sm:$0xff]
        %v913 = vld [vmem:[%s1 + $0x50] sm:$0xff]
        %v914 = vld [vmem:[%s1 + $0x58] sm:$0xff]
        %v915 = vld [vmem:[%s1 + $0x60] sm:$0xff]
        %v916 = vld [vmem:[%s1 + $0x68] sm:$0xff]
        %v917 = vld [vmem:[%s1 + $0x70] sm:$0xff]
        %v918 = vld [vmem:[%s1 + $0x78] sm:$0xff]
        %v919 = vld [vmem:[%s2] sm:$0xff]
        %v920 = vld [vmem:[%s2 + $0x8] sm:$0xff]
        %v921 = vld [vmem:[%s2 + $0x10] sm:$0xff]
        %v922 = vld [vmem:[%s2 + $0x18] sm:$0xff]
        %v923 = vld [vmem:[%s2 + $0x20] sm:$0xff]
        %v924 = vld [vmem:[%s2 + $0x28] sm:$0xff]
        %v925 = vld [vmem:[%s2 + $0x30] sm:$0xff]
        %v926 = vld [vmem:[%s2 + $0x38] sm:$0xff]
        %v927 = vld [vmem:[%s2 + $0x40] sm:$0xff]
        %v928 = vld [vmem:[%s2 + $0x48] sm:$0xff]
        %v929 = vld [vmem:[%s2 + $0x50] sm:$0xff]
        %v930 = vld [vmem:[%s2 + $0x58] sm:$0xff]
        %v931 = vld [vmem:[%s2 + $0x60] sm:$0xff]
        %v932 = vld [vmem:[%s2 + $0x68] sm:$0xff]
        %v933 = vld [vmem:[%s2 + $0x70] sm:$0xff]
        %v934 = vld [vmem:[%s2 + $0x78] sm:$0xff]
        %v935 = vmul.f32 %v856, %v903
        %v936 = vmul.f32 %v859, %v904
        %v937 = vmul.f32 %v862, %v905
        %v938 = vmul.f32 %v865, %v906
        %v939 = vmul.f32 %v868, %v907
        %v940 = vmul.f32 %v871, %v908
        %v941 = vmul.f32 %v874, %v909
        %v942 = vmul.f32 %v877, %v910
        %v943 = vmul.f32 %v880, %v911
        %v944 = vmul.f32 %v883, %v912
        %v945 = vmul.f32 %v886, %v913
        %v946 = vmul.f32 %v889, %v914
        %v947 = vmul.f32 %v892, %v915
        %v948 = vmul.f32 %v895, %v916
        %v949 = vmul.f32 %v898, %v917
        %v950 = vmul.f32 %v901, %v918
        %951 = vst.msk [vmem:[%s282] sm:$0xff] %vm422, %v935
        %952 = vst.msk [vmem:[%s282 + $0x8] sm:$0xff] %vm422, %v936
        %953 = vst.msk [vmem:[%s282 + $0x10] sm:$0xff] %vm422, %v937
        %954 = vst.msk [vmem:[%s282 + $0x18] sm:$0xff] %vm422, %v938
        %955 = vst.msk [vmem:[%s282 + $0x20] sm:$0xff] %vm422, %v939
        %956 = vst.msk [vmem:[%s282 + $0x28] sm:$0xff] %vm422, %v940
        %957 = vst.msk [vmem:[%s282 + $0x30] sm:$0xff] %vm422, %v941
        %958 = vst.msk [vmem:[%s282 + $0x38] sm:$0xff] %vm422, %v942
        %959 = vst.msk [vmem:[%s282 + $0x40] sm:$0xff] %vm422, %v943
        %960 = vst.msk [vmem:[%s282 + $0x48] sm:$0xff] %vm422, %v944
        %961 = vst.msk [vmem:[%s282 + $0x50] sm:$0xff] %vm422, %v945
        %962 = vst.msk [vmem:[%s282 + $0x58] sm:$0xff] %vm422, %v946
        %963 = vst.msk [vmem:[%s282 + $0x60] sm:$0xff] %vm422, %v947
        %964 = vst.msk [vmem:[%s282 + $0x68] sm:$0xff] %vm422, %v948
        %965 = vst.msk [vmem:[%s282 + $0x70] sm:$0xff] %vm422, %v949
        %966 = vst.msk [vmem:[%s282 + $0x78] sm:$0xff] %vm422, %v950
        %v967 = vmul.f32 %v791, %v935
        %v968 = vmul.f32 %v794, %v936
        %v969 = vmul.f32 %v797, %v937
        %v970 = vmul.f32 %v800, %v938
        %v971 = vmul.f32 %v803, %v939
        %v972 = vmul.f32 %v806, %v940
        %v973 = vmul.f32 %v809, %v941
        %v974 = vmul.f32 %v812, %v942
        %v975 = vmul.f32 %v815, %v943
        %v976 = vmul.f32 %v818, %v944
        %v977 = vmul.f32 %v821, %v945
        %v978 = vmul.f32 %v824, %v946
        %v979 = vmul.f32 %v827, %v947
        %v980 = vmul.f32 %v830, %v948
        %v981 = vmul.f32 %v833, %v949
        %v982 = vmul.f32 %v836, %v950
        %v983 = vsub.f32 %v919, %v967
        %v984 = vsub.f32 %v920, %v968
        %v985 = vsub.f32 %v921, %v969
        %v986 = vsub.f32 %v922, %v970
        %v987 = vsub.f32 %v923, %v971
        %v988 = vsub.f32 %v924, %v972
        %v989 = vsub.f32 %v925, %v973
        %v990 = vsub.f32 %v926, %v974
        %v991 = vsub.f32 %v927, %v975
        %v992 = vsub.f32 %v928, %v976
        %v993 = vsub.f32 %v929, %v977
        %v994 = vsub.f32 %v930, %v978
        %v995 = vsub.f32 %v931, %v979
        %v996 = vsub.f32 %v932, %v980
        %v997 = vsub.f32 %v933, %v981
        %v998 = vsub.f32 %v934, %v982
        %999 = vst.msk [vmem:[%s287] sm:$0xff] %vm422, %v983
        %1000 = vst.msk [vmem:[%s287 + $0x8] sm:$0xff] %vm422, %v984
        %1001 = vst.msk [vmem:[%s287 + $0x10] sm:$0xff] %vm422, %v985
        %1002 = vst.msk [vmem:[%s287 + $0x18] sm:$0xff] %vm422, %v986
        %1003 = vst.msk [vmem:[%s287 + $0x20] sm:$0xff] %vm422, %v987
        %1004 = vst.msk [vmem:[%s287 + $0x28] sm:$0xff] %vm422, %v988
        %1005 = vst.msk [vmem:[%s287 + $0x30] sm:$0xff] %vm422, %v989
        %1006 = vst.msk [vmem:[%s287 + $0x38] sm:$0xff] %vm422, %v990
        %1007 = vst.msk [vmem:[%s287 + $0x40] sm:$0xff] %vm422, %v991
        %1008 = vst.msk [vmem:[%s287 + $0x48] sm:$0xff] %vm422, %v992
        %1009 = vst.msk [vmem:[%s287 + $0x50] sm:$0xff] %vm422, %v993
        %1010 = vst.msk [vmem:[%s287 + $0x58] sm:$0xff] %vm422, %v994
        %1011 = vst.msk [vmem:[%s287 + $0x60] sm:$0xff] %vm422, %v995
        %1012 = vst.msk [vmem:[%s287 + $0x68] sm:$0xff] %vm422, %v996
        %1013 = vst.msk [vmem:[%s287 + $0x70] sm:$0xff] %vm422, %v997
        %1014 = vst.msk [vmem:[%s287 + $0x78] sm:$0xff] %vm422, %v998
      $region48: #{spatial_self_attention.4} parent=39 // pred_fallthru
        _
      %p1015 = scmp.lt.s32.totalorder %s22, 1
      %s1016 = scalar_select %p1015, %s22, 1
      %s1017 = smul.addr %s1016, 16
      %s1018 = smul.addr %s1017, 8
      %s1019 = scalar_lea.vmem %s5, %s1018
      %p1020 = scmp.lt.s32.totalorder %s22, 1
      %s1021 = scalar_select %p1020, %s22, 1
      %s1022 = smul.addr %s1021, 16
      %s1023 = smul.addr %s1022, 8
      %s1024 = scalar_lea.vmem %s6, %s1023
      // Predicated region
      $region49: #{spatial_self_attention.4} parent=39 // pred_check
        %p1025 = pneg %p160
      $region50: #{spatial_self_attention.4} parent=39 // pred_check_branch
        %1027 = sbr.rel (%p1025) target = $region52
      $region51: #{spatial_self_attention.4} parent=39 // pred_region
        _
      $region52: #{spatial_self_attention.4} parent=39 // pred_fallthru
        _
      // Predicated region
      $region53: #{spatial_self_attention.4} parent=39 // pred_check
        %p1028 = pneg %p186
      $region54: #{spatial_self_attention.4} parent=39 // pred_check_branch
        %1030 = sbr.rel (%p1028) target = $region56
      $region55: #{spatial_self_attention.4} parent=39 // pred_region
        _
      $region56: #{spatial_self_attention.4} parent=39 // pred_fallthru
        _
    $region40: #{spatial_self_attention.4} parent=5 // pred_fallthru
      _
    %p1031 = scmp.le.s32.totalorder 2, %s13
    // Predicated region
    $region57: #{spatial_self_attention.4} parent=5 // pred_check
      %p1032 = pneg %p1031
    $region58: #{spatial_self_attention.4} parent=5 // pred_check_branch
      %1034 = sbr.rel (%p1032) target = $region60
    $region59: #{spatial_self_attention.4} parent=5 // pred_region
      %s1035 = ssub.s32 %s13, 2
      // Predicated region
      $region61: #{spatial_self_attention.4} parent=59 // pred_check
        %p1036 = pneg %p166
      $region62: #{spatial_self_attention.4} parent=59 // pred_check_branch
        %1038 = sbr.rel (%p1036) target = $region64
      $region63: #{spatial_self_attention.4} parent=59 // pred_region
        %p1039 = scmp.lt.s32.totalorder %s24, 1
        %s1040 = scalar_select %p1039, %s24, 1
        %s1041 = smul.addr %s1040, 16
        %s1042 = smul.addr %s1041, 8
        %s1043 = scalar_lea.vmem %s5, %s1042
      $region64: #{spatial_self_attention.4} parent=59 // pred_fallthru
        _
      // Predicated region
      $region65: #{spatial_self_attention.4} parent=59 // pred_check
        %p1044 = pneg %p192
      $region66: #{spatial_self_attention.4} parent=59 // pred_check_branch
        %1046 = sbr.rel (%p1044) target = $region68
      $region67: #{spatial_self_attention.4} parent=59 // pred_region
        %p1047 = scmp.lt.s32.totalorder %s24, 1
        %s1048 = scalar_select %p1047, %s24, 1
        %s1049 = smul.addr %s1048, 16
        %s1050 = smul.addr %s1049, 8
        %s1051 = scalar_lea.vmem %s6, %s1050
      $region68: #{spatial_self_attention.4} parent=59 // pred_fallthru
        _
    $region60: #{spatial_self_attention.4} parent=5 // pred_fallthru
      _
  $region6: #{spatial_self_attention.4} parent=0 // loop_footer
    %s17 = sadd.s32 1, %s13
  $region7: #{spatial_self_attention.4} parent=0 // loop_footer_branch
    %12 = sbr.rel target = $region3
  $region8: #{spatial_self_attention.4} parent=0 // loop_exit
    _

</llo_original>
